<compile_context>
chip_gen: v7x
topology: tpu7x:2x2x1
jax: 0.10.0
libtpu: 0.0.40
codegen_flags: <defaults>
</compile_context>

<pallas_src>
import functools

import jax
import jax.numpy as jnp
from jax.experimental import pallas as pl
from jax.experimental.pallas import tpu as pltpu


def _round_up(x, m):
    return ((x + m - 1) // m) * m


def _make_siren_kernel(hidden_layers, outermost_linear, in_features,
                       out_features, bf16_acts):
    def kernel(x_ref, w0_ref, b0_ref, wh_ref, bh_ref, wf_ref, bf_ref, o_ref):
        # omega_0 is already folded into all sine-layer weights/biases.
        def act(z):
            if bf16_acts:
                # v6e/v7x only: bf16 EUP/VPU path (~2x on the binding slot).
                z = z.astype(jnp.bfloat16)
            return jnp.sin(z)

        # --- First sine layer: sin(W0' @ x + b0') -------------------------
        # K == in_features is tiny (2 for PINN coords): a couple of VPU
        # broadcast multiply-adds beat a K=2 MXU matmul (2/256 array use plus
        # a push->pop latency chain at the head of every tile).
        if in_features <= 8:
            h = w0_ref[:, 0:1] * x_ref[0:1, :]          # (hidden, tile)
            for c in range(1, in_features):
                h = h + w0_ref[:, c:c + 1] * x_ref[c:c + 1, :]
        else:
            h = jnp.dot(w0_ref[...], x_ref[...],
                        preferred_element_type=jnp.float32)
        h = act(h + b0_ref[...])

        # --- Hidden sine layers (static unroll; hidden_layers is small) ----
        for l in range(hidden_layers):
            z = jnp.dot(wh_ref[l], h, preferred_element_type=jnp.float32)
            h = act(z + bh_ref[l])

        # --- Final layer: linear, or one more (omega-folded) sine layer ----
        y = jnp.dot(wf_ref[...], h, preferred_element_type=jnp.float32)
        y = y + bf_ref[...]
        if not outermost_linear:
            y = jnp.sin(y)
        o_ref[...] = y.astype(o_ref.dtype)               # lane-dense store

    return kernel


def init_siren_params(key, in_features, hidden_features, hidden_layers,
                      out_features, first_omega_0=30.0, hidden_omega_0=30.0):
    """Deterministic SIREN initialization (weight scheme from the paper;
    biases use the nn.Linear default uniform(-1/sqrt(fan_in), 1/sqrt(fan_in))).
    Weights are PyTorch-layout (out, in); biases are column vectors (out, 1)
    so they broadcast directly in the feature-major kernel."""
    ks = jax.random.split(key, 2 * (hidden_layers + 2))
    ki = iter(ks)

    # First layer: U(-1/in, 1/in)
    w0 = jax.random.uniform(next(ki), (hidden_features, in_features),
                            jnp.float32, -1.0 / in_features, 1.0 / in_features)
    b0 = jax.random.uniform(next(ki), (hidden_features, 1), jnp.float32,
                            -1.0 / jnp.sqrt(in_features),
                            1.0 / jnp.sqrt(in_features))

    # Hidden layers: U(-sqrt(6/in)/omega, sqrt(6/in)/omega)
    lim_h = jnp.sqrt(6.0 / hidden_features) / hidden_omega_0
    lim_b = 1.0 / jnp.sqrt(hidden_features)
    wh_list, bh_list = [], []
    for _ in range(hidden_layers):
        wh_list.append(jax.random.uniform(
            next(ki), (hidden_features, hidden_features), jnp.float32,
            -lim_h, lim_h))
        bh_list.append(jax.random.uniform(
            next(ki), (hidden_features, 1), jnp.float32, -lim_b, lim_b))
    wh = jnp.stack(wh_list, axis=0)          # (L, hidden, hidden)
    bh = jnp.stack(bh_list, axis=0)          # (L, hidden, 1)

    # Final layer (same weight scheme whether outermost_linear or not).
    wf = jax.random.uniform(next(ki), (out_features, hidden_features),
                            jnp.float32, -lim_h, lim_h)
    bf = jax.random.uniform(next(ki), (out_features, 1), jnp.float32,
                            -lim_b, lim_b)
    return dict(w0=w0, b0=b0, wh=wh, bh=bh, wf=wf, bf=bf)


@functools.partial(jax.jit, static_argnames=(
    "hidden_layers", "outermost_linear", "first_omega_0", "hidden_omega_0",
    "tile_n", "bf16_activations"))
def siren_forward(coords, params, *, hidden_layers, outermost_linear=False,
                  first_omega_0=30.0, hidden_omega_0=30.0, tile_n=16384,
                  bf16_activations=False):
    """Returns (output, coords), mirroring Siren.forward.

    coords: (N, in_features).  tile_n: batch rows per grid step (multiple of
    128).  Big tiles (16K-32K) amortize the ~0.35us per-step overhead; the
    working set at 16K rows is well under 16 MiB, and vmem_limit_bytes is
    raised explicitly so larger tiles also fit v5e's scoped default.
    bf16_activations: optional bf16 sin path for v6e/v7x (keep False on v5e).
    """
    N, in_features = coords.shape
    hidden_features = params["w0"].shape[0]
    out_features = params["wf"].shape[0]
    L = hidden_layers
    assert tile_n % 128 == 0, "tile_n must be a multiple of 128"

    # Tile selection: use the big tile when N is large; for small N split the
    # batch into >= 2 grid steps so both v7x TensorCores get work (the grid
    # axis is "parallel" and gets sharded across cores).
    if N > tile_n:
        tile = tile_n
    else:
        tile = max(128, _round_up(-(-N // 2), 128))
    grid = (pl.cdiv(N, tile),)   # ragged last block is fine: columns are
                                 # independent and the edge writeback is
                                 # bounded to the valid region by Pallas.

    # Fold omega_0 into the sine-layer parameters (tiny arrays, scaled once
    # outside the kernel) so the kernel computes sin(W'h + b') directly.
    w0 = params["w0"] * first_omega_0
    b0 = params["b0"] * first_omega_0
    wh = params["wh"] * hidden_omega_0
    bh = params["bh"] * hidden_omega_0
    if outermost_linear:
        wf, bf = params["wf"], params["bf"]
    else:
        wf = params["wf"] * hidden_omega_0
        bf = params["bf"] * hidden_omega_0

    # Feature-major input: batch on the lane axis.  allow_input_fusion lets
    # XLA fuse this transpose into the pallas_call input DMA instead of
    # materializing an extra HBM pass over the coords.
    xT = coords.T                                        # (in_features, N)

    kernel = _make_siren_kernel(L, outermost_linear, in_features,
                                out_features, bf16_activations)

    # Advisory cost hint for the XLA scheduler.
    flops = 2 * N * hidden_features * (in_features + L * hidden_features
                                       + out_features)
    transcendentals = N * hidden_features * (L + 1) \
        + (0 if outermost_linear else N * out_features)
    weight_elems = (hidden_features * in_features + hidden_features
                    + L * (hidden_features * hidden_features + hidden_features)
                    + out_features * hidden_features + out_features)
    bytes_accessed = 4 * (N * (in_features + out_features) + weight_elems)
    cost = pl.CostEstimate(flops=flops, transcendentals=transcendentals,
                           bytes_accessed=bytes_accessed)

    # Weight/bias index_maps are constant, so Pallas does not re-DMA them
    # across grid steps; their VMEM footprint is tens of KB.
    out_t = pl.pallas_call(
        kernel,
        out_shape=jax.ShapeDtypeStruct((out_features, N), coords.dtype),
        grid_spec=pltpu.PrefetchScalarGridSpec(
            num_scalar_prefetch=0,
            grid=grid,
            in_specs=[
                pl.BlockSpec((in_features, tile), lambda i: (0, i)),
                pl.BlockSpec((hidden_features, in_features), lambda i: (0, 0)),
                pl.BlockSpec((hidden_features, 1), lambda i: (0, 0)),
                pl.BlockSpec((L, hidden_features, hidden_features),
                             lambda i: (0, 0, 0)),
                pl.BlockSpec((L, hidden_features, 1), lambda i: (0, 0, 0)),
                pl.BlockSpec((out_features, hidden_features), lambda i: (0, 0)),
                pl.BlockSpec((out_features, 1), lambda i: (0, 0)),
            ],
            out_specs=pl.BlockSpec((out_features, tile), lambda i: (0, i)),
        ),
        compiler_params=pltpu.CompilerParams(
            dimension_semantics=("parallel",),
            vmem_limit_bytes=64 * 1024 * 1024,
            allow_input_fusion=[True, False, False, False, False, False,
                                False]),
        cost_estimate=cost,
    )(xT, w0, b0, wh, bh, wf, bf)

    # No materialized output transpose when out_features == 1 (the common
    # PINN case): (1, N) and (N, 1) share the same flat layout.
    if out_features == 1:
        out = out_t[0, :][:, None]                        # (N, 1)
    else:
        out = out_t.T                                     # (N, out_features)
    # TODO(synk): the PyTorch module returns coords with requires_grad=True
    # for autograd PDE residuals; in JAX gradients are taken functionally, so
    # we simply return coords alongside the output.
    return out, coords


def _reference_forward(coords, params, *, hidden_layers, outermost_linear,
                       first_omega_0, hidden_omega_0):
    h = jnp.sin(first_omega_0 * (coords @ params["w0"].T + params["b0"].T))
    for l in range(hidden_layers):
        h = jnp.sin(hidden_omega_0 * (h @ params["wh"][l].T
                                      + params["bh"][l].T))
    y = h @ params["wf"].T + params["bf"].T
    if not outermost_linear:
        y = jnp.sin(hidden_omega_0 * y)
    return y


if __name__ == "__main__":
    # Small but representative SIREN config: 2-D coords -> 1-D field.
    in_features = 2
    hidden_features = 32
    hidden_layers = 3
    out_features = 1
    outermost_linear = False
    first_omega_0 = 30.0
    hidden_omega_0 = 30.0

    key = jax.random.PRNGKey(0)
    kp, kx = jax.random.split(key)
    params = init_siren_params(kp, in_features, hidden_features,
                               hidden_layers, out_features,
                               first_omega_0, hidden_omega_0)

    # N=512 with the default tile_n: the small-N clamp splits this into two
    # 256-wide grid steps (exercises the pipelined path and keeps both v7x
    # TensorCores busy).  For real PINN workloads pass large N and keep the
    # default 16K tile.
    N = 512
    coords = jax.random.uniform(kx, (N, in_features), jnp.float32, -1.0, 1.0)

    out, coords_out = siren_forward(
        coords, params,
        hidden_layers=hidden_layers,
        outermost_linear=outermost_linear,
        first_omega_0=first_omega_0,
        hidden_omega_0=hidden_omega_0)
    out = jax.block_until_ready(out)

    ref = _reference_forward(coords, params,
                             hidden_layers=hidden_layers,
                             outermost_linear=outermost_linear,
                             first_omega_0=first_omega_0,
                             hidden_omega_0=hidden_omega_0)
    assert out.shape == (N, out_features)
    assert coords_out.shape == (N, in_features)
    # Slightly relaxed tolerance: feature-major matmul ordering and the
    # omega-folded weights differ in rounding from the reference, and
    # sin(30*x) amplifies f32 rounding across layers.
    assert jnp.allclose(out, ref, atol=1e-4, rtol=1e-4), float(
        jnp.max(jnp.abs(out - ref)))
    print("KERNEL_OK")
</pallas_src>

<mosaic_0001>
module attributes {stable_mosaic.version = 11 : i64} {
  func.func @kernel(%arg0: i32, %arg1: memref<2x256xf32, #tpu.memory_space<vmem>>, %arg2: memref<32x2xf32, #tpu.memory_space<vmem>>, %arg3: memref<32x1xf32, #tpu.memory_space<vmem>>, %arg4: memref<3x32x32xf32, #tpu.memory_space<vmem>>, %arg5: memref<3x32x1xf32, #tpu.memory_space<vmem>>, %arg6: memref<1x32xf32, #tpu.memory_space<vmem>>, %arg7: memref<1x1xf32, #tpu.memory_space<vmem>>, %arg8: memref<1x256xf32, #tpu.memory_space<vmem>>) attributes {dimension_semantics = [#tpu.dimension_semantics<parallel>], iteration_bounds = array<i64: 2>, scalar_prefetch = 0 : i64, scratch_operands = 0 : i64, tpu.core_type = #tpu.core_type<tc>, window_params = [{transform_indices = @transform_0, window_bounds = array<i64: 2, 256>}, {pipeline_mode = #tpu.pipeline_mode<synchronous>, transform_indices = @transform_1, window_bounds = array<i64: 32, 2>}, {pipeline_mode = #tpu.pipeline_mode<synchronous>, transform_indices = @transform_2, window_bounds = array<i64: 32, 1>}, {pipeline_mode = #tpu.pipeline_mode<synchronous>, transform_indices = @transform_3, window_bounds = array<i64: 3, 32, 32>}, {pipeline_mode = #tpu.pipeline_mode<synchronous>, transform_indices = @transform_4, window_bounds = array<i64: 3, 32, 1>}, {pipeline_mode = #tpu.pipeline_mode<synchronous>, transform_indices = @transform_5, window_bounds = array<i64: 1, 32>}, {pipeline_mode = #tpu.pipeline_mode<synchronous>, transform_indices = @transform_6, window_bounds = array<i64: 1, 1>}, {transform_indices = @transform_7, window_bounds = array<i64: 1, 256>}]} {
    %c0 = arith.constant 0 : index
    %c0_0 = arith.constant 0 : index
    %0 = vector.load %arg2[%c0, %c0_0] : memref<32x2xf32, #tpu.memory_space<vmem>>, vector<32x1xf32>
    %c0_1 = arith.constant 0 : index
    %c0_2 = arith.constant 0 : index
    %1 = vector.load %arg1[%c0_1, %c0_2] : memref<2x256xf32, #tpu.memory_space<vmem>>, vector<1x256xf32>
    %2 = vector.broadcast %0 : vector<32x1xf32> to vector<32x256xf32>
    %3 = vector.broadcast %1 : vector<1x256xf32> to vector<32x256xf32>
    %4 = arith.mulf %2, %3 : vector<32x256xf32>
    %c0_3 = arith.constant 0 : index
    %c1 = arith.constant 1 : index
    %5 = vector.load %arg2[%c0_3, %c1] : memref<32x2xf32, #tpu.memory_space<vmem>>, vector<32x1xf32>
    %c1_4 = arith.constant 1 : index
    %c0_5 = arith.constant 0 : index
    %6 = vector.load %arg1[%c1_4, %c0_5] : memref<2x256xf32, #tpu.memory_space<vmem>>, vector<1x256xf32>
    %7 = vector.broadcast %5 : vector<32x1xf32> to vector<32x256xf32>
    %8 = vector.broadcast %6 : vector<1x256xf32> to vector<32x256xf32>
    %9 = arith.mulf %7, %8 : vector<32x256xf32>
    %10 = arith.addf %4, %9 : vector<32x256xf32>
    %c0_6 = arith.constant 0 : index
    %c0_7 = arith.constant 0 : index
    %11 = vector.load %arg3[%c0_6, %c0_7] : memref<32x1xf32, #tpu.memory_space<vmem>>, vector<32x1xf32>
    %12 = vector.broadcast %11 : vector<32x1xf32> to vector<32x256xf32>
    %13 = arith.addf %10, %12 : vector<32x256xf32>
    %14 = math.sin %13 : vector<32x256xf32>
    %c0_8 = arith.constant 0 : index
    %c0_9 = arith.constant 0 : index
    %c0_10 = arith.constant 0 : index
    %15 = vector.load %arg4[%c0_8, %c0_9, %c0_10] : memref<3x32x32xf32, #tpu.memory_space<vmem>>, vector<1x32x32xf32>
    %16 = vector.shape_cast %15 : vector<1x32x32xf32> to vector<32x32xf32>
    %cst = arith.constant dense<0.000000e+00> : vector<32x256xf32>
    %17 = tpu.matmul %16, %14, %cst {dimension_numbers = #tpu.dot_dimension_numbers<[1], [0], [0], [1], [0, 0, 1, 1], [], []>} : vector<32x32xf32>, vector<32x256xf32>, vector<32x256xf32> -> vector<32x256xf32>
    %c0_11 = arith.constant 0 : index
    %c0_12 = arith.constant 0 : index
    %c0_13 = arith.constant 0 : index
    %18 = vector.load %arg5[%c0_11, %c0_12, %c0_13] : memref<3x32x1xf32, #tpu.memory_space<vmem>>, vector<1x32x1xf32>
    %19 = vector.shape_cast %18 : vector<1x32x1xf32> to vector<32x1xf32>
    %20 = vector.broadcast %19 : vector<32x1xf32> to vector<32x256xf32>
    %21 = arith.addf %17, %20 : vector<32x256xf32>
    %22 = math.sin %21 : vector<32x256xf32>
    %c1_14 = arith.constant 1 : index
    %c0_15 = arith.constant 0 : index
    %c0_16 = arith.constant 0 : index
    %23 = vector.load %arg4[%c1_14, %c0_15, %c0_16] : memref<3x32x32xf32, #tpu.memory_space<vmem>>, vector<1x32x32xf32>
    %24 = vector.shape_cast %23 : vector<1x32x32xf32> to vector<32x32xf32>
    %cst_17 = arith.constant dense<0.000000e+00> : vector<32x256xf32>
    %25 = tpu.matmul %24, %22, %cst_17 {dimension_numbers = #tpu.dot_dimension_numbers<[1], [0], [0], [1], [0, 0, 1, 1], [], []>} : vector<32x32xf32>, vector<32x256xf32>, vector<32x256xf32> -> vector<32x256xf32>
    %c1_18 = arith.constant 1 : index
    %c0_19 = arith.constant 0 : index
    %c0_20 = arith.constant 0 : index
    %26 = vector.load %arg5[%c1_18, %c0_19, %c0_20] : memref<3x32x1xf32, #tpu.memory_space<vmem>>, vector<1x32x1xf32>
    %27 = vector.shape_cast %26 : vector<1x32x1xf32> to vector<32x1xf32>
    %28 = vector.broadcast %27 : vector<32x1xf32> to vector<32x256xf32>
    %29 = arith.addf %25, %28 : vector<32x256xf32>
    %30 = math.sin %29 : vector<32x256xf32>
    %c2 = arith.constant 2 : index
    %c0_21 = arith.constant 0 : index
    %c0_22 = arith.constant 0 : index
    %31 = vector.load %arg4[%c2, %c0_21, %c0_22] : memref<3x32x32xf32, #tpu.memory_space<vmem>>, vector<1x32x32xf32>
    %32 = vector.shape_cast %31 : vector<1x32x32xf32> to vector<32x32xf32>
    %cst_23 = arith.constant dense<0.000000e+00> : vector<32x256xf32>
    %33 = tpu.matmul %32, %30, %cst_23 {dimension_numbers = #tpu.dot_dimension_numbers<[1], [0], [0], [1], [0, 0, 1, 1], [], []>} : vector<32x32xf32>, vector<32x256xf32>, vector<32x256xf32> -> vector<32x256xf32>
    %c2_24 = arith.constant 2 : index
    %c0_25 = arith.constant 0 : index
    %c0_26 = arith.constant 0 : index
    %34 = vector.load %arg5[%c2_24, %c0_25, %c0_26] : memref<3x32x1xf32, #tpu.memory_space<vmem>>, vector<1x32x1xf32>
    %35 = vector.shape_cast %34 : vector<1x32x1xf32> to vector<32x1xf32>
    %36 = vector.broadcast %35 : vector<32x1xf32> to vector<32x256xf32>
    %37 = arith.addf %33, %36 : vector<32x256xf32>
    %38 = math.sin %37 : vector<32x256xf32>
    %c0_27 = arith.constant 0 : index
    %c0_28 = arith.constant 0 : index
    %39 = vector.load %arg6[%c0_27, %c0_28] : memref<1x32xf32, #tpu.memory_space<vmem>>, vector<1x32xf32>
    %cst_29 = arith.constant dense<0.000000e+00> : vector<1x256xf32>
    %40 = tpu.matmul %39, %38, %cst_29 {dimension_numbers = #tpu.dot_dimension_numbers<[1], [0], [0], [1], [0, 0, 1, 1], [], []>} : vector<1x32xf32>, vector<32x256xf32>, vector<1x256xf32> -> vector<1x256xf32>
    %c0_30 = arith.constant 0 : index
    %c0_31 = arith.constant 0 : index
    %41 = vector.load %arg7[%c0_30, %c0_31] : memref<1x1xf32, #tpu.memory_space<vmem>>, vector<1x1xf32>
    %42 = vector.broadcast %41 : vector<1x1xf32> to vector<1x256xf32>
    %43 = arith.addf %40, %42 : vector<1x256xf32>
    %44 = math.sin %43 : vector<1x256xf32>
    %c0_32 = arith.constant 0 : index
    %c0_33 = arith.constant 0 : index
    %45 = vector.load %arg8[%c0_32, %c0_33] : memref<1x256xf32, #tpu.memory_space<vmem>>, vector<1x256xf32>
    tpu.vector_store %arg8[%c0_32, %c0_33], %44 {strides = array<i32>} : memref<1x256xf32, #tpu.memory_space<vmem>>, vector<1x256xf32>,
    return
  }
  func.func @transform_0(%arg0: i32) -> (i32, i32) {
    %c0_i32 = arith.constant 0 : i32
    %c0_i32_0 = arith.constant 0 : i32
    return %c0_i32, %arg0 : i32, i32
  }
  func.func @transform_1(%arg0: i32) -> (i32, i32) {
    %c0_i32 = arith.constant 0 : i32
    %c0_i32_0 = arith.constant 0 : i32
    %c0_i32_1 = arith.constant 0 : i32
    return %c0_i32, %c0_i32_0 : i32, i32
  }
  func.func @transform_2(%arg0: i32) -> (i32, i32) {
    %c0_i32 = arith.constant 0 : i32
    %c0_i32_0 = arith.constant 0 : i32
    %c0_i32_1 = arith.constant 0 : i32
    return %c0_i32, %c0_i32_0 : i32, i32
  }
  func.func @transform_3(%arg0: i32) -> (i32, i32, i32) {
    %c0_i32 = arith.constant 0 : i32
    %c0_i32_0 = arith.constant 0 : i32
    %c0_i32_1 = arith.constant 0 : i32
    %c0_i32_2 = arith.constant 0 : i32
    return %c0_i32, %c0_i32_0, %c0_i32_1 : i32, i32, i32
  }
  func.func @transform_4(%arg0: i32) -> (i32, i32, i32) {
    %c0_i32 = arith.constant 0 : i32
    %c0_i32_0 = arith.constant 0 : i32
    %c0_i32_1 = arith.constant 0 : i32
    %c0_i32_2 = arith.constant 0 : i32
    return %c0_i32, %c0_i32_0, %c0_i32_1 : i32, i32, i32
  }
  func.func @transform_5(%arg0: i32) -> (i32, i32) {
    %c0_i32 = arith.constant 0 : i32
    %c0_i32_0 = arith.constant 0 : i32
    %c0_i32_1 = arith.constant 0 : i32
    return %c0_i32, %c0_i32_0 : i32, i32
  }
  func.func @transform_6(%arg0: i32) -> (i32, i32) {
    %c0_i32 = arith.constant 0 : i32
    %c0_i32_0 = arith.constant 0 : i32
    %c0_i32_1 = arith.constant 0 : i32
    return %c0_i32, %c0_i32_0 : i32, i32
  }
  func.func @transform_7(%arg0: i32) -> (i32, i32) {
    %c0_i32 = arith.constant 0 : i32
    %c0_i32_0 = arith.constant 0 : i32
    return %c0_i32, %arg0 : i32, i32
  }
}

</mosaic_0001>

<llo_original>
// kernel: siren_forward.2
$region0: #{siren_forward.2}
  #allocation0 [shape = 'u32[]', space=smem, size = 0x4, offset = 0x4, fixed_abs, tag = 'smem constant byte address 0x4 - core index']
  #allocation1 [shape = 'u32[144,128]{1,0:T(1,128)}', space=vmem, size = 0x12000, scoped, tag = 'internal scratch']
  #allocation2 [shape = 'f32[1,1]{1,0:T(1,128)S(1)}', space=vmem, size = 0x200, scoped, tag = 'scoped memory for siren_forward.2']
  %s0 = inlined_call_operand.vmem [shape: f32[32,2], index: 0, kind: input, shape index: {}]
  %s1 = inlined_call_operand.vmem [shape: f32[32,1], index: 1, kind: input, shape index: {}]
  %s2 = inlined_call_operand.vmem [shape: f32[3,32,32], index: 2, kind: input, shape index: {}]
  %s3 = inlined_call_operand.vmem [shape: f32[3,32,1], index: 3, kind: input, shape index: {}]
  %s4 = inlined_call_operand.vmem [shape: f32[1,32], index: 4, kind: input, shape index: {}]
  %s5 = inlined_call_operand.<no memory space> [shape: f32[1,1], index: 5, kind: input, shape index: {}]
  %s6 = inlined_call_operand.vmem [shape: f32[512,2], index: 6, kind: input, shape index: {}]
  %s7 = inlined_call_operand.hbm [shape: f32[1,512], index: 7, kind: output, shape index: {}]
  %s8 = sld [smem:[#allocation0]]
  $region61: #{siren_forward.2} parent=0
    _
  %s10 = ssub.s32 1, %s8
  %s11 = scalar_select 0, %s10, %s8
  %v12 = vstv %s5
  %13 = vst [vmem:[#allocation2] sm:$0x1] %v12
  $region1: #{siren_forward.2} parent=0
    #allocation3 [shape = 'u8[2048]{0}', space=vmem, size = 0x800, scoped, tag = 'output window, operand 0']
    #allocation4 [shape = 's32[2]{0}', space=sflag, size = 0x8, scoped, tag = 'scoped memory for siren_forward.2']
    %14 = vsyncpa [#allocation4], 0
    %s15 = scalar_lea.sflag [#allocation4], 1
    %16 = vsyncpa %s15, 0
    loop: start=0, step=1, limit=4
    $region2: #{siren_forward.2} parent=1 // loop_pre_header
      _
    $region3: #{siren_forward.2} parent=1 // loop_header
      %s18 = sphi 0, %s22
      %p19 = scmp.ge.s32.totalorder %s18, 4
      %s28 = sphi 0, %s30
      %s31 = sphi 0, %s28
      %s32 = sphi 0, %s31
      %s48 = sphi 0, %s32
      %s52 = sphi 0, %s52
      %s54 = sphi 0, %s52
      %s55 = sphi 0, %s54
      %s69 = sphi 0, %s55
      %s73 = sphi 0, %s73
      %s75 = sphi 0, %s73
      %s76 = sphi 0, %s75
      %s90 = sphi 0, %s76
      %s94 = sphi 0, %s94
      %s96 = sphi 0, %s94
      %s97 = sphi 0, %s96
      %s111 = sphi 0, %s97
      %s115 = sphi 0, %s115
      %s117 = sphi 0, %s115
      %s118 = sphi 0, %s117
      %s132 = sphi 0, %s118
      %s136 = sphi 0, %s136
      %s138 = sphi 0, %s136
      %s139 = sphi 0, %s138
      %s153 = sphi 0, %s139
      %s157 = sphi 0, %s157
      %s159 = sphi 0, %s157
      %s160 = sphi 0, %s159
      %s174 = sphi 0, %s160
      %s180 = sphi 0, %s182
      %s183 = sphi 0, %s180
      %s184 = sphi 0, %s183
      %s200 = sphi 0, %s184
    $region4: #{siren_forward.2} parent=1 // loop_header_branch
      %21 = sbr.rel (%p19) target = $region8
    $region5: #{siren_forward.2} parent=1 // loop_body
      %s23 = ssub.s32 %s18, 1
      %s24 = ssub.s32 %s18, 2
      %s25 = sadd.s32 %s18, 1
      %s26 = ssub.s32 %s18, %s25
      %p27 = scmp.eq.s32.totalorder %s26, 0
      %s29 = sadd.s32 %s28, 1
      %s30 = scalar_select %p27, %s28, %s29
      %p33 = pneg %p27
      %p34 = scmp.eq.s32.totalorder %s18, 1
      %p35 = por %p33, %p34
      %p36 = scmp.ne.s32.totalorder %s28, %s31
      %p37 = scmp.eq.s32.totalorder %s18, 0
      %p38 = por %p36, %p37
      %p39 = scmp.ne.s32.totalorder %s28, %s31
      %p40 = scmp.eq.s32.totalorder %s23, 1
      %p41 = por %p39, %p40
      %p42 = scmp.ne.s32.totalorder %s31, %s32
      %p43 = scmp.eq.s32.totalorder %s23, 0
      %p44 = por %p42, %p43
      %p45 = scmp.ne.s32.totalorder %s31, %s32
      %p46 = scmp.eq.s32.totalorder %s24, 1
      %p47 = por %p45, %p46
      %p49 = scmp.ne.s32.totalorder %s32, %s48
      %p50 = scmp.eq.s32.totalorder %s24, 0
      %p51 = por %p49, %p50
      %s53 = sadd.s32 %s52, 1
      %p56 = scmp.eq.s32.totalorder %s18, 1
      %p57 = scmp.ne.s32.totalorder %s52, %s54
      %p58 = scmp.eq.s32.totalorder %s18, 0
      %p59 = por %p57, %p58
      %p60 = scmp.ne.s32.totalorder %s52, %s54
      %p61 = scmp.eq.s32.totalorder %s23, 1
      %p62 = por %p60, %p61
      %p63 = scmp.ne.s32.totalorder %s54, %s55
      %p64 = scmp.eq.s32.totalorder %s23, 0
      %p65 = por %p63, %p64
      %p66 = scmp.ne.s32.totalorder %s54, %s55
      %p67 = scmp.eq.s32.totalorder %s24, 1
      %p68 = por %p66, %p67
      %p70 = scmp.ne.s32.totalorder %s55, %s69
      %p71 = scmp.eq.s32.totalorder %s24, 0
      %p72 = por %p70, %p71
      %s74 = sadd.s32 %s73, 1
      %p77 = scmp.eq.s32.totalorder %s18, 1
      %p78 = scmp.ne.s32.totalorder %s73, %s75
      %p79 = scmp.eq.s32.totalorder %s18, 0
      %p80 = por %p78, %p79
      %p81 = scmp.ne.s32.totalorder %s73, %s75
      %p82 = scmp.eq.s32.totalorder %s23, 1
      %p83 = por %p81, %p82
      %p84 = scmp.ne.s32.totalorder %s75, %s76
      %p85 = scmp.eq.s32.totalorder %s23, 0
      %p86 = por %p84, %p85
      %p87 = scmp.ne.s32.totalorder %s75, %s76
      %p88 = scmp.eq.s32.totalorder %s24, 1
      %p89 = por %p87, %p88
      %p91 = scmp.ne.s32.totalorder %s76, %s90
      %p92 = scmp.eq.s32.totalorder %s24, 0
      %p93 = por %p91, %p92
      %s95 = sadd.s32 %s94, 1
      %p98 = scmp.eq.s32.totalorder %s18, 1
      %p99 = scmp.ne.s32.totalorder %s94, %s96
      %p100 = scmp.eq.s32.totalorder %s18, 0
      %p101 = por %p99, %p100
      %p102 = scmp.ne.s32.totalorder %s94, %s96
      %p103 = scmp.eq.s32.totalorder %s23, 1
      %p104 = por %p102, %p103
      %p105 = scmp.ne.s32.totalorder %s96, %s97
      %p106 = scmp.eq.s32.totalorder %s23, 0
      %p107 = por %p105, %p106
      %p108 = scmp.ne.s32.totalorder %s96, %s97
      %p109 = scmp.eq.s32.totalorder %s24, 1
      %p110 = por %p108, %p109
      %p112 = scmp.ne.s32.totalorder %s97, %s111
      %p113 = scmp.eq.s32.totalorder %s24, 0
      %p114 = por %p112, %p113
      %s116 = sadd.s32 %s115, 1
      %p119 = scmp.eq.s32.totalorder %s18, 1
      %p120 = scmp.ne.s32.totalorder %s115, %s117
      %p121 = scmp.eq.s32.totalorder %s18, 0
      %p122 = por %p120, %p121
      %p123 = scmp.ne.s32.totalorder %s115, %s117
      %p124 = scmp.eq.s32.totalorder %s23, 1
      %p125 = por %p123, %p124
      %p126 = scmp.ne.s32.totalorder %s117, %s118
      %p127 = scmp.eq.s32.totalorder %s23, 0
      %p128 = por %p126, %p127
      %p129 = scmp.ne.s32.totalorder %s117, %s118
      %p130 = scmp.eq.s32.totalorder %s24, 1
      %p131 = por %p129, %p130
      %p133 = scmp.ne.s32.totalorder %s118, %s132
      %p134 = scmp.eq.s32.totalorder %s24, 0
      %p135 = por %p133, %p134
      %s137 = sadd.s32 %s136, 1
      %p140 = scmp.eq.s32.totalorder %s18, 1
      %p141 = scmp.ne.s32.totalorder %s136, %s138
      %p142 = scmp.eq.s32.totalorder %s18, 0
      %p143 = por %p141, %p142
      %p144 = scmp.ne.s32.totalorder %s136, %s138
      %p145 = scmp.eq.s32.totalorder %s23, 1
      %p146 = por %p144, %p145
      %p147 = scmp.ne.s32.totalorder %s138, %s139
      %p148 = scmp.eq.s32.totalorder %s23, 0
      %p149 = por %p147, %p148
      %p150 = scmp.ne.s32.totalorder %s138, %s139
      %p151 = scmp.eq.s32.totalorder %s24, 1
      %p152 = por %p150, %p151
      %p154 = scmp.ne.s32.totalorder %s139, %s153
      %p155 = scmp.eq.s32.totalorder %s24, 0
      %p156 = por %p154, %p155
      %s158 = sadd.s32 %s157, 1
      %p161 = scmp.eq.s32.totalorder %s18, 1
      %p162 = scmp.ne.s32.totalorder %s157, %s159
      %p163 = scmp.eq.s32.totalorder %s18, 0
      %p164 = por %p162, %p163
      %p165 = scmp.ne.s32.totalorder %s157, %s159
      %p166 = scmp.eq.s32.totalorder %s23, 1
      %p167 = por %p165, %p166
      %p168 = scmp.ne.s32.totalorder %s159, %s160
      %p169 = scmp.eq.s32.totalorder %s23, 0
      %p170 = por %p168, %p169
      %p171 = scmp.ne.s32.totalorder %s159, %s160
      %p172 = scmp.eq.s32.totalorder %s24, 1
      %p173 = por %p171, %p172
      %p175 = scmp.ne.s32.totalorder %s160, %s174
      %p176 = scmp.eq.s32.totalorder %s24, 0
      %p177 = por %p175, %p176
      %s178 = ssub.s32 %s18, %s25
      %p179 = scmp.eq.s32.totalorder %s178, 0
      %s181 = sadd.s32 %s180, 1
      %s182 = scalar_select %p179, %s180, %s181
      %p185 = pneg %p179
      %p186 = scmp.eq.s32.totalorder %s18, 1
      %p187 = por %p185, %p186
      %p188 = scmp.ne.s32.totalorder %s180, %s183
      %p189 = scmp.eq.s32.totalorder %s18, 0
      %p190 = por %p188, %p189
      %p191 = scmp.ne.s32.totalorder %s180, %s183
      %p192 = scmp.eq.s32.totalorder %s23, 1
      %p193 = por %p191, %p192
      %p194 = scmp.ne.s32.totalorder %s183, %s184
      %p195 = scmp.eq.s32.totalorder %s23, 0
      %p196 = por %p194, %p195
      %p197 = scmp.ne.s32.totalorder %s183, %s184
      %p198 = scmp.eq.s32.totalorder %s24, 1
      %p199 = por %p197, %p198
      %p201 = scmp.ne.s32.totalorder %s184, %s200
      %p202 = scmp.eq.s32.totalorder %s24, 0
      %p203 = por %p201, %p202
      %p204 = scmp.le.s32.totalorder 1, %s18
      %p205 = scmp.lt.s32.totalorder %s18, 3
      %p206 = pnand %p204, %p205
      %p207 = pneg %p206
      // Predicated region
      $region9: #{siren_forward.2} parent=5 // pred_check
        _
      $region10: #{siren_forward.2} parent=5 // pred_check_branch
        %209 = sbr.rel (%p206) target = $region12
      $region11: #{siren_forward.2} parent=5 // pred_region
        %s210 = ssub.s32 %s18, 1
        // Predicated region
        $region13: #{siren_forward.2} parent=11 // pred_check
          %p211 = pneg %p65
        $region14: #{siren_forward.2} parent=11 // pred_check_branch
          %213 = sbr.rel (%p211) target = $region16
        $region15: #{siren_forward.2} parent=11 // pred_region
          _
        $region16: #{siren_forward.2} parent=11 // pred_fallthru
          _
        // Predicated region
        $region17: #{siren_forward.2} parent=11 // pred_check
          %p214 = pneg %p86
        $region18: #{siren_forward.2} parent=11 // pred_check_branch
          %216 = sbr.rel (%p214) target = $region20
        $region19: #{siren_forward.2} parent=11 // pred_region
          _
        $region20: #{siren_forward.2} parent=11 // pred_fallthru
          _
        // Predicated region
        $region21: #{siren_forward.2} parent=11 // pred_check
          %p217 = pneg %p107
        $region22: #{siren_forward.2} parent=11 // pred_check_branch
          %219 = sbr.rel (%p217) target = $region24
        $region23: #{siren_forward.2} parent=11 // pred_region
          _
        $region24: #{siren_forward.2} parent=11 // pred_fallthru
          _
        // Predicated region
        $region25: #{siren_forward.2} parent=11 // pred_check
          %p220 = pneg %p128
        $region26: #{siren_forward.2} parent=11 // pred_check_branch
          %222 = sbr.rel (%p220) target = $region28
        $region27: #{siren_forward.2} parent=11 // pred_region
          _
        $region28: #{siren_forward.2} parent=11 // pred_fallthru
          _
        // Predicated region
        $region29: #{siren_forward.2} parent=11 // pred_check
          %p223 = pneg %p149
        $region30: #{siren_forward.2} parent=11 // pred_check_branch
          %225 = sbr.rel (%p223) target = $region32
        $region31: #{siren_forward.2} parent=11 // pred_region
          _
        $region32: #{siren_forward.2} parent=11 // pred_fallthru
          _
        // Predicated region
        $region33: #{siren_forward.2} parent=11 // pred_check
          %p226 = pneg %p170
        $region34: #{siren_forward.2} parent=11 // pred_check_branch
          %228 = sbr.rel (%p226) target = $region36
        $region35: #{siren_forward.2} parent=11 // pred_region
          _
        $region36: #{siren_forward.2} parent=11 // pred_fallthru
          _
      $region12: #{siren_forward.2} parent=5 // pred_fallthru
        _
      %p229 = scmp.lt.s32.totalorder %s18, 2
      // Predicated region
      $region37: #{siren_forward.2} parent=5 // pred_check
        %p230 = pneg %p229
      $region38: #{siren_forward.2} parent=5 // pred_check_branch
        %232 = sbr.rel (%p230) target = $region40
      $region39: #{siren_forward.2} parent=5 // pred_region
        // Predicated region
        $region41: #{siren_forward.2} parent=39 // pred_check
          %p233 = pneg %p38
        $region42: #{siren_forward.2} parent=39 // pred_check_branch
          %235 = sbr.rel (%p233) target = $region44
        $region43: #{siren_forward.2} parent=39 // pred_region
          %s236 = smul.u32 2, %s18
          %p237 = scmp.lt.s32.totalorder %s236, 3
          %s238 = scalar_select %p237, %s236, 3
          %s239 = smul.addr %s238, 2
          %s240 = scalar_lea.vmem %s6, %s239
          %s241 = smul.u32 2, %s18
        $region44: #{siren_forward.2} parent=39 // pred_fallthru
          _
      $region40: #{siren_forward.2} parent=5 // pred_fallthru
        _
      %p242 = scmp.le.s32.totalorder 1, %s18
      %p243 = scmp.lt.s32.totalorder %s18, 3
      %p244 = pnand %p242, %p243
      %p245 = pneg %p244
      // Predicated region
      $region45: #{siren_forward.2} parent=5 // pred_check
        _
      $region46: #{siren_forward.2} parent=5 // pred_check_branch
        %247 = sbr.rel (%p244) target = $region48
      $region47: #{siren_forward.2} parent=5 // pred_region
        #allocation5 [shape = 'u8[2048]{0}', space=vmem, size = 0x800, dematerialized = true, scoped, tag = 'FusionAdapter Buffer %fusion.1 = f32[2,512]{1,0:T(2,128)} fusion(%param_6.1), kind=kLoop, calls=%fused_computation.5.clone, metadata={op_name="jit(siren_forward)/transpose" stack_frame_id=13}']
        %s248 = ssub.s32 %s18, 1
        %s249 = smul.u32 2, %s23
        %p250 = scmp.lt.s32.totalorder %s249, 3
        %s251 = scalar_select %p250, %s249, 3
        %s252 = smul.addr %s251, 2
        %s253 = scalar_lea.vmem %s6, %s252
        %p254 = pneg %p44
        %p255 = pneg %p41
        %p256 = pneg %p65
        %p257 = pneg %p62
        %p258 = pneg %p86
        %p259 = pneg %p83
        %p260 = pneg %p107
        %p261 = pneg %p104
        %p262 = pneg %p128
        %p263 = pneg %p125
        %p264 = pneg %p149
        %p265 = pneg %p146
        %p266 = pneg %p170
        %p267 = pneg %p167
        %p268 = pneg %p196
        %p269 = pneg %p193
        %s270 = sand.u32 %s183, 1
        %s271 = scalar_lea.sflag [#allocation4], %s270
        %s272 = sand.u32 %s183, 1
        %s273 = smul.addr %s272, 2
        %s274 = scalar_lea.vmem [#allocation3], %s273
        %s275 = smul.u32 2, %s23
        %p276 = scmp.lt.s32.totalorder %s275, 3
        %s277 = scalar_select %p276, %s275, 3
        %s278 = smul.addr %s277, 2
        %s279 = scalar_lea.vmem %s6, %s278
        %s280 = smul.u32 2, %s23
        %s281 = smul.u32 2, %s23
        %v282 = vld [vmem:[%s279] sm:$0x3]
        %284 = vst [vmem:[#allocation5] sm:$0x3] %v282
        %s285 = scalar_lea.vmem %s279, 2
        %v286 = vld [vmem:[%s285] sm:$0x3]
        %s287 = scalar_lea.vmem [#allocation5], 2
        %289 = vst [vmem:[%s287] sm:$0x3] %v286
        %v290 = vld [vmem:[%s0] sm:$0xff]
        %v291 = vld [vmem:[%s0 + $0x8] sm:$0xff]
        %v292 = vld [vmem:[%s0 + $0x10] sm:$0xff]
        %v293 = vld [vmem:[%s0 + $0x18] sm:$0xff]
        %v294 = vld [vmem:[#allocation5] ss:$2 sm:$0x3]
        %296 = vset.pattern.permute.xlu0 0
        %297 = vperm.xlu0 %296, %v290
        %v298 = vpop.permute.xlu0 %297
        %301 = vset.pattern.permute.xlu0 0
        %302 = vperm.xlu0 %301, %v291
        %v303 = vpop.permute.xlu0 %302
        %306 = vset.pattern.permute.xlu0 0
        %307 = vperm.xlu0 %306, %v292
        %v308 = vpop.permute.xlu0 %307
        %311 = vset.pattern.permute.xlu0 0
        %312 = vperm.xlu0 %311, %v293
        %v313 = vpop.permute.xlu0 %312
        %v316 = vlaneseq
        %v317 = vshrl.u32 %v316, 7
        %v318 = vsub.s32 0, %v317
        %v319 = vrot.slane %v294, %v318
        %v320 = vlaneseq
        %v321 = vshrl.u32 %v320, 7
        %v322 = vsub.s32 1, %v321
        %v323 = vrot.slane %v294, %v322
        %v326 = vmul.f32 %v298, %v319
        %v327 = vmul.f32 %v298, %v323
        %v328 = vmul.f32 %v303, %v319
        %v329 = vmul.f32 %v303, %v323
        %v330 = vmul.f32 %v308, %v319
        %v331 = vmul.f32 %v308, %v323
        %v332 = vmul.f32 %v313, %v319
        %v333 = vmul.f32 %v313, %v323
        %s334 = scalar_lea.vmem [#allocation5], 1
        %v335 = vld [vmem:[%s334] ss:$2 sm:$0x3]
        %336 = vset.pattern.permute.xlu0 1
        %337 = vperm.xlu0 %336, %v290
        %v338 = vpop.permute.xlu0 %337
        %340 = vset.pattern.permute.xlu0 1
        %341 = vperm.xlu0 %340, %v291
        %v342 = vpop.permute.xlu0 %341
        %344 = vset.pattern.permute.xlu0 1
        %345 = vperm.xlu0 %344, %v292
        %v346 = vpop.permute.xlu0 %345
        %348 = vset.pattern.permute.xlu0 1
        %349 = vperm.xlu0 %348, %v293
        %v350 = vpop.permute.xlu0 %349
        %v353 = vlaneseq
        %v354 = vshrl.u32 %v353, 7
        %v355 = vsub.s32 0, %v354
        %v356 = vrot.slane %v335, %v355
        %v357 = vlaneseq
        %v358 = vshrl.u32 %v357, 7
        %v359 = vsub.s32 1, %v358
        %v360 = vrot.slane %v335, %v359
        %v363 = vmul.f32 %v338, %v356
        %v364 = vmul.f32 %v338, %v360
        %v365 = vmul.f32 %v342, %v356
        %v366 = vmul.f32 %v342, %v360
        %v367 = vmul.f32 %v346, %v356
        %v368 = vmul.f32 %v346, %v360
        %v369 = vmul.f32 %v350, %v356
        %v370 = vmul.f32 %v350, %v360
        %v371 = vadd.f32 %v326, %v363
        %v372 = vadd.f32 %v327, %v364
        %v373 = vadd.f32 %v328, %v365
        %v374 = vadd.f32 %v329, %v366
        %v375 = vadd.f32 %v330, %v367
        %v376 = vadd.f32 %v331, %v368
        %v377 = vadd.f32 %v332, %v369
        %v378 = vadd.f32 %v333, %v370
        %v379 = vld [vmem:[%s1] sm:$0xff]
        %v380 = vld [vmem:[%s1 + $0x8] sm:$0xff]
        %v381 = vld [vmem:[%s1 + $0x10] sm:$0xff]
        %v382 = vld [vmem:[%s1 + $0x18] sm:$0xff]
        %384 = vset.pattern.permute.xlu0 0
        %385 = vperm.xlu0 %384, %v379
        %v386 = vpop.permute.xlu0 %385
        %389 = vset.pattern.permute.xlu0 0
        %390 = vperm.xlu0 %389, %v380
        %v391 = vpop.permute.xlu0 %390
        %394 = vset.pattern.permute.xlu0 0
        %395 = vperm.xlu0 %394, %v381
        %v396 = vpop.permute.xlu0 %395
        %399 = vset.pattern.permute.xlu0 0
        %400 = vperm.xlu0 %399, %v382
        %v401 = vpop.permute.xlu0 %400
        %v403 = vadd.f32 %v371, %v386
        %v404 = vadd.f32 %v372, %v386
        %v405 = vadd.f32 %v373, %v391
        %v406 = vadd.f32 %v374, %v391
        %v407 = vadd.f32 %v375, %v396
        %v408 = vadd.f32 %v376, %v396
        %v409 = vadd.f32 %v377, %v401
        %v410 = vadd.f32 %v378, %v401
        %v411 = vand.u32 2147483647, %v403
        %vm412 = vcmp.le.f32.partialorder %v411, 0.7853982
        %vm413 = vcmp.lt.s32.totalorder %v403, 0
        %v414 = vand.u32 %v403, 2139095040
        %v415 = vshrl.u32 %v414, 23
        %v416 = vsub.s32 %v415, 127
        %v417 = vand.u32 2147483647, %v403
        %v418 = vand.u32 %v417, 8388607
        %v419 = vor.u32 %v418, 8388608
        %v420 = vsub.s32 0, %v419
        %v421 = vadd.s32 %v416, 1
        %vm422 = vcmp.gt.s32.totalorder %v421, 0
        %v423 = vsel %vm422, %v421, 0
        %v424 = vshrl.u32 %v423, 5
        %v425 = vand.u32 %v423, 31
        %v426 = vsub.s32 32, %v425
        %v427 = vshrl.u32 683565275, %v426
        %v428 = vshll.u32 683565275, %v425
        %v429 = vshrl.u32 2475754826, %v426
        %v430 = vor.u32 %v428, %v429
        %v431 = vshll.u32 2475754826, %v425
        %v432 = vshrl.u32 2131351028, %v426
        %v433 = vor.u32 %v431, %v432
        %v434 = vshll.u32 2131351028, %v425
        %v435 = vshrl.u32 2102212464, %v426
        %v436 = vor.u32 %v434, %v435
        %v437 = vshll.u32 2102212464, %v425
        %v438 = vshrl.u32 920167782, %v426
        %v439 = vor.u32 %v437, %v438
        %v440 = vshll.u32 920167782, %v425
        %v441 = vshrl.u32 1326507024, %v426
        %v442 = vor.u32 %v440, %v441
        %vm443 = vcmp.lt.s32.totalorder %v424, 1
        %vm444 = vcmp.lt.s32.totalorder %v424, 2
        %vm445 = vcmp.lt.s32.totalorder %v424, 3
        %vm446 = vcmp.lt.s32.totalorder %v424, 4
        %v447 = vsel %vm443, %v427, %v430
        %v448 = vsel %vm446, %v436, 2102212464
        %v449 = vsel %vm445, %v433, %v448
        %v450 = vsel %vm444, %v447, %v449
        %v451 = vsel %vm443, %v430, %v433
        %v452 = vsel %vm446, %v439, 920167782
        %v453 = vsel %vm445, %v436, %v452
        %v454 = vsel %vm444, %v451, %v453
        %v455 = vsel %vm443, %v433, %v436
        %v456 = vsel %vm446, %v442, 1326507024
        %v457 = vsel %vm445, %v439, %v456
        %v458 = vsel %vm444, %v455, %v457
        %v459 = vshll.u32 %v419, 8
        %v460 = vmul.u32.u64.compose %v459, %v458
        %v461 = vextract.low.u32 %v460
        %v462 = vextract.high.u32 %v460
        %v463 = vmul.u32.u64.compose %v459, %v454
        %v464 = vextract.low.u32 %v463
        %v465 = vextract.high.u32 %v463
        %v466 = vmul.u32 %v459, %v450
        %v467 = vadd.s32 %v462, %v464
        %vm468 = vc.u32 %v462, %v464
        %v469 = vadd.s32 %v465, 1
        %v470 = vsel %vm468, %v469, %v465
        %v471 = vadd.s32 %v466, %v470
        %v472 = vadd.s32 %v471, 536870912
        %v473 = vshrl.u32 %v472, 30
        %v474 = vshll.u32 %v473, 30
        %v475 = vsub.s32 %v471, %v474
        %vm476 = vcmp.lt.s32.totalorder %v475, 0
        %v477 = vsub.s32 0, %v475
        %v478 = vsel %vm476, %v477, %v475
        %v479 = vclz %v478
        %v480 = vsub.s32 %v479, 2
        %vm481 = vcmp.gt.s32.totalorder 0, %v480
        %v482 = vsel %vm481, 0, %v480
        %v483 = vsub.s32 32, %v482
        %v484 = vshll.u32 %v475, %v482
        %v485 = vshrl.u32 %v467, %v483
        %v486 = vor.u32 %v484, %v485
        %v487 = vsub.s32 4294967266, %v482
        %v488 = vadd.s32 %v487, 127
        %v489 = vshll.u32 %v488, 23
        %v490 = vor.u32 4788187, %v489
        %v491 = vand.u32 2147483647, %v490
        %v493 = vcvt.s32.f32 %v486
        %v494 = vmul.f32 %v493, %v491
        %v495 = vxor.u32 %v494, 2147483648
        %v496 = vsel %vm413, %v495, %v494
        %v497 = vsub.s32 4, %v473
        %v498 = vsel %vm413, %v497, %v473
        %v499 = vsel %vm412, %v403, %v496
        %v500 = vsel %vm412, 0, %v498
        %v501 = vcosq.f32.pop %v499
        %v502 = vsinq.f32.pop %v499
        %vm503 = vweird.f32 %v403
        %v504 = vadd.s32 %v500, 3
        %v505 = vand.u32 %v504, 3
        %vm506 = vcmp.lt.s32.totalorder %v505, 2
        %vm507 = vcmp.eq.s32.totalorder %v505, 0
        %v508 = vxor.u32 %v502, 2147483648
        %v509 = vsel %vm507, %v501, %v508
        %vm510 = vcmp.eq.s32.totalorder %v505, 2
        %v511 = vxor.u32 %v501, 2147483648
        %v512 = vsel %vm510, %v511, %v502
        %v513 = vsel %vm506, %v509, %v512
        %v514 = vsel %vm503, nan, %v513
        %v515 = vand.u32 2147483647, %v404
        %vm516 = vcmp.le.f32.partialorder %v515, 0.7853982
        %vm517 = vcmp.lt.s32.totalorder %v404, 0
        %v518 = vand.u32 %v404, 2139095040
        %v519 = vshrl.u32 %v518, 23
        %v520 = vsub.s32 %v519, 127
        %v521 = vand.u32 2147483647, %v404
        %v522 = vand.u32 %v521, 8388607
        %v523 = vor.u32 %v522, 8388608
        %v524 = vsub.s32 0, %v523
        %v525 = vadd.s32 %v520, 1
        %vm526 = vcmp.gt.s32.totalorder %v525, 0
        %v527 = vsel %vm526, %v525, 0
        %v528 = vshrl.u32 %v527, 5
        %v529 = vand.u32 %v527, 31
        %v530 = vsub.s32 32, %v529
        %v531 = vshrl.u32 683565275, %v530
        %v532 = vshll.u32 683565275, %v529
        %v533 = vshrl.u32 2475754826, %v530
        %v534 = vor.u32 %v532, %v533
        %v535 = vshll.u32 2475754826, %v529
        %v536 = vshrl.u32 2131351028, %v530
        %v537 = vor.u32 %v535, %v536
        %v538 = vshll.u32 2131351028, %v529
        %v539 = vshrl.u32 2102212464, %v530
        %v540 = vor.u32 %v538, %v539
        %v541 = vshll.u32 2102212464, %v529
        %v542 = vshrl.u32 920167782, %v530
        %v543 = vor.u32 %v541, %v542
        %v544 = vshll.u32 920167782, %v529
        %v545 = vshrl.u32 1326507024, %v530
        %v546 = vor.u32 %v544, %v545
        %vm547 = vcmp.lt.s32.totalorder %v528, 1
        %vm548 = vcmp.lt.s32.totalorder %v528, 2
        %vm549 = vcmp.lt.s32.totalorder %v528, 3
        %vm550 = vcmp.lt.s32.totalorder %v528, 4
        %v551 = vsel %vm547, %v531, %v534
        %v552 = vsel %vm550, %v540, 2102212464
        %v553 = vsel %vm549, %v537, %v552
        %v554 = vsel %vm548, %v551, %v553
        %v555 = vsel %vm547, %v534, %v537
        %v556 = vsel %vm550, %v543, 920167782
        %v557 = vsel %vm549, %v540, %v556
        %v558 = vsel %vm548, %v555, %v557
        %v559 = vsel %vm547, %v537, %v540
        %v560 = vsel %vm550, %v546, 1326507024
        %v561 = vsel %vm549, %v543, %v560
        %v562 = vsel %vm548, %v559, %v561
        %v563 = vshll.u32 %v523, 8
        %v564 = vmul.u32.u64.compose %v563, %v562
        %v565 = vextract.low.u32 %v564
        %v566 = vextract.high.u32 %v564
        %v567 = vmul.u32.u64.compose %v563, %v558
        %v568 = vextract.low.u32 %v567
        %v569 = vextract.high.u32 %v567
        %v570 = vmul.u32 %v563, %v554
        %v571 = vadd.s32 %v566, %v568
        %vm572 = vc.u32 %v566, %v568
        %v573 = vadd.s32 %v569, 1
        %v574 = vsel %vm572, %v573, %v569
        %v575 = vadd.s32 %v570, %v574
        %v576 = vadd.s32 %v575, 536870912
        %v577 = vshrl.u32 %v576, 30
        %v578 = vshll.u32 %v577, 30
        %v579 = vsub.s32 %v575, %v578
        %vm580 = vcmp.lt.s32.totalorder %v579, 0
        %v581 = vsub.s32 0, %v579
        %v582 = vsel %vm580, %v581, %v579
        %v583 = vclz %v582
        %v584 = vsub.s32 %v583, 2
        %vm585 = vcmp.gt.s32.totalorder 0, %v584
        %v586 = vsel %vm585, 0, %v584
        %v587 = vsub.s32 32, %v586
        %v588 = vshll.u32 %v579, %v586
        %v589 = vshrl.u32 %v571, %v587
        %v590 = vor.u32 %v588, %v589
        %v591 = vsub.s32 4294967266, %v586
        %v592 = vadd.s32 %v591, 127
        %v593 = vshll.u32 %v592, 23
        %v594 = vor.u32 4788187, %v593
        %v595 = vand.u32 2147483647, %v594
        %v597 = vcvt.s32.f32 %v590
        %v598 = vmul.f32 %v597, %v595
        %v599 = vxor.u32 %v598, 2147483648
        %v600 = vsel %vm517, %v599, %v598
        %v601 = vsub.s32 4, %v577
        %v602 = vsel %vm517, %v601, %v577
        %v603 = vsel %vm516, %v404, %v600
        %v604 = vsel %vm516, 0, %v602
        %v605 = vcosq.f32.pop %v603
        %v606 = vsinq.f32.pop %v603
        %vm607 = vweird.f32 %v404
        %v608 = vadd.s32 %v604, 3
        %v609 = vand.u32 %v608, 3
        %vm610 = vcmp.lt.s32.totalorder %v609, 2
        %vm611 = vcmp.eq.s32.totalorder %v609, 0
        %v612 = vxor.u32 %v606, 2147483648
        %v613 = vsel %vm611, %v605, %v612
        %vm614 = vcmp.eq.s32.totalorder %v609, 2
        %v615 = vxor.u32 %v605, 2147483648
        %v616 = vsel %vm614, %v615, %v606
        %v617 = vsel %vm610, %v613, %v616
        %v618 = vsel %vm607, nan, %v617
        %v619 = vand.u32 2147483647, %v405
        %vm620 = vcmp.le.f32.partialorder %v619, 0.7853982
        %vm621 = vcmp.lt.s32.totalorder %v405, 0
        %v622 = vand.u32 %v405, 2139095040
        %v623 = vshrl.u32 %v622, 23
        %v624 = vsub.s32 %v623, 127
        %v625 = vand.u32 2147483647, %v405
        %v626 = vand.u32 %v625, 8388607
        %v627 = vor.u32 %v626, 8388608
        %v628 = vsub.s32 0, %v627
        %v629 = vadd.s32 %v624, 1
        %vm630 = vcmp.gt.s32.totalorder %v629, 0
        %v631 = vsel %vm630, %v629, 0
        %v632 = vshrl.u32 %v631, 5
        %v633 = vand.u32 %v631, 31
        %v634 = vsub.s32 32, %v633
        %v635 = vshrl.u32 683565275, %v634
        %v636 = vshll.u32 683565275, %v633
        %v637 = vshrl.u32 2475754826, %v634
        %v638 = vor.u32 %v636, %v637
        %v639 = vshll.u32 2475754826, %v633
        %v640 = vshrl.u32 2131351028, %v634
        %v641 = vor.u32 %v639, %v640
        %v642 = vshll.u32 2131351028, %v633
        %v643 = vshrl.u32 2102212464, %v634
        %v644 = vor.u32 %v642, %v643
        %v645 = vshll.u32 2102212464, %v633
        %v646 = vshrl.u32 920167782, %v634
        %v647 = vor.u32 %v645, %v646
        %v648 = vshll.u32 920167782, %v633
        %v649 = vshrl.u32 1326507024, %v634
        %v650 = vor.u32 %v648, %v649
        %vm651 = vcmp.lt.s32.totalorder %v632, 1
        %vm652 = vcmp.lt.s32.totalorder %v632, 2
        %vm653 = vcmp.lt.s32.totalorder %v632, 3
        %vm654 = vcmp.lt.s32.totalorder %v632, 4
        %v655 = vsel %vm651, %v635, %v638
        %v656 = vsel %vm654, %v644, 2102212464
        %v657 = vsel %vm653, %v641, %v656
        %v658 = vsel %vm652, %v655, %v657
        %v659 = vsel %vm651, %v638, %v641
        %v660 = vsel %vm654, %v647, 920167782
        %v661 = vsel %vm653, %v644, %v660
        %v662 = vsel %vm652, %v659, %v661
        %v663 = vsel %vm651, %v641, %v644
        %v664 = vsel %vm654, %v650, 1326507024
        %v665 = vsel %vm653, %v647, %v664
        %v666 = vsel %vm652, %v663, %v665
        %v667 = vshll.u32 %v627, 8
        %v668 = vmul.u32.u64.compose %v667, %v666
        %v669 = vextract.low.u32 %v668
        %v670 = vextract.high.u32 %v668
        %v671 = vmul.u32.u64.compose %v667, %v662
        %v672 = vextract.low.u32 %v671
        %v673 = vextract.high.u32 %v671
        %v674 = vmul.u32 %v667, %v658
        %v675 = vadd.s32 %v670, %v672
        %vm676 = vc.u32 %v670, %v672
        %v677 = vadd.s32 %v673, 1
        %v678 = vsel %vm676, %v677, %v673
        %v679 = vadd.s32 %v674, %v678
        %v680 = vadd.s32 %v679, 536870912
        %v681 = vshrl.u32 %v680, 30
        %v682 = vshll.u32 %v681, 30
        %v683 = vsub.s32 %v679, %v682
        %vm684 = vcmp.lt.s32.totalorder %v683, 0
        %v685 = vsub.s32 0, %v683
        %v686 = vsel %vm684, %v685, %v683
        %v687 = vclz %v686
        %v688 = vsub.s32 %v687, 2
        %vm689 = vcmp.gt.s32.totalorder 0, %v688
        %v690 = vsel %vm689, 0, %v688
        %v691 = vsub.s32 32, %v690
        %v692 = vshll.u32 %v683, %v690
        %v693 = vshrl.u32 %v675, %v691
        %v694 = vor.u32 %v692, %v693
        %v695 = vsub.s32 4294967266, %v690
        %v696 = vadd.s32 %v695, 127
        %v697 = vshll.u32 %v696, 23
        %v698 = vor.u32 4788187, %v697
        %v699 = vand.u32 2147483647, %v698
        %v701 = vcvt.s32.f32 %v694
        %v702 = vmul.f32 %v701, %v699
        %v703 = vxor.u32 %v702, 2147483648
        %v704 = vsel %vm621, %v703, %v702
        %v705 = vsub.s32 4, %v681
        %v706 = vsel %vm621, %v705, %v681
        %v707 = vsel %vm620, %v405, %v704
        %v708 = vsel %vm620, 0, %v706
        %v709 = vcosq.f32.pop %v707
        %v710 = vsinq.f32.pop %v707
        %vm711 = vweird.f32 %v405
        %v712 = vadd.s32 %v708, 3
        %v713 = vand.u32 %v712, 3
        %vm714 = vcmp.lt.s32.totalorder %v713, 2
        %vm715 = vcmp.eq.s32.totalorder %v713, 0
        %v716 = vxor.u32 %v710, 2147483648
        %v717 = vsel %vm715, %v709, %v716
        %vm718 = vcmp.eq.s32.totalorder %v713, 2
        %v719 = vxor.u32 %v709, 2147483648
        %v720 = vsel %vm718, %v719, %v710
        %v721 = vsel %vm714, %v717, %v720
        %v722 = vsel %vm711, nan, %v721
        %v723 = vand.u32 2147483647, %v406
        %vm724 = vcmp.le.f32.partialorder %v723, 0.7853982
        %vm725 = vcmp.lt.s32.totalorder %v406, 0
        %v726 = vand.u32 %v406, 2139095040
        %v727 = vshrl.u32 %v726, 23
        %v728 = vsub.s32 %v727, 127
        %v729 = vand.u32 2147483647, %v406
        %v730 = vand.u32 %v729, 8388607
        %v731 = vor.u32 %v730, 8388608
        %v732 = vsub.s32 0, %v731
        %v733 = vadd.s32 %v728, 1
        %vm734 = vcmp.gt.s32.totalorder %v733, 0
        %v735 = vsel %vm734, %v733, 0
        %v736 = vshrl.u32 %v735, 5
        %v737 = vand.u32 %v735, 31
        %v738 = vsub.s32 32, %v737
        %v739 = vshrl.u32 683565275, %v738
        %v740 = vshll.u32 683565275, %v737
        %v741 = vshrl.u32 2475754826, %v738
        %v742 = vor.u32 %v740, %v741
        %v743 = vshll.u32 2475754826, %v737
        %v744 = vshrl.u32 2131351028, %v738
        %v745 = vor.u32 %v743, %v744
        %v746 = vshll.u32 2131351028, %v737
        %v747 = vshrl.u32 2102212464, %v738
        %v748 = vor.u32 %v746, %v747
        %v749 = vshll.u32 2102212464, %v737
        %v750 = vshrl.u32 920167782, %v738
        %v751 = vor.u32 %v749, %v750
        %v752 = vshll.u32 920167782, %v737
        %v753 = vshrl.u32 1326507024, %v738
        %v754 = vor.u32 %v752, %v753
        %vm755 = vcmp.lt.s32.totalorder %v736, 1
        %vm756 = vcmp.lt.s32.totalorder %v736, 2
        %vm757 = vcmp.lt.s32.totalorder %v736, 3
        %vm758 = vcmp.lt.s32.totalorder %v736, 4
        %v759 = vsel %vm755, %v739, %v742
        %v760 = vsel %vm758, %v748, 2102212464
        %v761 = vsel %vm757, %v745, %v760
        %v762 = vsel %vm756, %v759, %v761
        %v763 = vsel %vm755, %v742, %v745
        %v764 = vsel %vm758, %v751, 920167782
        %v765 = vsel %vm757, %v748, %v764
        %v766 = vsel %vm756, %v763, %v765
        %v767 = vsel %vm755, %v745, %v748
        %v768 = vsel %vm758, %v754, 1326507024
        %v769 = vsel %vm757, %v751, %v768
        %v770 = vsel %vm756, %v767, %v769
        %v771 = vshll.u32 %v731, 8
        %v772 = vmul.u32.u64.compose %v771, %v770
        %v773 = vextract.low.u32 %v772
        %v774 = vextract.high.u32 %v772
        %v775 = vmul.u32.u64.compose %v771, %v766
        %v776 = vextract.low.u32 %v775
        %v777 = vextract.high.u32 %v775
        %v778 = vmul.u32 %v771, %v762
        %v779 = vadd.s32 %v774, %v776
        %vm780 = vc.u32 %v774, %v776
        %v781 = vadd.s32 %v777, 1
        %v782 = vsel %vm780, %v781, %v777
        %v783 = vadd.s32 %v778, %v782
        %v784 = vadd.s32 %v783, 536870912
        %v785 = vshrl.u32 %v784, 30
        %v786 = vshll.u32 %v785, 30
        %v787 = vsub.s32 %v783, %v786
        %vm788 = vcmp.lt.s32.totalorder %v787, 0
        %v789 = vsub.s32 0, %v787
        %v790 = vsel %vm788, %v789, %v787
        %v791 = vclz %v790
        %v792 = vsub.s32 %v791, 2
        %vm793 = vcmp.gt.s32.totalorder 0, %v792
        %v794 = vsel %vm793, 0, %v792
        %v795 = vsub.s32 32, %v794
        %v796 = vshll.u32 %v787, %v794
        %v797 = vshrl.u32 %v779, %v795
        %v798 = vor.u32 %v796, %v797
        %v799 = vsub.s32 4294967266, %v794
        %v800 = vadd.s32 %v799, 127
        %v801 = vshll.u32 %v800, 23
        %v802 = vor.u32 4788187, %v801
        %v803 = vand.u32 2147483647, %v802
        %v805 = vcvt.s32.f32 %v798
        %v806 = vmul.f32 %v805, %v803
        %v807 = vxor.u32 %v806, 2147483648
        %v808 = vsel %vm725, %v807, %v806
        %v809 = vsub.s32 4, %v785
        %v810 = vsel %vm725, %v809, %v785
        %v811 = vsel %vm724, %v406, %v808
        %v812 = vsel %vm724, 0, %v810
        %v813 = vcosq.f32.pop %v811
        %v814 = vsinq.f32.pop %v811
        %vm815 = vweird.f32 %v406
        %v816 = vadd.s32 %v812, 3
        %v817 = vand.u32 %v816, 3
        %vm818 = vcmp.lt.s32.totalorder %v817, 2
        %vm819 = vcmp.eq.s32.totalorder %v817, 0
        %v820 = vxor.u32 %v814, 2147483648
        %v821 = vsel %vm819, %v813, %v820
        %vm822 = vcmp.eq.s32.totalorder %v817, 2
        %v823 = vxor.u32 %v813, 2147483648
        %v824 = vsel %vm822, %v823, %v814
        %v825 = vsel %vm818, %v821, %v824
        %v826 = vsel %vm815, nan, %v825
        %v827 = vand.u32 2147483647, %v407
        %vm828 = vcmp.le.f32.partialorder %v827, 0.7853982
        %vm829 = vcmp.lt.s32.totalorder %v407, 0
        %v830 = vand.u32 %v407, 2139095040
        %v831 = vshrl.u32 %v830, 23
        %v832 = vsub.s32 %v831, 127
        %v833 = vand.u32 2147483647, %v407
        %v834 = vand.u32 %v833, 8388607
        %v835 = vor.u32 %v834, 8388608
        %v836 = vsub.s32 0, %v835
        %v837 = vadd.s32 %v832, 1
        %vm838 = vcmp.gt.s32.totalorder %v837, 0
        %v839 = vsel %vm838, %v837, 0
        %v840 = vshrl.u32 %v839, 5
        %v841 = vand.u32 %v839, 31
        %v842 = vsub.s32 32, %v841
        %v843 = vshrl.u32 683565275, %v842
        %v844 = vshll.u32 683565275, %v841
        %v845 = vshrl.u32 2475754826, %v842
        %v846 = vor.u32 %v844, %v845
        %v847 = vshll.u32 2475754826, %v841
        %v848 = vshrl.u32 2131351028, %v842
        %v849 = vor.u32 %v847, %v848
        %v850 = vshll.u32 2131351028, %v841
        %v851 = vshrl.u32 2102212464, %v842
        %v852 = vor.u32 %v850, %v851
        %v853 = vshll.u32 2102212464, %v841
        %v854 = vshrl.u32 920167782, %v842
        %v855 = vor.u32 %v853, %v854
        %v856 = vshll.u32 920167782, %v841
        %v857 = vshrl.u32 1326507024, %v842
        %v858 = vor.u32 %v856, %v857
        %vm859 = vcmp.lt.s32.totalorder %v840, 1
        %vm860 = vcmp.lt.s32.totalorder %v840, 2
        %vm861 = vcmp.lt.s32.totalorder %v840, 3
        %vm862 = vcmp.lt.s32.totalorder %v840, 4
        %v863 = vsel %vm859, %v843, %v846
        %v864 = vsel %vm862, %v852, 2102212464
        %v865 = vsel %vm861, %v849, %v864
        %v866 = vsel %vm860, %v863, %v865
        %v867 = vsel %vm859, %v846, %v849
        %v868 = vsel %vm862, %v855, 920167782
        %v869 = vsel %vm861, %v852, %v868
        %v870 = vsel %vm860, %v867, %v869
        %v871 = vsel %vm859, %v849, %v852
        %v872 = vsel %vm862, %v858, 1326507024
        %v873 = vsel %vm861, %v855, %v872
        %v874 = vsel %vm860, %v871, %v873
        %v875 = vshll.u32 %v835, 8
        %v876 = vmul.u32.u64.compose %v875, %v874
        %v877 = vextract.low.u32 %v876
        %v878 = vextract.high.u32 %v876
        %v879 = vmul.u32.u64.compose %v875, %v870
        %v880 = vextract.low.u32 %v879
        %v881 = vextract.high.u32 %v879
        %v882 = vmul.u32 %v875, %v866
        %v883 = vadd.s32 %v878, %v880
        %vm884 = vc.u32 %v878, %v880
        %v885 = vadd.s32 %v881, 1
        %v886 = vsel %vm884, %v885, %v881
        %v887 = vadd.s32 %v882, %v886
        %v888 = vadd.s32 %v887, 536870912
        %v889 = vshrl.u32 %v888, 30
        %v890 = vshll.u32 %v889, 30
        %v891 = vsub.s32 %v887, %v890
        %vm892 = vcmp.lt.s32.totalorder %v891, 0
        %v893 = vsub.s32 0, %v891
        %v894 = vsel %vm892, %v893, %v891
        %v895 = vclz %v894
        %v896 = vsub.s32 %v895, 2
        %vm897 = vcmp.gt.s32.totalorder 0, %v896
        %v898 = vsel %vm897, 0, %v896
        %v899 = vsub.s32 32, %v898
        %v900 = vshll.u32 %v891, %v898
        %v901 = vshrl.u32 %v883, %v899
        %v902 = vor.u32 %v900, %v901
        %v903 = vsub.s32 4294967266, %v898
        %v904 = vadd.s32 %v903, 127
        %v905 = vshll.u32 %v904, 23
        %v906 = vor.u32 4788187, %v905
        %v907 = vand.u32 2147483647, %v906
        %v909 = vcvt.s32.f32 %v902
        %v910 = vmul.f32 %v909, %v907
        %v911 = vxor.u32 %v910, 2147483648
        %v912 = vsel %vm829, %v911, %v910
        %v913 = vsub.s32 4, %v889
        %v914 = vsel %vm829, %v913, %v889
        %v915 = vsel %vm828, %v407, %v912
        %v916 = vsel %vm828, 0, %v914
        %v917 = vcosq.f32.pop %v915
        %v918 = vsinq.f32.pop %v915
        %vm919 = vweird.f32 %v407
        %v920 = vadd.s32 %v916, 3
        %v921 = vand.u32 %v920, 3
        %vm922 = vcmp.lt.s32.totalorder %v921, 2
        %vm923 = vcmp.eq.s32.totalorder %v921, 0
        %v924 = vxor.u32 %v918, 2147483648
        %v925 = vsel %vm923, %v917, %v924
        %vm926 = vcmp.eq.s32.totalorder %v921, 2
        %v927 = vxor.u32 %v917, 2147483648
        %v928 = vsel %vm926, %v927, %v918
        %v929 = vsel %vm922, %v925, %v928
        %v930 = vsel %vm919, nan, %v929
        %v931 = vand.u32 2147483647, %v408
        %vm932 = vcmp.le.f32.partialorder %v931, 0.7853982
        %vm933 = vcmp.lt.s32.totalorder %v408, 0
        %v934 = vand.u32 %v408, 2139095040
        %v935 = vshrl.u32 %v934, 23
        %v936 = vsub.s32 %v935, 127
        %v937 = vand.u32 2147483647, %v408
        %v938 = vand.u32 %v937, 8388607
        %v939 = vor.u32 %v938, 8388608
        %v940 = vsub.s32 0, %v939
        %v941 = vadd.s32 %v936, 1
        %vm942 = vcmp.gt.s32.totalorder %v941, 0
        %v943 = vsel %vm942, %v941, 0
        %v944 = vshrl.u32 %v943, 5
        %v945 = vand.u32 %v943, 31
        %v946 = vsub.s32 32, %v945
        %v947 = vshrl.u32 683565275, %v946
        %v948 = vshll.u32 683565275, %v945
        %v949 = vshrl.u32 2475754826, %v946
        %v950 = vor.u32 %v948, %v949
        %v951 = vshll.u32 2475754826, %v945
        %v952 = vshrl.u32 2131351028, %v946
        %v953 = vor.u32 %v951, %v952
        %v954 = vshll.u32 2131351028, %v945
        %v955 = vshrl.u32 2102212464, %v946
        %v956 = vor.u32 %v954, %v955
        %v957 = vshll.u32 2102212464, %v945
        %v958 = vshrl.u32 920167782, %v946
        %v959 = vor.u32 %v957, %v958
        %v960 = vshll.u32 920167782, %v945
        %v961 = vshrl.u32 1326507024, %v946
        %v962 = vor.u32 %v960, %v961
        %vm963 = vcmp.lt.s32.totalorder %v944, 1
        %vm964 = vcmp.lt.s32.totalorder %v944, 2
        %vm965 = vcmp.lt.s32.totalorder %v944, 3
        %vm966 = vcmp.lt.s32.totalorder %v944, 4
        %v967 = vsel %vm963, %v947, %v950
        %v968 = vsel %vm966, %v956, 2102212464
        %v969 = vsel %vm965, %v953, %v968
        %v970 = vsel %vm964, %v967, %v969
        %v971 = vsel %vm963, %v950, %v953
        %v972 = vsel %vm966, %v959, 920167782
        %v973 = vsel %vm965, %v956, %v972
        %v974 = vsel %vm964, %v971, %v973
        %v975 = vsel %vm963, %v953, %v956
        %v976 = vsel %vm966, %v962, 1326507024
        %v977 = vsel %vm965, %v959, %v976
        %v978 = vsel %vm964, %v975, %v977
        %v979 = vshll.u32 %v939, 8
        %v980 = vmul.u32.u64.compose %v979, %v978
        %v981 = vextract.low.u32 %v980
        %v982 = vextract.high.u32 %v980
        %v983 = vmul.u32.u64.compose %v979, %v974
        %v984 = vextract.low.u32 %v983
        %v985 = vextract.high.u32 %v983
        %v986 = vmul.u32 %v979, %v970
        %v987 = vadd.s32 %v982, %v984
        %vm988 = vc.u32 %v982, %v984
        %v989 = vadd.s32 %v985, 1
        %v990 = vsel %vm988, %v989, %v985
        %v991 = vadd.s32 %v986, %v990
        %v992 = vadd.s32 %v991, 536870912
        %v993 = vshrl.u32 %v992, 30
        %v994 = vshll.u32 %v993, 30
        %v995 = vsub.s32 %v991, %v994
        %vm996 = vcmp.lt.s32.totalorder %v995, 0
        %v997 = vsub.s32 0, %v995
        %v998 = vsel %vm996, %v997, %v995
        %v999 = vclz %v998
        %v1000 = vsub.s32 %v999, 2
        %vm1001 = vcmp.gt.s32.totalorder 0, %v1000
        %v1002 = vsel %vm1001, 0, %v1000
        %v1003 = vsub.s32 32, %v1002
        %v1004 = vshll.u32 %v995, %v1002
        %v1005 = vshrl.u32 %v987, %v1003
        %v1006 = vor.u32 %v1004, %v1005
        %v1007 = vsub.s32 4294967266, %v1002
        %v1008 = vadd.s32 %v1007, 127
        %v1009 = vshll.u32 %v1008, 23
        %v1010 = vor.u32 4788187, %v1009
        %v1011 = vand.u32 2147483647, %v1010
        %v1013 = vcvt.s32.f32 %v1006
        %v1014 = vmul.f32 %v1013, %v1011
        %v1015 = vxor.u32 %v1014, 2147483648
        %v1016 = vsel %vm933, %v1015, %v1014
        %v1017 = vsub.s32 4, %v993
        %v1018 = vsel %vm933, %v1017, %v993
        %v1019 = vsel %vm932, %v408, %v1016
        %v1020 = vsel %vm932, 0, %v1018
        %v1021 = vcosq.f32.pop %v1019
        %v1022 = vsinq.f32.pop %v1019
        %vm1023 = vweird.f32 %v408
        %v1024 = vadd.s32 %v1020, 3
        %v1025 = vand.u32 %v1024, 3
        %vm1026 = vcmp.lt.s32.totalorder %v1025, 2
        %vm1027 = vcmp.eq.s32.totalorder %v1025, 0
        %v1028 = vxor.u32 %v1022, 2147483648
        %v1029 = vsel %vm1027, %v1021, %v1028
        %vm1030 = vcmp.eq.s32.totalorder %v1025, 2
        %v1031 = vxor.u32 %v1021, 2147483648
        %v1032 = vsel %vm1030, %v1031, %v1022
        %v1033 = vsel %vm1026, %v1029, %v1032
        %v1034 = vsel %vm1023, nan, %v1033
        %v1035 = vand.u32 2147483647, %v409
        %vm1036 = vcmp.le.f32.partialorder %v1035, 0.7853982
        %vm1037 = vcmp.lt.s32.totalorder %v409, 0
        %v1038 = vand.u32 %v409, 2139095040
        %v1039 = vshrl.u32 %v1038, 23
        %v1040 = vsub.s32 %v1039, 127
        %v1041 = vand.u32 2147483647, %v409
        %v1042 = vand.u32 %v1041, 8388607
        %v1043 = vor.u32 %v1042, 8388608
        %v1044 = vsub.s32 0, %v1043
        %v1045 = vadd.s32 %v1040, 1
        %vm1046 = vcmp.gt.s32.totalorder %v1045, 0
        %v1047 = vsel %vm1046, %v1045, 0
        %v1048 = vshrl.u32 %v1047, 5
        %v1049 = vand.u32 %v1047, 31
        %v1050 = vsub.s32 32, %v1049
        %v1051 = vshrl.u32 683565275, %v1050
        %v1052 = vshll.u32 683565275, %v1049
        %v1053 = vshrl.u32 2475754826, %v1050
        %v1054 = vor.u32 %v1052, %v1053
        %v1055 = vshll.u32 2475754826, %v1049
        %v1056 = vshrl.u32 2131351028, %v1050
        %v1057 = vor.u32 %v1055, %v1056
        %v1058 = vshll.u32 2131351028, %v1049
        %v1059 = vshrl.u32 2102212464, %v1050
        %v1060 = vor.u32 %v1058, %v1059
        %v1061 = vshll.u32 2102212464, %v1049
        %v1062 = vshrl.u32 920167782, %v1050
        %v1063 = vor.u32 %v1061, %v1062
        %v1064 = vshll.u32 920167782, %v1049
        %v1065 = vshrl.u32 1326507024, %v1050
        %v1066 = vor.u32 %v1064, %v1065
        %vm1067 = vcmp.lt.s32.totalorder %v1048, 1
        %vm1068 = vcmp.lt.s32.totalorder %v1048, 2
        %vm1069 = vcmp.lt.s32.totalorder %v1048, 3
        %vm1070 = vcmp.lt.s32.totalorder %v1048, 4
        %v1071 = vsel %vm1067, %v1051, %v1054
        %v1072 = vsel %vm1070, %v1060, 2102212464
        %v1073 = vsel %vm1069, %v1057, %v1072
        %v1074 = vsel %vm1068, %v1071, %v1073
        %v1075 = vsel %vm1067, %v1054, %v1057
        %v1076 = vsel %vm1070, %v1063, 920167782
        %v1077 = vsel %vm1069, %v1060, %v1076
        %v1078 = vsel %vm1068, %v1075, %v1077
        %v1079 = vsel %vm1067, %v1057, %v1060
        %v1080 = vsel %vm1070, %v1066, 1326507024
        %v1081 = vsel %vm1069, %v1063, %v1080
        %v1082 = vsel %vm1068, %v1079, %v1081
        %v1083 = vshll.u32 %v1043, 8
        %v1084 = vmul.u32.u64.compose %v1083, %v1082
        %v1085 = vextract.low.u32 %v1084
        %v1086 = vextract.high.u32 %v1084
        %v1087 = vmul.u32.u64.compose %v1083, %v1078
        %v1088 = vextract.low.u32 %v1087
        %v1089 = vextract.high.u32 %v1087
        %v1090 = vmul.u32 %v1083, %v1074
        %v1091 = vadd.s32 %v1086, %v1088
        %vm1092 = vc.u32 %v1086, %v1088
        %v1093 = vadd.s32 %v1089, 1
        %v1094 = vsel %vm1092, %v1093, %v1089
        %v1095 = vadd.s32 %v1090, %v1094
        %v1096 = vadd.s32 %v1095, 536870912
        %v1097 = vshrl.u32 %v1096, 30
        %v1098 = vshll.u32 %v1097, 30
        %v1099 = vsub.s32 %v1095, %v1098
        %vm1100 = vcmp.lt.s32.totalorder %v1099, 0
        %v1101 = vsub.s32 0, %v1099
        %v1102 = vsel %vm1100, %v1101, %v1099
        %v1103 = vclz %v1102
        %v1104 = vsub.s32 %v1103, 2
        %vm1105 = vcmp.gt.s32.totalorder 0, %v1104
        %v1106 = vsel %vm1105, 0, %v1104
        %v1107 = vsub.s32 32, %v1106
        %v1108 = vshll.u32 %v1099, %v1106
        %v1109 = vshrl.u32 %v1091, %v1107
        %v1110 = vor.u32 %v1108, %v1109
        %v1111 = vsub.s32 4294967266, %v1106
        %v1112 = vadd.s32 %v1111, 127
        %v1113 = vshll.u32 %v1112, 23
        %v1114 = vor.u32 4788187, %v1113
        %v1115 = vand.u32 2147483647, %v1114
        %v1117 = vcvt.s32.f32 %v1110
        %v1118 = vmul.f32 %v1117, %v1115
        %v1119 = vxor.u32 %v1118, 2147483648
        %v1120 = vsel %vm1037, %v1119, %v1118
        %v1121 = vsub.s32 4, %v1097
        %v1122 = vsel %vm1037, %v1121, %v1097
        %v1123 = vsel %vm1036, %v409, %v1120
        %v1124 = vsel %vm1036, 0, %v1122
        %v1125 = vcosq.f32.pop %v1123
        %v1126 = vsinq.f32.pop %v1123
        %vm1127 = vweird.f32 %v409
        %v1128 = vadd.s32 %v1124, 3
        %v1129 = vand.u32 %v1128, 3
        %vm1130 = vcmp.lt.s32.totalorder %v1129, 2
        %vm1131 = vcmp.eq.s32.totalorder %v1129, 0
        %v1132 = vxor.u32 %v1126, 2147483648
        %v1133 = vsel %vm1131, %v1125, %v1132
        %vm1134 = vcmp.eq.s32.totalorder %v1129, 2
        %v1135 = vxor.u32 %v1125, 2147483648
        %v1136 = vsel %vm1134, %v1135, %v1126
        %v1137 = vsel %vm1130, %v1133, %v1136
        %v1138 = vsel %vm1127, nan, %v1137
        %v1139 = vand.u32 2147483647, %v410
        %vm1140 = vcmp.le.f32.partialorder %v1139, 0.7853982
        %vm1141 = vcmp.lt.s32.totalorder %v410, 0
        %v1142 = vand.u32 %v410, 2139095040
        %v1143 = vshrl.u32 %v1142, 23
        %v1144 = vsub.s32 %v1143, 127
        %v1145 = vand.u32 2147483647, %v410
        %v1146 = vand.u32 %v1145, 8388607
        %v1147 = vor.u32 %v1146, 8388608
        %v1148 = vsub.s32 0, %v1147
        %v1149 = vadd.s32 %v1144, 1
        %vm1150 = vcmp.gt.s32.totalorder %v1149, 0
        %v1151 = vsel %vm1150, %v1149, 0
        %v1152 = vshrl.u32 %v1151, 5
        %v1153 = vand.u32 %v1151, 31
        %v1154 = vsub.s32 32, %v1153
        %v1155 = vshrl.u32 683565275, %v1154
        %v1156 = vshll.u32 683565275, %v1153
        %v1157 = vshrl.u32 2475754826, %v1154
        %v1158 = vor.u32 %v1156, %v1157
        %v1159 = vshll.u32 2475754826, %v1153
        %v1160 = vshrl.u32 2131351028, %v1154
        %v1161 = vor.u32 %v1159, %v1160
        %v1162 = vshll.u32 2131351028, %v1153
        %v1163 = vshrl.u32 2102212464, %v1154
        %v1164 = vor.u32 %v1162, %v1163
        %v1165 = vshll.u32 2102212464, %v1153
        %v1166 = vshrl.u32 920167782, %v1154
        %v1167 = vor.u32 %v1165, %v1166
        %v1168 = vshll.u32 920167782, %v1153
        %v1169 = vshrl.u32 1326507024, %v1154
        %v1170 = vor.u32 %v1168, %v1169
        %vm1171 = vcmp.lt.s32.totalorder %v1152, 1
        %vm1172 = vcmp.lt.s32.totalorder %v1152, 2
        %vm1173 = vcmp.lt.s32.totalorder %v1152, 3
        %vm1174 = vcmp.lt.s32.totalorder %v1152, 4
        %v1175 = vsel %vm1171, %v1155, %v1158
        %v1176 = vsel %vm1174, %v1164, 2102212464
        %v1177 = vsel %vm1173, %v1161, %v1176
        %v1178 = vsel %vm1172, %v1175, %v1177
        %v1179 = vsel %vm1171, %v1158, %v1161
        %v1180 = vsel %vm1174, %v1167, 920167782
        %v1181 = vsel %vm1173, %v1164, %v1180
        %v1182 = vsel %vm1172, %v1179, %v1181
        %v1183 = vsel %vm1171, %v1161, %v1164
        %v1184 = vsel %vm1174, %v1170, 1326507024
        %v1185 = vsel %vm1173, %v1167, %v1184
        %v1186 = vsel %vm1172, %v1183, %v1185
        %v1187 = vshll.u32 %v1147, 8
        %v1188 = vmul.u32.u64.compose %v1187, %v1186
        %v1189 = vextract.low.u32 %v1188
        %v1190 = vextract.high.u32 %v1188
        %v1191 = vmul.u32.u64.compose %v1187, %v1182
        %v1192 = vextract.low.u32 %v1191
        %v1193 = vextract.high.u32 %v1191
        %v1194 = vmul.u32 %v1187, %v1178
        %v1195 = vadd.s32 %v1190, %v1192
        %vm1196 = vc.u32 %v1190, %v1192
        %v1197 = vadd.s32 %v1193, 1
        %v1198 = vsel %vm1196, %v1197, %v1193
        %v1199 = vadd.s32 %v1194, %v1198
        %v1200 = vadd.s32 %v1199, 536870912
        %v1201 = vshrl.u32 %v1200, 30
        %v1202 = vshll.u32 %v1201, 30
        %v1203 = vsub.s32 %v1199, %v1202
        %vm1204 = vcmp.lt.s32.totalorder %v1203, 0
        %v1205 = vsub.s32 0, %v1203
        %v1206 = vsel %vm1204, %v1205, %v1203
        %v1207 = vclz %v1206
        %v1208 = vsub.s32 %v1207, 2
        %vm1209 = vcmp.gt.s32.totalorder 0, %v1208
        %v1210 = vsel %vm1209, 0, %v1208
        %v1211 = vsub.s32 32, %v1210
        %v1212 = vshll.u32 %v1203, %v1210
        %v1213 = vshrl.u32 %v1195, %v1211
        %v1214 = vor.u32 %v1212, %v1213
        %v1215 = vsub.s32 4294967266, %v1210
        %v1216 = vadd.s32 %v1215, 127
        %v1217 = vshll.u32 %v1216, 23
        %v1218 = vor.u32 4788187, %v1217
        %v1219 = vand.u32 2147483647, %v1218
        %v1221 = vcvt.s32.f32 %v1214
        %v1222 = vmul.f32 %v1221, %v1219
        %v1223 = vxor.u32 %v1222, 2147483648
        %v1224 = vsel %vm1141, %v1223, %v1222
        %v1225 = vsub.s32 4, %v1201
        %v1226 = vsel %vm1141, %v1225, %v1201
        %v1227 = vsel %vm1140, %v410, %v1224
        %v1228 = vsel %vm1140, 0, %v1226
        %v1229 = vcosq.f32.pop %v1227
        %v1230 = vsinq.f32.pop %v1227
        %vm1231 = vweird.f32 %v410
        %v1232 = vadd.s32 %v1228, 3
        %v1233 = vand.u32 %v1232, 3
        %vm1234 = vcmp.lt.s32.totalorder %v1233, 2
        %vm1235 = vcmp.eq.s32.totalorder %v1233, 0
        %v1236 = vxor.u32 %v1230, 2147483648
        %v1237 = vsel %vm1235, %v1229, %v1236
        %vm1238 = vcmp.eq.s32.totalorder %v1233, 2
        %v1239 = vxor.u32 %v1229, 2147483648
        %v1240 = vsel %vm1238, %v1239, %v1230
        %v1241 = vsel %vm1234, %v1237, %v1240
        %v1242 = vsel %vm1231, nan, %v1241
        %v1243 = vld [vmem:[%s2] sm:$0xff]
        %v1244 = vld [vmem:[%s2 + $0x8] sm:$0xff]
        %v1245 = vld [vmem:[%s2 + $0x10] sm:$0xff]
        %v1246 = vld [vmem:[%s2 + $0x18] sm:$0xff]
        %v1247 = vld [vmem:[%s3] sm:$0xff]
        %v1248 = vld [vmem:[%s3 + $0x8] sm:$0xff]
        %v1249 = vld [vmem:[%s3 + $0x10] sm:$0xff]
        %v1250 = vld [vmem:[%s3 + $0x18] sm:$0xff]
        %1252 = vset.pattern.permute.xlu0 0
        %1253 = vperm.xlu0 %1252, %v1247
        %v1254 = vpop.permute.xlu0 %1253
        %1257 = vset.pattern.permute.xlu0 0
        %1258 = vperm.xlu0 %1257, %v1248
        %v1259 = vpop.permute.xlu0 %1258
        %1262 = vset.pattern.permute.xlu0 0
        %1263 = vperm.xlu0 %1262, %v1249
        %v1264 = vpop.permute.xlu0 %1263
        %1267 = vset.pattern.permute.xlu0 0
        %1268 = vperm.xlu0 %1267, %v1250
        %v1269 = vpop.permute.xlu0 %1268
        %vm1271 = vcmask 261120
        %v1273 = vsel %vm1271, %v1243, 0
        %v1276 = vsel %vm1271, %v1244, 0
        %v1279 = vsel %vm1271, %v1245, 0
        %v1282 = vsel %vm1271, %v1246, 0
        %1284 = vmatprep.subr.mxu0 %v618
        %1285 = vmatpush1.msra.mxu0 %v514
        %1286 = vmatprep.subr.mxu0 %v826
        %1287 = vmatpush1.msra.mxu0 %v722
        %1288 = vmatprep.subr.mxu0 %v1034
        %1289 = vmatpush1.msra.mxu0 %v930
        %1290 = vmatprep.subr.mxu0 %v1242
        %1291 = vmatpush1.msra.mxu0 %v1138
        %1292 = vmatprep.subr.mxu0 0.0
        %1293 = vmatpush1.msra.mxu0 0.0
        %1294 = vmatprep.subr.mxu0 0.0
        %1295 = vmatpush1.msra.mxu0 0.0
        %1296 = vmatprep.subr.mxu0 0.0
        %1297 = vmatpush1.msra.mxu0 0.0
        %1298 = vmatprep.subr.mxu0 0.0
        %1299 = vmatpush1.msra.mxu0 0.0
        %1300 = vmatprep.subr.mxu0 0.0
        %1301 = vmatpush1.msra.mxu0 0.0
        %1302 = vmatprep.subr.mxu0 0.0
        %1303 = vmatpush1.msra.mxu0 0.0
        %1304 = vmatprep.subr.mxu0 0.0
        %1305 = vmatpush1.msra.mxu0 0.0
        %1306 = vmatprep.subr.mxu0 0.0
        %1307 = vmatpush1.msra.mxu0 0.0
        %1308 = vmatprep.subr.mxu0 0.0
        %1309 = vmatpush1.msra.mxu0 0.0
        %1310 = vmatprep.subr.mxu0 0.0
        %1311 = vmatpush1.msra.mxu0 0.0
        %1312 = vmatprep.subr.mxu0 0.0
        %1313 = vmatpush1.msra.mxu0 0.0
        %1314 = vmatprep.subr.mxu0 0.0
        %1315 = vmatpush1.msra.mxu0 0.0
        %1316 = vmatprep.subr.mxu0 0.0
        %1317 = vmatpush1.msra.mxu0 0.0
        %1318 = vmatprep.subr.mxu0 0.0
        %1319 = vmatpush1.msra.mxu0 0.0
        %1320 = vmatprep.subr.mxu0 0.0
        %1321 = vmatpush1.msra.mxu0 0.0
        %1322 = vmatprep.subr.mxu0 0.0
        %1323 = vmatpush1.msra.mxu0 0.0
        %1324 = vmatprep.subr.mxu0 0.0
        %1325 = vmatpush1.msra.mxu0 0.0
        %1326 = vmatprep.subr.mxu0 0.0
        %1327 = vmatpush1.msra.mxu0 0.0
        %1328 = vmatprep.subr.mxu0 0.0
        %1329 = vmatpush1.msra.mxu0 0.0
        %1330 = vmatprep.subr.mxu0 0.0
        %1331 = vmatpush1.msra.mxu0 0.0
        %1332 = vmatprep.subr.mxu0 0.0
        %1333 = vmatpush1.msra.mxu0 0.0
        %1334 = vmatprep.subr.mxu0 0.0
        %1335 = vmatpush1.msra.mxu0 0.0
        %1336 = vmatprep.subr.mxu0 0.0
        %1337 = vmatpush1.msra.mxu0 0.0
        %1338 = vmatprep.subr.mxu0 0.0
        %1339 = vmatpush1.msra.mxu0 0.0
        %1340 = vmatprep.subr.mxu0 0.0
        %1341 = vmatpush1.msra.mxu0 0.0
        %1342 = vmatprep.subr.mxu0 0.0
        %1343 = vmatpush1.msra.mxu0 0.0
        %1344 = vmatprep.subr.mxu0 0.0
        %1345 = vmatpush1.msra.mxu0 0.0
        %1346 = vmatprep.subr.mxu0 0.0
        %1347 = vmatpush1.msra.mxu0 0.0
        %1348 = vmatprep.mubr.f32.mxu0 0.0
        %1349 = vmatmul.mubr.f32.gmra.mrb[0].mxu0 %v1273
        %v1350 = vpop.f32.mrb[0].mxu0
        %v1351 = vadd.f32 %v1254, %v1350
        %v1352 = vpop.f32.mrb[0].mxu0
        %v1353 = vadd.f32 %v1254, %v1352
        %1354 = vmatprep.mubr.f32.mxu0 0.0
        %1355 = vmatmul.mubr.f32.gmra.mrb[0].mxu0 %v1276
        %v1356 = vpop.f32.mrb[0].mxu0
        %v1357 = vadd.f32 %v1259, %v1356
        %v1358 = vpop.f32.mrb[0].mxu0
        %v1359 = vadd.f32 %v1259, %v1358
        %1360 = vmatprep.mubr.f32.mxu0 0.0
        %1361 = vmatmul.mubr.f32.gmra.mrb[0].mxu0 %v1279
        %v1362 = vpop.f32.mrb[0].mxu0
        %v1363 = vadd.f32 %v1264, %v1362
        %v1364 = vpop.f32.mrb[0].mxu0
        %v1365 = vadd.f32 %v1264, %v1364
        %1366 = vmatprep.mubr.f32.mxu0 0.0
        %1367 = vmatmul.mubr.f32.gmra.mrb[0].mxu0 %v1282
        %v1368 = vpop.f32.mrb[0].mxu0
        %v1369 = vadd.f32 %v1269, %v1368
        %v1370 = vpop.f32.mrb[0].mxu0
        %v1371 = vadd.f32 %v1269, %v1370
        %1372 = vdwg.mxu0
        %v1373 = vand.u32 2147483647, %v1351
        %vm1374 = vcmp.le.f32.partialorder %v1373, 0.7853982
        %vm1375 = vcmp.lt.s32.totalorder %v1351, 0
        %v1376 = vand.u32 %v1351, 2139095040
        %v1377 = vshrl.u32 %v1376, 23
        %v1378 = vsub.s32 %v1377, 127
        %v1379 = vand.u32 2147483647, %v1351
        %v1380 = vand.u32 %v1379, 8388607
        %v1381 = vor.u32 %v1380, 8388608
        %v1382 = vsub.s32 0, %v1381
        %v1383 = vadd.s32 %v1378, 1
        %vm1384 = vcmp.gt.s32.totalorder %v1383, 0
        %v1385 = vsel %vm1384, %v1383, 0
        %v1386 = vshrl.u32 %v1385, 5
        %v1387 = vand.u32 %v1385, 31
        %v1388 = vsub.s32 32, %v1387
        %v1389 = vshrl.u32 683565275, %v1388
        %v1390 = vshll.u32 683565275, %v1387
        %v1391 = vshrl.u32 2475754826, %v1388
        %v1392 = vor.u32 %v1390, %v1391
        %v1393 = vshll.u32 2475754826, %v1387
        %v1394 = vshrl.u32 2131351028, %v1388
        %v1395 = vor.u32 %v1393, %v1394
        %v1396 = vshll.u32 2131351028, %v1387
        %v1397 = vshrl.u32 2102212464, %v1388
        %v1398 = vor.u32 %v1396, %v1397
        %v1399 = vshll.u32 2102212464, %v1387
        %v1400 = vshrl.u32 920167782, %v1388
        %v1401 = vor.u32 %v1399, %v1400
        %v1402 = vshll.u32 920167782, %v1387
        %v1403 = vshrl.u32 1326507024, %v1388
        %v1404 = vor.u32 %v1402, %v1403
        %vm1405 = vcmp.lt.s32.totalorder %v1386, 1
        %vm1406 = vcmp.lt.s32.totalorder %v1386, 2
        %vm1407 = vcmp.lt.s32.totalorder %v1386, 3
        %vm1408 = vcmp.lt.s32.totalorder %v1386, 4
        %v1409 = vsel %vm1405, %v1389, %v1392
        %v1410 = vsel %vm1408, %v1398, 2102212464
        %v1411 = vsel %vm1407, %v1395, %v1410
        %v1412 = vsel %vm1406, %v1409, %v1411
        %v1413 = vsel %vm1405, %v1392, %v1395
        %v1414 = vsel %vm1408, %v1401, 920167782
        %v1415 = vsel %vm1407, %v1398, %v1414
        %v1416 = vsel %vm1406, %v1413, %v1415
        %v1417 = vsel %vm1405, %v1395, %v1398
        %v1418 = vsel %vm1408, %v1404, 1326507024
        %v1419 = vsel %vm1407, %v1401, %v1418
        %v1420 = vsel %vm1406, %v1417, %v1419
        %v1421 = vshll.u32 %v1381, 8
        %v1422 = vmul.u32.u64.compose %v1421, %v1420
        %v1423 = vextract.low.u32 %v1422
        %v1424 = vextract.high.u32 %v1422
        %v1425 = vmul.u32.u64.compose %v1421, %v1416
        %v1426 = vextract.low.u32 %v1425
        %v1427 = vextract.high.u32 %v1425
        %v1428 = vmul.u32 %v1421, %v1412
        %v1429 = vadd.s32 %v1424, %v1426
        %vm1430 = vc.u32 %v1424, %v1426
        %v1431 = vadd.s32 %v1427, 1
        %v1432 = vsel %vm1430, %v1431, %v1427
        %v1433 = vadd.s32 %v1428, %v1432
        %v1434 = vadd.s32 %v1433, 536870912
        %v1435 = vshrl.u32 %v1434, 30
        %v1436 = vshll.u32 %v1435, 30
        %v1437 = vsub.s32 %v1433, %v1436
        %vm1438 = vcmp.lt.s32.totalorder %v1437, 0
        %v1439 = vsub.s32 0, %v1437
        %v1440 = vsel %vm1438, %v1439, %v1437
        %v1441 = vclz %v1440
        %v1442 = vsub.s32 %v1441, 2
        %vm1443 = vcmp.gt.s32.totalorder 0, %v1442
        %v1444 = vsel %vm1443, 0, %v1442
        %v1445 = vsub.s32 32, %v1444
        %v1446 = vshll.u32 %v1437, %v1444
        %v1447 = vshrl.u32 %v1429, %v1445
        %v1448 = vor.u32 %v1446, %v1447
        %v1449 = vsub.s32 4294967266, %v1444
        %v1450 = vadd.s32 %v1449, 127
        %v1451 = vshll.u32 %v1450, 23
        %v1452 = vor.u32 4788187, %v1451
        %v1453 = vand.u32 2147483647, %v1452
        %v1455 = vcvt.s32.f32 %v1448
        %v1456 = vmul.f32 %v1455, %v1453
        %v1457 = vxor.u32 %v1456, 2147483648
        %v1458 = vsel %vm1375, %v1457, %v1456
        %v1459 = vsub.s32 4, %v1435
        %v1460 = vsel %vm1375, %v1459, %v1435
        %v1461 = vsel %vm1374, %v1351, %v1458
        %v1462 = vsel %vm1374, 0, %v1460
        %v1463 = vcosq.f32.pop %v1461
        %v1464 = vsinq.f32.pop %v1461
        %vm1465 = vweird.f32 %v1351
        %v1466 = vadd.s32 %v1462, 3
        %v1467 = vand.u32 %v1466, 3
        %vm1468 = vcmp.lt.s32.totalorder %v1467, 2
        %vm1469 = vcmp.eq.s32.totalorder %v1467, 0
        %v1470 = vxor.u32 %v1464, 2147483648
        %v1471 = vsel %vm1469, %v1463, %v1470
        %vm1472 = vcmp.eq.s32.totalorder %v1467, 2
        %v1473 = vxor.u32 %v1463, 2147483648
        %v1474 = vsel %vm1472, %v1473, %v1464
        %v1475 = vsel %vm1468, %v1471, %v1474
        %v1476 = vsel %vm1465, nan, %v1475
        %v1477 = vand.u32 2147483647, %v1353
        %vm1478 = vcmp.le.f32.partialorder %v1477, 0.7853982
        %vm1479 = vcmp.lt.s32.totalorder %v1353, 0
        %v1480 = vand.u32 %v1353, 2139095040
        %v1481 = vshrl.u32 %v1480, 23
        %v1482 = vsub.s32 %v1481, 127
        %v1483 = vand.u32 2147483647, %v1353
        %v1484 = vand.u32 %v1483, 8388607
        %v1485 = vor.u32 %v1484, 8388608
        %v1486 = vsub.s32 0, %v1485
        %v1487 = vadd.s32 %v1482, 1
        %vm1488 = vcmp.gt.s32.totalorder %v1487, 0
        %v1489 = vsel %vm1488, %v1487, 0
        %v1490 = vshrl.u32 %v1489, 5
        %v1491 = vand.u32 %v1489, 31
        %v1492 = vsub.s32 32, %v1491
        %v1493 = vshrl.u32 683565275, %v1492
        %v1494 = vshll.u32 683565275, %v1491
        %v1495 = vshrl.u32 2475754826, %v1492
        %v1496 = vor.u32 %v1494, %v1495
        %v1497 = vshll.u32 2475754826, %v1491
        %v1498 = vshrl.u32 2131351028, %v1492
        %v1499 = vor.u32 %v1497, %v1498
        %v1500 = vshll.u32 2131351028, %v1491
        %v1501 = vshrl.u32 2102212464, %v1492
        %v1502 = vor.u32 %v1500, %v1501
        %v1503 = vshll.u32 2102212464, %v1491
        %v1504 = vshrl.u32 920167782, %v1492
        %v1505 = vor.u32 %v1503, %v1504
        %v1506 = vshll.u32 920167782, %v1491
        %v1507 = vshrl.u32 1326507024, %v1492
        %v1508 = vor.u32 %v1506, %v1507
        %vm1509 = vcmp.lt.s32.totalorder %v1490, 1
        %vm1510 = vcmp.lt.s32.totalorder %v1490, 2
        %vm1511 = vcmp.lt.s32.totalorder %v1490, 3
        %vm1512 = vcmp.lt.s32.totalorder %v1490, 4
        %v1513 = vsel %vm1509, %v1493, %v1496
        %v1514 = vsel %vm1512, %v1502, 2102212464
        %v1515 = vsel %vm1511, %v1499, %v1514
        %v1516 = vsel %vm1510, %v1513, %v1515
        %v1517 = vsel %vm1509, %v1496, %v1499
        %v1518 = vsel %vm1512, %v1505, 920167782
        %v1519 = vsel %vm1511, %v1502, %v1518
        %v1520 = vsel %vm1510, %v1517, %v1519
        %v1521 = vsel %vm1509, %v1499, %v1502
        %v1522 = vsel %vm1512, %v1508, 1326507024
        %v1523 = vsel %vm1511, %v1505, %v1522
        %v1524 = vsel %vm1510, %v1521, %v1523
        %v1525 = vshll.u32 %v1485, 8
        %v1526 = vmul.u32.u64.compose %v1525, %v1524
        %v1527 = vextract.low.u32 %v1526
        %v1528 = vextract.high.u32 %v1526
        %v1529 = vmul.u32.u64.compose %v1525, %v1520
        %v1530 = vextract.low.u32 %v1529
        %v1531 = vextract.high.u32 %v1529
        %v1532 = vmul.u32 %v1525, %v1516
        %v1533 = vadd.s32 %v1528, %v1530
        %vm1534 = vc.u32 %v1528, %v1530
        %v1535 = vadd.s32 %v1531, 1
        %v1536 = vsel %vm1534, %v1535, %v1531
        %v1537 = vadd.s32 %v1532, %v1536
        %v1538 = vadd.s32 %v1537, 536870912
        %v1539 = vshrl.u32 %v1538, 30
        %v1540 = vshll.u32 %v1539, 30
        %v1541 = vsub.s32 %v1537, %v1540
        %vm1542 = vcmp.lt.s32.totalorder %v1541, 0
        %v1543 = vsub.s32 0, %v1541
        %v1544 = vsel %vm1542, %v1543, %v1541
        %v1545 = vclz %v1544
        %v1546 = vsub.s32 %v1545, 2
        %vm1547 = vcmp.gt.s32.totalorder 0, %v1546
        %v1548 = vsel %vm1547, 0, %v1546
        %v1549 = vsub.s32 32, %v1548
        %v1550 = vshll.u32 %v1541, %v1548
        %v1551 = vshrl.u32 %v1533, %v1549
        %v1552 = vor.u32 %v1550, %v1551
        %v1553 = vsub.s32 4294967266, %v1548
        %v1554 = vadd.s32 %v1553, 127
        %v1555 = vshll.u32 %v1554, 23
        %v1556 = vor.u32 4788187, %v1555
        %v1557 = vand.u32 2147483647, %v1556
        %v1559 = vcvt.s32.f32 %v1552
        %v1560 = vmul.f32 %v1559, %v1557
        %v1561 = vxor.u32 %v1560, 2147483648
        %v1562 = vsel %vm1479, %v1561, %v1560
        %v1563 = vsub.s32 4, %v1539
        %v1564 = vsel %vm1479, %v1563, %v1539
        %v1565 = vsel %vm1478, %v1353, %v1562
        %v1566 = vsel %vm1478, 0, %v1564
        %v1567 = vcosq.f32.pop %v1565
        %v1568 = vsinq.f32.pop %v1565
        %vm1569 = vweird.f32 %v1353
        %v1570 = vadd.s32 %v1566, 3
        %v1571 = vand.u32 %v1570, 3
        %vm1572 = vcmp.lt.s32.totalorder %v1571, 2
        %vm1573 = vcmp.eq.s32.totalorder %v1571, 0
        %v1574 = vxor.u32 %v1568, 2147483648
        %v1575 = vsel %vm1573, %v1567, %v1574
        %vm1576 = vcmp.eq.s32.totalorder %v1571, 2
        %v1577 = vxor.u32 %v1567, 2147483648
        %v1578 = vsel %vm1576, %v1577, %v1568
        %v1579 = vsel %vm1572, %v1575, %v1578
        %v1580 = vsel %vm1569, nan, %v1579
        %v1581 = vand.u32 2147483647, %v1357
        %vm1582 = vcmp.le.f32.partialorder %v1581, 0.7853982
        %vm1583 = vcmp.lt.s32.totalorder %v1357, 0
        %v1584 = vand.u32 %v1357, 2139095040
        %v1585 = vshrl.u32 %v1584, 23
        %v1586 = vsub.s32 %v1585, 127
        %v1587 = vand.u32 2147483647, %v1357
        %v1588 = vand.u32 %v1587, 8388607
        %v1589 = vor.u32 %v1588, 8388608
        %v1590 = vsub.s32 0, %v1589
        %v1591 = vadd.s32 %v1586, 1
        %vm1592 = vcmp.gt.s32.totalorder %v1591, 0
        %v1593 = vsel %vm1592, %v1591, 0
        %v1594 = vshrl.u32 %v1593, 5
        %v1595 = vand.u32 %v1593, 31
        %v1596 = vsub.s32 32, %v1595
        %v1597 = vshrl.u32 683565275, %v1596
        %v1598 = vshll.u32 683565275, %v1595
        %v1599 = vshrl.u32 2475754826, %v1596
        %v1600 = vor.u32 %v1598, %v1599
        %v1601 = vshll.u32 2475754826, %v1595
        %v1602 = vshrl.u32 2131351028, %v1596
        %v1603 = vor.u32 %v1601, %v1602
        %v1604 = vshll.u32 2131351028, %v1595
        %v1605 = vshrl.u32 2102212464, %v1596
        %v1606 = vor.u32 %v1604, %v1605
        %v1607 = vshll.u32 2102212464, %v1595
        %v1608 = vshrl.u32 920167782, %v1596
        %v1609 = vor.u32 %v1607, %v1608
        %v1610 = vshll.u32 920167782, %v1595
        %v1611 = vshrl.u32 1326507024, %v1596
        %v1612 = vor.u32 %v1610, %v1611
        %vm1613 = vcmp.lt.s32.totalorder %v1594, 1
        %vm1614 = vcmp.lt.s32.totalorder %v1594, 2
        %vm1615 = vcmp.lt.s32.totalorder %v1594, 3
        %vm1616 = vcmp.lt.s32.totalorder %v1594, 4
        %v1617 = vsel %vm1613, %v1597, %v1600
        %v1618 = vsel %vm1616, %v1606, 2102212464
        %v1619 = vsel %vm1615, %v1603, %v1618
        %v1620 = vsel %vm1614, %v1617, %v1619
        %v1621 = vsel %vm1613, %v1600, %v1603
        %v1622 = vsel %vm1616, %v1609, 920167782
        %v1623 = vsel %vm1615, %v1606, %v1622
        %v1624 = vsel %vm1614, %v1621, %v1623
        %v1625 = vsel %vm1613, %v1603, %v1606
        %v1626 = vsel %vm1616, %v1612, 1326507024
        %v1627 = vsel %vm1615, %v1609, %v1626
        %v1628 = vsel %vm1614, %v1625, %v1627
        %v1629 = vshll.u32 %v1589, 8
        %v1630 = vmul.u32.u64.compose %v1629, %v1628
        %v1631 = vextract.low.u32 %v1630
        %v1632 = vextract.high.u32 %v1630
        %v1633 = vmul.u32.u64.compose %v1629, %v1624
        %v1634 = vextract.low.u32 %v1633
        %v1635 = vextract.high.u32 %v1633
        %v1636 = vmul.u32 %v1629, %v1620
        %v1637 = vadd.s32 %v1632, %v1634
        %vm1638 = vc.u32 %v1632, %v1634
        %v1639 = vadd.s32 %v1635, 1
        %v1640 = vsel %vm1638, %v1639, %v1635
        %v1641 = vadd.s32 %v1636, %v1640
        %v1642 = vadd.s32 %v1641, 536870912
        %v1643 = vshrl.u32 %v1642, 30
        %v1644 = vshll.u32 %v1643, 30
        %v1645 = vsub.s32 %v1641, %v1644
        %vm1646 = vcmp.lt.s32.totalorder %v1645, 0
        %v1647 = vsub.s32 0, %v1645
        %v1648 = vsel %vm1646, %v1647, %v1645
        %v1649 = vclz %v1648
        %v1650 = vsub.s32 %v1649, 2
        %vm1651 = vcmp.gt.s32.totalorder 0, %v1650
        %v1652 = vsel %vm1651, 0, %v1650
        %v1653 = vsub.s32 32, %v1652
        %v1654 = vshll.u32 %v1645, %v1652
        %v1655 = vshrl.u32 %v1637, %v1653
        %v1656 = vor.u32 %v1654, %v1655
        %v1657 = vsub.s32 4294967266, %v1652
        %v1658 = vadd.s32 %v1657, 127
        %v1659 = vshll.u32 %v1658, 23
        %v1660 = vor.u32 4788187, %v1659
        %v1661 = vand.u32 2147483647, %v1660
        %v1663 = vcvt.s32.f32 %v1656
        %v1664 = vmul.f32 %v1663, %v1661
        %v1665 = vxor.u32 %v1664, 2147483648
        %v1666 = vsel %vm1583, %v1665, %v1664
        %v1667 = vsub.s32 4, %v1643
        %v1668 = vsel %vm1583, %v1667, %v1643
        %v1669 = vsel %vm1582, %v1357, %v1666
        %v1670 = vsel %vm1582, 0, %v1668
        %v1671 = vcosq.f32.pop %v1669
        %v1672 = vsinq.f32.pop %v1669
        %vm1673 = vweird.f32 %v1357
        %v1674 = vadd.s32 %v1670, 3
        %v1675 = vand.u32 %v1674, 3
        %vm1676 = vcmp.lt.s32.totalorder %v1675, 2
        %vm1677 = vcmp.eq.s32.totalorder %v1675, 0
        %v1678 = vxor.u32 %v1672, 2147483648
        %v1679 = vsel %vm1677, %v1671, %v1678
        %vm1680 = vcmp.eq.s32.totalorder %v1675, 2
        %v1681 = vxor.u32 %v1671, 2147483648
        %v1682 = vsel %vm1680, %v1681, %v1672
        %v1683 = vsel %vm1676, %v1679, %v1682
        %v1684 = vsel %vm1673, nan, %v1683
        %v1685 = vand.u32 2147483647, %v1359
        %vm1686 = vcmp.le.f32.partialorder %v1685, 0.7853982
        %vm1687 = vcmp.lt.s32.totalorder %v1359, 0
        %v1688 = vand.u32 %v1359, 2139095040
        %v1689 = vshrl.u32 %v1688, 23
        %v1690 = vsub.s32 %v1689, 127
        %v1691 = vand.u32 2147483647, %v1359
        %v1692 = vand.u32 %v1691, 8388607
        %v1693 = vor.u32 %v1692, 8388608
        %v1694 = vsub.s32 0, %v1693
        %v1695 = vadd.s32 %v1690, 1
        %vm1696 = vcmp.gt.s32.totalorder %v1695, 0
        %v1697 = vsel %vm1696, %v1695, 0
        %v1698 = vshrl.u32 %v1697, 5
        %v1699 = vand.u32 %v1697, 31
        %v1700 = vsub.s32 32, %v1699
        %v1701 = vshrl.u32 683565275, %v1700
        %v1702 = vshll.u32 683565275, %v1699
        %v1703 = vshrl.u32 2475754826, %v1700
        %v1704 = vor.u32 %v1702, %v1703
        %v1705 = vshll.u32 2475754826, %v1699
        %v1706 = vshrl.u32 2131351028, %v1700
        %v1707 = vor.u32 %v1705, %v1706
        %v1708 = vshll.u32 2131351028, %v1699
        %v1709 = vshrl.u32 2102212464, %v1700
        %v1710 = vor.u32 %v1708, %v1709
        %v1711 = vshll.u32 2102212464, %v1699
        %v1712 = vshrl.u32 920167782, %v1700
        %v1713 = vor.u32 %v1711, %v1712
        %v1714 = vshll.u32 920167782, %v1699
        %v1715 = vshrl.u32 1326507024, %v1700
        %v1716 = vor.u32 %v1714, %v1715
        %vm1717 = vcmp.lt.s32.totalorder %v1698, 1
        %vm1718 = vcmp.lt.s32.totalorder %v1698, 2
        %vm1719 = vcmp.lt.s32.totalorder %v1698, 3
        %vm1720 = vcmp.lt.s32.totalorder %v1698, 4
        %v1721 = vsel %vm1717, %v1701, %v1704
        %v1722 = vsel %vm1720, %v1710, 2102212464
        %v1723 = vsel %vm1719, %v1707, %v1722
        %v1724 = vsel %vm1718, %v1721, %v1723
        %v1725 = vsel %vm1717, %v1704, %v1707
        %v1726 = vsel %vm1720, %v1713, 920167782
        %v1727 = vsel %vm1719, %v1710, %v1726
        %v1728 = vsel %vm1718, %v1725, %v1727
        %v1729 = vsel %vm1717, %v1707, %v1710
        %v1730 = vsel %vm1720, %v1716, 1326507024
        %v1731 = vsel %vm1719, %v1713, %v1730
        %v1732 = vsel %vm1718, %v1729, %v1731
        %v1733 = vshll.u32 %v1693, 8
        %v1734 = vmul.u32.u64.compose %v1733, %v1732
        %v1735 = vextract.low.u32 %v1734
        %v1736 = vextract.high.u32 %v1734
        %v1737 = vmul.u32.u64.compose %v1733, %v1728
        %v1738 = vextract.low.u32 %v1737
        %v1739 = vextract.high.u32 %v1737
        %v1740 = vmul.u32 %v1733, %v1724
        %v1741 = vadd.s32 %v1736, %v1738
        %vm1742 = vc.u32 %v1736, %v1738
        %v1743 = vadd.s32 %v1739, 1
        %v1744 = vsel %vm1742, %v1743, %v1739
        %v1745 = vadd.s32 %v1740, %v1744
        %v1746 = vadd.s32 %v1745, 536870912
        %v1747 = vshrl.u32 %v1746, 30
        %v1748 = vshll.u32 %v1747, 30
        %v1749 = vsub.s32 %v1745, %v1748
        %vm1750 = vcmp.lt.s32.totalorder %v1749, 0
        %v1751 = vsub.s32 0, %v1749
        %v1752 = vsel %vm1750, %v1751, %v1749
        %v1753 = vclz %v1752
        %v1754 = vsub.s32 %v1753, 2
        %vm1755 = vcmp.gt.s32.totalorder 0, %v1754
        %v1756 = vsel %vm1755, 0, %v1754
        %v1757 = vsub.s32 32, %v1756
        %v1758 = vshll.u32 %v1749, %v1756
        %v1759 = vshrl.u32 %v1741, %v1757
        %v1760 = vor.u32 %v1758, %v1759
        %v1761 = vsub.s32 4294967266, %v1756
        %v1762 = vadd.s32 %v1761, 127
        %v1763 = vshll.u32 %v1762, 23
        %v1764 = vor.u32 4788187, %v1763
        %v1765 = vand.u32 2147483647, %v1764
        %v1767 = vcvt.s32.f32 %v1760
        %v1768 = vmul.f32 %v1767, %v1765
        %v1769 = vxor.u32 %v1768, 2147483648
        %v1770 = vsel %vm1687, %v1769, %v1768
        %v1771 = vsub.s32 4, %v1747
        %v1772 = vsel %vm1687, %v1771, %v1747
        %v1773 = vsel %vm1686, %v1359, %v1770
        %v1774 = vsel %vm1686, 0, %v1772
        %v1775 = vcosq.f32.pop %v1773
        %v1776 = vsinq.f32.pop %v1773
        %vm1777 = vweird.f32 %v1359
        %v1778 = vadd.s32 %v1774, 3
        %v1779 = vand.u32 %v1778, 3
        %vm1780 = vcmp.lt.s32.totalorder %v1779, 2
        %vm1781 = vcmp.eq.s32.totalorder %v1779, 0
        %v1782 = vxor.u32 %v1776, 2147483648
        %v1783 = vsel %vm1781, %v1775, %v1782
        %vm1784 = vcmp.eq.s32.totalorder %v1779, 2
        %v1785 = vxor.u32 %v1775, 2147483648
        %v1786 = vsel %vm1784, %v1785, %v1776
        %v1787 = vsel %vm1780, %v1783, %v1786
        %v1788 = vsel %vm1777, nan, %v1787
        %v1789 = vand.u32 2147483647, %v1363
        %vm1790 = vcmp.le.f32.partialorder %v1789, 0.7853982
        %vm1791 = vcmp.lt.s32.totalorder %v1363, 0
        %v1792 = vand.u32 %v1363, 2139095040
        %v1793 = vshrl.u32 %v1792, 23
        %v1794 = vsub.s32 %v1793, 127
        %v1795 = vand.u32 2147483647, %v1363
        %v1796 = vand.u32 %v1795, 8388607
        %v1797 = vor.u32 %v1796, 8388608
        %v1798 = vsub.s32 0, %v1797
        %v1799 = vadd.s32 %v1794, 1
        %vm1800 = vcmp.gt.s32.totalorder %v1799, 0
        %v1801 = vsel %vm1800, %v1799, 0
        %v1802 = vshrl.u32 %v1801, 5
        %v1803 = vand.u32 %v1801, 31
        %v1804 = vsub.s32 32, %v1803
        %v1805 = vshrl.u32 683565275, %v1804
        %v1806 = vshll.u32 683565275, %v1803
        %v1807 = vshrl.u32 2475754826, %v1804
        %v1808 = vor.u32 %v1806, %v1807
        %v1809 = vshll.u32 2475754826, %v1803
        %v1810 = vshrl.u32 2131351028, %v1804
        %v1811 = vor.u32 %v1809, %v1810
        %v1812 = vshll.u32 2131351028, %v1803
        %v1813 = vshrl.u32 2102212464, %v1804
        %v1814 = vor.u32 %v1812, %v1813
        %v1815 = vshll.u32 2102212464, %v1803
        %v1816 = vshrl.u32 920167782, %v1804
        %v1817 = vor.u32 %v1815, %v1816
        %v1818 = vshll.u32 920167782, %v1803
        %v1819 = vshrl.u32 1326507024, %v1804
        %v1820 = vor.u32 %v1818, %v1819
        %vm1821 = vcmp.lt.s32.totalorder %v1802, 1
        %vm1822 = vcmp.lt.s32.totalorder %v1802, 2
        %vm1823 = vcmp.lt.s32.totalorder %v1802, 3
        %vm1824 = vcmp.lt.s32.totalorder %v1802, 4
        %v1825 = vsel %vm1821, %v1805, %v1808
        %v1826 = vsel %vm1824, %v1814, 2102212464
        %v1827 = vsel %vm1823, %v1811, %v1826
        %v1828 = vsel %vm1822, %v1825, %v1827
        %v1829 = vsel %vm1821, %v1808, %v1811
        %v1830 = vsel %vm1824, %v1817, 920167782
        %v1831 = vsel %vm1823, %v1814, %v1830
        %v1832 = vsel %vm1822, %v1829, %v1831
        %v1833 = vsel %vm1821, %v1811, %v1814
        %v1834 = vsel %vm1824, %v1820, 1326507024
        %v1835 = vsel %vm1823, %v1817, %v1834
        %v1836 = vsel %vm1822, %v1833, %v1835
        %v1837 = vshll.u32 %v1797, 8
        %v1838 = vmul.u32.u64.compose %v1837, %v1836
        %v1839 = vextract.low.u32 %v1838
        %v1840 = vextract.high.u32 %v1838
        %v1841 = vmul.u32.u64.compose %v1837, %v1832
        %v1842 = vextract.low.u32 %v1841
        %v1843 = vextract.high.u32 %v1841
        %v1844 = vmul.u32 %v1837, %v1828
        %v1845 = vadd.s32 %v1840, %v1842
        %vm1846 = vc.u32 %v1840, %v1842
        %v1847 = vadd.s32 %v1843, 1
        %v1848 = vsel %vm1846, %v1847, %v1843
        %v1849 = vadd.s32 %v1844, %v1848
        %v1850 = vadd.s32 %v1849, 536870912
        %v1851 = vshrl.u32 %v1850, 30
        %v1852 = vshll.u32 %v1851, 30
        %v1853 = vsub.s32 %v1849, %v1852
        %vm1854 = vcmp.lt.s32.totalorder %v1853, 0
        %v1855 = vsub.s32 0, %v1853
        %v1856 = vsel %vm1854, %v1855, %v1853
        %v1857 = vclz %v1856
        %v1858 = vsub.s32 %v1857, 2
        %vm1859 = vcmp.gt.s32.totalorder 0, %v1858
        %v1860 = vsel %vm1859, 0, %v1858
        %v1861 = vsub.s32 32, %v1860
        %v1862 = vshll.u32 %v1853, %v1860
        %v1863 = vshrl.u32 %v1845, %v1861
        %v1864 = vor.u32 %v1862, %v1863
        %v1865 = vsub.s32 4294967266, %v1860
        %v1866 = vadd.s32 %v1865, 127
        %v1867 = vshll.u32 %v1866, 23
        %v1868 = vor.u32 4788187, %v1867
        %v1869 = vand.u32 2147483647, %v1868
        %v1871 = vcvt.s32.f32 %v1864
        %v1872 = vmul.f32 %v1871, %v1869
        %v1873 = vxor.u32 %v1872, 2147483648
        %v1874 = vsel %vm1791, %v1873, %v1872
        %v1875 = vsub.s32 4, %v1851
        %v1876 = vsel %vm1791, %v1875, %v1851
        %v1877 = vsel %vm1790, %v1363, %v1874
        %v1878 = vsel %vm1790, 0, %v1876
        %v1879 = vcosq.f32.pop %v1877
        %v1880 = vsinq.f32.pop %v1877
        %vm1881 = vweird.f32 %v1363
        %v1882 = vadd.s32 %v1878, 3
        %v1883 = vand.u32 %v1882, 3
        %vm1884 = vcmp.lt.s32.totalorder %v1883, 2
        %vm1885 = vcmp.eq.s32.totalorder %v1883, 0
        %v1886 = vxor.u32 %v1880, 2147483648
        %v1887 = vsel %vm1885, %v1879, %v1886
        %vm1888 = vcmp.eq.s32.totalorder %v1883, 2
        %v1889 = vxor.u32 %v1879, 2147483648
        %v1890 = vsel %vm1888, %v1889, %v1880
        %v1891 = vsel %vm1884, %v1887, %v1890
        %v1892 = vsel %vm1881, nan, %v1891
        %v1893 = vand.u32 2147483647, %v1365
        %vm1894 = vcmp.le.f32.partialorder %v1893, 0.7853982
        %vm1895 = vcmp.lt.s32.totalorder %v1365, 0
        %v1896 = vand.u32 %v1365, 2139095040
        %v1897 = vshrl.u32 %v1896, 23
        %v1898 = vsub.s32 %v1897, 127
        %v1899 = vand.u32 2147483647, %v1365
        %v1900 = vand.u32 %v1899, 8388607
        %v1901 = vor.u32 %v1900, 8388608
        %v1902 = vsub.s32 0, %v1901
        %v1903 = vadd.s32 %v1898, 1
        %vm1904 = vcmp.gt.s32.totalorder %v1903, 0
        %v1905 = vsel %vm1904, %v1903, 0
        %v1906 = vshrl.u32 %v1905, 5
        %v1907 = vand.u32 %v1905, 31
        %v1908 = vsub.s32 32, %v1907
        %v1909 = vshrl.u32 683565275, %v1908
        %v1910 = vshll.u32 683565275, %v1907
        %v1911 = vshrl.u32 2475754826, %v1908
        %v1912 = vor.u32 %v1910, %v1911
        %v1913 = vshll.u32 2475754826, %v1907
        %v1914 = vshrl.u32 2131351028, %v1908
        %v1915 = vor.u32 %v1913, %v1914
        %v1916 = vshll.u32 2131351028, %v1907
        %v1917 = vshrl.u32 2102212464, %v1908
        %v1918 = vor.u32 %v1916, %v1917
        %v1919 = vshll.u32 2102212464, %v1907
        %v1920 = vshrl.u32 920167782, %v1908
        %v1921 = vor.u32 %v1919, %v1920
        %v1922 = vshll.u32 920167782, %v1907
        %v1923 = vshrl.u32 1326507024, %v1908
        %v1924 = vor.u32 %v1922, %v1923
        %vm1925 = vcmp.lt.s32.totalorder %v1906, 1
        %vm1926 = vcmp.lt.s32.totalorder %v1906, 2
        %vm1927 = vcmp.lt.s32.totalorder %v1906, 3
        %vm1928 = vcmp.lt.s32.totalorder %v1906, 4
        %v1929 = vsel %vm1925, %v1909, %v1912
        %v1930 = vsel %vm1928, %v1918, 2102212464
        %v1931 = vsel %vm1927, %v1915, %v1930
        %v1932 = vsel %vm1926, %v1929, %v1931
        %v1933 = vsel %vm1925, %v1912, %v1915
        %v1934 = vsel %vm1928, %v1921, 920167782
        %v1935 = vsel %vm1927, %v1918, %v1934
        %v1936 = vsel %vm1926, %v1933, %v1935
        %v1937 = vsel %vm1925, %v1915, %v1918
        %v1938 = vsel %vm1928, %v1924, 1326507024
        %v1939 = vsel %vm1927, %v1921, %v1938
        %v1940 = vsel %vm1926, %v1937, %v1939
        %v1941 = vshll.u32 %v1901, 8
        %v1942 = vmul.u32.u64.compose %v1941, %v1940
        %v1943 = vextract.low.u32 %v1942
        %v1944 = vextract.high.u32 %v1942
        %v1945 = vmul.u32.u64.compose %v1941, %v1936
        %v1946 = vextract.low.u32 %v1945
        %v1947 = vextract.high.u32 %v1945
        %v1948 = vmul.u32 %v1941, %v1932
        %v1949 = vadd.s32 %v1944, %v1946
        %vm1950 = vc.u32 %v1944, %v1946
        %v1951 = vadd.s32 %v1947, 1
        %v1952 = vsel %vm1950, %v1951, %v1947
        %v1953 = vadd.s32 %v1948, %v1952
        %v1954 = vadd.s32 %v1953, 536870912
        %v1955 = vshrl.u32 %v1954, 30
        %v1956 = vshll.u32 %v1955, 30
        %v1957 = vsub.s32 %v1953, %v1956
        %vm1958 = vcmp.lt.s32.totalorder %v1957, 0
        %v1959 = vsub.s32 0, %v1957
        %v1960 = vsel %vm1958, %v1959, %v1957
        %v1961 = vclz %v1960
        %v1962 = vsub.s32 %v1961, 2
        %vm1963 = vcmp.gt.s32.totalorder 0, %v1962
        %v1964 = vsel %vm1963, 0, %v1962
        %v1965 = vsub.s32 32, %v1964
        %v1966 = vshll.u32 %v1957, %v1964
        %v1967 = vshrl.u32 %v1949, %v1965
        %v1968 = vor.u32 %v1966, %v1967
        %v1969 = vsub.s32 4294967266, %v1964
        %v1970 = vadd.s32 %v1969, 127
        %v1971 = vshll.u32 %v1970, 23
        %v1972 = vor.u32 4788187, %v1971
        %v1973 = vand.u32 2147483647, %v1972
        %v1975 = vcvt.s32.f32 %v1968
        %v1976 = vmul.f32 %v1975, %v1973
        %v1977 = vxor.u32 %v1976, 2147483648
        %v1978 = vsel %vm1895, %v1977, %v1976
        %v1979 = vsub.s32 4, %v1955
        %v1980 = vsel %vm1895, %v1979, %v1955
        %v1981 = vsel %vm1894, %v1365, %v1978
        %v1982 = vsel %vm1894, 0, %v1980
        %v1983 = vcosq.f32.pop %v1981
        %v1984 = vsinq.f32.pop %v1981
        %vm1985 = vweird.f32 %v1365
        %v1986 = vadd.s32 %v1982, 3
        %v1987 = vand.u32 %v1986, 3
        %vm1988 = vcmp.lt.s32.totalorder %v1987, 2
        %vm1989 = vcmp.eq.s32.totalorder %v1987, 0
        %v1990 = vxor.u32 %v1984, 2147483648
        %v1991 = vsel %vm1989, %v1983, %v1990
        %vm1992 = vcmp.eq.s32.totalorder %v1987, 2
        %v1993 = vxor.u32 %v1983, 2147483648
        %v1994 = vsel %vm1992, %v1993, %v1984
        %v1995 = vsel %vm1988, %v1991, %v1994
        %v1996 = vsel %vm1985, nan, %v1995
        %v1997 = vand.u32 2147483647, %v1369
        %vm1998 = vcmp.le.f32.partialorder %v1997, 0.7853982
        %vm1999 = vcmp.lt.s32.totalorder %v1369, 0
        %v2000 = vand.u32 %v1369, 2139095040
        %v2001 = vshrl.u32 %v2000, 23
        %v2002 = vsub.s32 %v2001, 127
        %v2003 = vand.u32 2147483647, %v1369
        %v2004 = vand.u32 %v2003, 8388607
        %v2005 = vor.u32 %v2004, 8388608
        %v2006 = vsub.s32 0, %v2005
        %v2007 = vadd.s32 %v2002, 1
        %vm2008 = vcmp.gt.s32.totalorder %v2007, 0
        %v2009 = vsel %vm2008, %v2007, 0
        %v2010 = vshrl.u32 %v2009, 5
        %v2011 = vand.u32 %v2009, 31
        %v2012 = vsub.s32 32, %v2011
        %v2013 = vshrl.u32 683565275, %v2012
        %v2014 = vshll.u32 683565275, %v2011
        %v2015 = vshrl.u32 2475754826, %v2012
        %v2016 = vor.u32 %v2014, %v2015
        %v2017 = vshll.u32 2475754826, %v2011
        %v2018 = vshrl.u32 2131351028, %v2012
        %v2019 = vor.u32 %v2017, %v2018
        %v2020 = vshll.u32 2131351028, %v2011
        %v2021 = vshrl.u32 2102212464, %v2012
        %v2022 = vor.u32 %v2020, %v2021
        %v2023 = vshll.u32 2102212464, %v2011
        %v2024 = vshrl.u32 920167782, %v2012
        %v2025 = vor.u32 %v2023, %v2024
        %v2026 = vshll.u32 920167782, %v2011
        %v2027 = vshrl.u32 1326507024, %v2012
        %v2028 = vor.u32 %v2026, %v2027
        %vm2029 = vcmp.lt.s32.totalorder %v2010, 1
        %vm2030 = vcmp.lt.s32.totalorder %v2010, 2
        %vm2031 = vcmp.lt.s32.totalorder %v2010, 3
        %vm2032 = vcmp.lt.s32.totalorder %v2010, 4
        %v2033 = vsel %vm2029, %v2013, %v2016
        %v2034 = vsel %vm2032, %v2022, 2102212464
        %v2035 = vsel %vm2031, %v2019, %v2034
        %v2036 = vsel %vm2030, %v2033, %v2035
        %v2037 = vsel %vm2029, %v2016, %v2019
        %v2038 = vsel %vm2032, %v2025, 920167782
        %v2039 = vsel %vm2031, %v2022, %v2038
        %v2040 = vsel %vm2030, %v2037, %v2039
        %v2041 = vsel %vm2029, %v2019, %v2022
        %v2042 = vsel %vm2032, %v2028, 1326507024
        %v2043 = vsel %vm2031, %v2025, %v2042
        %v2044 = vsel %vm2030, %v2041, %v2043
        %v2045 = vshll.u32 %v2005, 8
        %v2046 = vmul.u32.u64.compose %v2045, %v2044
        %v2047 = vextract.low.u32 %v2046
        %v2048 = vextract.high.u32 %v2046
        %v2049 = vmul.u32.u64.compose %v2045, %v2040
        %v2050 = vextract.low.u32 %v2049
        %v2051 = vextract.high.u32 %v2049
        %v2052 = vmul.u32 %v2045, %v2036
        %v2053 = vadd.s32 %v2048, %v2050
        %vm2054 = vc.u32 %v2048, %v2050
        %v2055 = vadd.s32 %v2051, 1
        %v2056 = vsel %vm2054, %v2055, %v2051
        %v2057 = vadd.s32 %v2052, %v2056
        %v2058 = vadd.s32 %v2057, 536870912
        %v2059 = vshrl.u32 %v2058, 30
        %v2060 = vshll.u32 %v2059, 30
        %v2061 = vsub.s32 %v2057, %v2060
        %vm2062 = vcmp.lt.s32.totalorder %v2061, 0
        %v2063 = vsub.s32 0, %v2061
        %v2064 = vsel %vm2062, %v2063, %v2061
        %v2065 = vclz %v2064
        %v2066 = vsub.s32 %v2065, 2
        %vm2067 = vcmp.gt.s32.totalorder 0, %v2066
        %v2068 = vsel %vm2067, 0, %v2066
        %v2069 = vsub.s32 32, %v2068
        %v2070 = vshll.u32 %v2061, %v2068
        %v2071 = vshrl.u32 %v2053, %v2069
        %v2072 = vor.u32 %v2070, %v2071
        %v2073 = vsub.s32 4294967266, %v2068
        %v2074 = vadd.s32 %v2073, 127
        %v2075 = vshll.u32 %v2074, 23
        %v2076 = vor.u32 4788187, %v2075
        %v2077 = vand.u32 2147483647, %v2076
        %v2079 = vcvt.s32.f32 %v2072
        %v2080 = vmul.f32 %v2079, %v2077
        %v2081 = vxor.u32 %v2080, 2147483648
        %v2082 = vsel %vm1999, %v2081, %v2080
        %v2083 = vsub.s32 4, %v2059
        %v2084 = vsel %vm1999, %v2083, %v2059
        %v2085 = vsel %vm1998, %v1369, %v2082
        %v2086 = vsel %vm1998, 0, %v2084
        %v2087 = vcosq.f32.pop %v2085
        %v2088 = vsinq.f32.pop %v2085
        %vm2089 = vweird.f32 %v1369
        %v2090 = vadd.s32 %v2086, 3
        %v2091 = vand.u32 %v2090, 3
        %vm2092 = vcmp.lt.s32.totalorder %v2091, 2
        %vm2093 = vcmp.eq.s32.totalorder %v2091, 0
        %v2094 = vxor.u32 %v2088, 2147483648
        %v2095 = vsel %vm2093, %v2087, %v2094
        %vm2096 = vcmp.eq.s32.totalorder %v2091, 2
        %v2097 = vxor.u32 %v2087, 2147483648
        %v2098 = vsel %vm2096, %v2097, %v2088
        %v2099 = vsel %vm2092, %v2095, %v2098
        %v2100 = vsel %vm2089, nan, %v2099
        %v2101 = vand.u32 2147483647, %v1371
        %vm2102 = vcmp.le.f32.partialorder %v2101, 0.7853982
        %vm2103 = vcmp.lt.s32.totalorder %v1371, 0
        %v2104 = vand.u32 %v1371, 2139095040
        %v2105 = vshrl.u32 %v2104, 23
        %v2106 = vsub.s32 %v2105, 127
        %v2107 = vand.u32 2147483647, %v1371
        %v2108 = vand.u32 %v2107, 8388607
        %v2109 = vor.u32 %v2108, 8388608
        %v2110 = vsub.s32 0, %v2109
        %v2111 = vadd.s32 %v2106, 1
        %vm2112 = vcmp.gt.s32.totalorder %v2111, 0
        %v2113 = vsel %vm2112, %v2111, 0
        %v2114 = vshrl.u32 %v2113, 5
        %v2115 = vand.u32 %v2113, 31
        %v2116 = vsub.s32 32, %v2115
        %v2117 = vshrl.u32 683565275, %v2116
        %v2118 = vshll.u32 683565275, %v2115
        %v2119 = vshrl.u32 2475754826, %v2116
        %v2120 = vor.u32 %v2118, %v2119
        %v2121 = vshll.u32 2475754826, %v2115
        %v2122 = vshrl.u32 2131351028, %v2116
        %v2123 = vor.u32 %v2121, %v2122
        %v2124 = vshll.u32 2131351028, %v2115
        %v2125 = vshrl.u32 2102212464, %v2116
        %v2126 = vor.u32 %v2124, %v2125
        %v2127 = vshll.u32 2102212464, %v2115
        %v2128 = vshrl.u32 920167782, %v2116
        %v2129 = vor.u32 %v2127, %v2128
        %v2130 = vshll.u32 920167782, %v2115
        %v2131 = vshrl.u32 1326507024, %v2116
        %v2132 = vor.u32 %v2130, %v2131
        %vm2133 = vcmp.lt.s32.totalorder %v2114, 1
        %vm2134 = vcmp.lt.s32.totalorder %v2114, 2
        %vm2135 = vcmp.lt.s32.totalorder %v2114, 3
        %vm2136 = vcmp.lt.s32.totalorder %v2114, 4
        %v2137 = vsel %vm2133, %v2117, %v2120
        %v2138 = vsel %vm2136, %v2126, 2102212464
        %v2139 = vsel %vm2135, %v2123, %v2138
        %v2140 = vsel %vm2134, %v2137, %v2139
        %v2141 = vsel %vm2133, %v2120, %v2123
        %v2142 = vsel %vm2136, %v2129, 920167782
        %v2143 = vsel %vm2135, %v2126, %v2142
        %v2144 = vsel %vm2134, %v2141, %v2143
        %v2145 = vsel %vm2133, %v2123, %v2126
        %v2146 = vsel %vm2136, %v2132, 1326507024
        %v2147 = vsel %vm2135, %v2129, %v2146
        %v2148 = vsel %vm2134, %v2145, %v2147
        %v2149 = vshll.u32 %v2109, 8
        %v2150 = vmul.u32.u64.compose %v2149, %v2148
        %v2151 = vextract.low.u32 %v2150
        %v2152 = vextract.high.u32 %v2150
        %v2153 = vmul.u32.u64.compose %v2149, %v2144
        %v2154 = vextract.low.u32 %v2153
        %v2155 = vextract.high.u32 %v2153
        %v2156 = vmul.u32 %v2149, %v2140
        %v2157 = vadd.s32 %v2152, %v2154
        %vm2158 = vc.u32 %v2152, %v2154
        %v2159 = vadd.s32 %v2155, 1
        %v2160 = vsel %vm2158, %v2159, %v2155
        %v2161 = vadd.s32 %v2156, %v2160
        %v2162 = vadd.s32 %v2161, 536870912
        %v2163 = vshrl.u32 %v2162, 30
        %v2164 = vshll.u32 %v2163, 30
        %v2165 = vsub.s32 %v2161, %v2164
        %vm2166 = vcmp.lt.s32.totalorder %v2165, 0
        %v2167 = vsub.s32 0, %v2165
        %v2168 = vsel %vm2166, %v2167, %v2165
        %v2169 = vclz %v2168
        %v2170 = vsub.s32 %v2169, 2
        %vm2171 = vcmp.gt.s32.totalorder 0, %v2170
        %v2172 = vsel %vm2171, 0, %v2170
        %v2173 = vsub.s32 32, %v2172
        %v2174 = vshll.u32 %v2165, %v2172
        %v2175 = vshrl.u32 %v2157, %v2173
        %v2176 = vor.u32 %v2174, %v2175
        %v2177 = vsub.s32 4294967266, %v2172
        %v2178 = vadd.s32 %v2177, 127
        %v2179 = vshll.u32 %v2178, 23
        %v2180 = vor.u32 4788187, %v2179
        %v2181 = vand.u32 2147483647, %v2180
        %v2183 = vcvt.s32.f32 %v2176
        %v2184 = vmul.f32 %v2183, %v2181
        %v2185 = vxor.u32 %v2184, 2147483648
        %v2186 = vsel %vm2103, %v2185, %v2184
        %v2187 = vsub.s32 4, %v2163
        %v2188 = vsel %vm2103, %v2187, %v2163
        %v2189 = vsel %vm2102, %v1371, %v2186
        %v2190 = vsel %vm2102, 0, %v2188
        %v2191 = vcosq.f32.pop %v2189
        %v2192 = vsinq.f32.pop %v2189
        %vm2193 = vweird.f32 %v1371
        %v2194 = vadd.s32 %v2190, 3
        %v2195 = vand.u32 %v2194, 3
        %vm2196 = vcmp.lt.s32.totalorder %v2195, 2
        %vm2197 = vcmp.eq.s32.totalorder %v2195, 0
        %v2198 = vxor.u32 %v2192, 2147483648
        %v2199 = vsel %vm2197, %v2191, %v2198
        %vm2200 = vcmp.eq.s32.totalorder %v2195, 2
        %v2201 = vxor.u32 %v2191, 2147483648
        %v2202 = vsel %vm2200, %v2201, %v2192
        %v2203 = vsel %vm2196, %v2199, %v2202
        %v2204 = vsel %vm2193, nan, %v2203
        %s2205 = scalar_lea.vmem %s2, 32
        %v2206 = vld [vmem:[%s2205] sm:$0xff]
        %v2207 = vld [vmem:[%s2205 + $0x8] sm:$0xff]
        %v2208 = vld [vmem:[%s2205 + $0x10] sm:$0xff]
        %v2209 = vld [vmem:[%s2205 + $0x18] sm:$0xff]
        %s2210 = scalar_lea.vmem %s3, 32
        %v2211 = vld [vmem:[%s2210] sm:$0xff]
        %v2212 = vld [vmem:[%s2210 + $0x8] sm:$0xff]
        %v2213 = vld [vmem:[%s2210 + $0x10] sm:$0xff]
        %v2214 = vld [vmem:[%s2210 + $0x18] sm:$0xff]
        %2216 = vset.pattern.permute.xlu0 0
        %2217 = vperm.xlu0 %2216, %v2211
        %v2218 = vpop.permute.xlu0 %2217
        %2221 = vset.pattern.permute.xlu0 0
        %2222 = vperm.xlu0 %2221, %v2212
        %v2223 = vpop.permute.xlu0 %2222
        %2226 = vset.pattern.permute.xlu0 0
        %2227 = vperm.xlu0 %2226, %v2213
        %v2228 = vpop.permute.xlu0 %2227
        %2231 = vset.pattern.permute.xlu0 0
        %2232 = vperm.xlu0 %2231, %v2214
        %v2233 = vpop.permute.xlu0 %2232
        %v2236 = vsel %vm1271, %v2206, 0
        %v2239 = vsel %vm1271, %v2207, 0
        %v2242 = vsel %vm1271, %v2208, 0
        %v2245 = vsel %vm1271, %v2209, 0
        %2247 = vmatprep.subr.mxu0 %v1580
        %2248 = vmatpush1.msra.mxu0 %v1476
        %2249 = vmatprep.subr.mxu0 %v1788
        %2250 = vmatpush1.msra.mxu0 %v1684
        %2251 = vmatprep.subr.mxu0 %v1996
        %2252 = vmatpush1.msra.mxu0 %v1892
        %2253 = vmatprep.subr.mxu0 %v2204
        %2254 = vmatpush1.msra.mxu0 %v2100
        %2255 = vmatprep.subr.mxu0 0.0
        %2256 = vmatpush1.msra.mxu0 0.0
        %2257 = vmatprep.subr.mxu0 0.0
        %2258 = vmatpush1.msra.mxu0 0.0
        %2259 = vmatprep.subr.mxu0 0.0
        %2260 = vmatpush1.msra.mxu0 0.0
        %2261 = vmatprep.subr.mxu0 0.0
        %2262 = vmatpush1.msra.mxu0 0.0
        %2263 = vmatprep.subr.mxu0 0.0
        %2264 = vmatpush1.msra.mxu0 0.0
        %2265 = vmatprep.subr.mxu0 0.0
        %2266 = vmatpush1.msra.mxu0 0.0
        %2267 = vmatprep.subr.mxu0 0.0
        %2268 = vmatpush1.msra.mxu0 0.0
        %2269 = vmatprep.subr.mxu0 0.0
        %2270 = vmatpush1.msra.mxu0 0.0
        %2271 = vmatprep.subr.mxu0 0.0
        %2272 = vmatpush1.msra.mxu0 0.0
        %2273 = vmatprep.subr.mxu0 0.0
        %2274 = vmatpush1.msra.mxu0 0.0
        %2275 = vmatprep.subr.mxu0 0.0
        %2276 = vmatpush1.msra.mxu0 0.0
        %2277 = vmatprep.subr.mxu0 0.0
        %2278 = vmatpush1.msra.mxu0 0.0
        %2279 = vmatprep.subr.mxu0 0.0
        %2280 = vmatpush1.msra.mxu0 0.0
        %2281 = vmatprep.subr.mxu0 0.0
        %2282 = vmatpush1.msra.mxu0 0.0
        %2283 = vmatprep.subr.mxu0 0.0
        %2284 = vmatpush1.msra.mxu0 0.0
        %2285 = vmatprep.subr.mxu0 0.0
        %2286 = vmatpush1.msra.mxu0 0.0
        %2287 = vmatprep.subr.mxu0 0.0
        %2288 = vmatpush1.msra.mxu0 0.0
        %2289 = vmatprep.subr.mxu0 0.0
        %2290 = vmatpush1.msra.mxu0 0.0
        %2291 = vmatprep.subr.mxu0 0.0
        %2292 = vmatpush1.msra.mxu0 0.0
        %2293 = vmatprep.subr.mxu0 0.0
        %2294 = vmatpush1.msra.mxu0 0.0
        %2295 = vmatprep.subr.mxu0 0.0
        %2296 = vmatpush1.msra.mxu0 0.0
        %2297 = vmatprep.subr.mxu0 0.0
        %2298 = vmatpush1.msra.mxu0 0.0
        %2299 = vmatprep.subr.mxu0 0.0
        %2300 = vmatpush1.msra.mxu0 0.0
        %2301 = vmatprep.subr.mxu0 0.0
        %2302 = vmatpush1.msra.mxu0 0.0
        %2303 = vmatprep.subr.mxu0 0.0
        %2304 = vmatpush1.msra.mxu0 0.0
        %2305 = vmatprep.subr.mxu0 0.0
        %2306 = vmatpush1.msra.mxu0 0.0
        %2307 = vmatprep.subr.mxu0 0.0
        %2308 = vmatpush1.msra.mxu0 0.0
        %2309 = vmatprep.subr.mxu0 0.0
        %2310 = vmatpush1.msra.mxu0 0.0
        %2311 = vmatprep.mubr.f32.mxu0 0.0
        %2312 = vmatmul.mubr.f32.gmra.mrb[0].mxu0 %v2236
        %v2313 = vpop.f32.mrb[0].mxu0
        %v2314 = vadd.f32 %v2218, %v2313
        %v2315 = vpop.f32.mrb[0].mxu0
        %v2316 = vadd.f32 %v2218, %v2315
        %2317 = vmatprep.mubr.f32.mxu0 0.0
        %2318 = vmatmul.mubr.f32.gmra.mrb[0].mxu0 %v2239
        %v2319 = vpop.f32.mrb[0].mxu0
        %v2320 = vadd.f32 %v2223, %v2319
        %v2321 = vpop.f32.mrb[0].mxu0
        %v2322 = vadd.f32 %v2223, %v2321
        %2323 = vmatprep.mubr.f32.mxu0 0.0
        %2324 = vmatmul.mubr.f32.gmra.mrb[0].mxu0 %v2242
        %v2325 = vpop.f32.mrb[0].mxu0
        %v2326 = vadd.f32 %v2228, %v2325
        %v2327 = vpop.f32.mrb[0].mxu0
        %v2328 = vadd.f32 %v2228, %v2327
        %2329 = vmatprep.mubr.f32.mxu0 0.0
        %2330 = vmatmul.mubr.f32.gmra.mrb[0].mxu0 %v2245
        %v2331 = vpop.f32.mrb[0].mxu0
        %v2332 = vadd.f32 %v2233, %v2331
        %v2333 = vpop.f32.mrb[0].mxu0
        %v2334 = vadd.f32 %v2233, %v2333
        %2335 = vdwg.mxu0
        %v2336 = vand.u32 2147483647, %v2314
        %vm2337 = vcmp.le.f32.partialorder %v2336, 0.7853982
        %vm2338 = vcmp.lt.s32.totalorder %v2314, 0
        %v2339 = vand.u32 %v2314, 2139095040
        %v2340 = vshrl.u32 %v2339, 23
        %v2341 = vsub.s32 %v2340, 127
        %v2342 = vand.u32 2147483647, %v2314
        %v2343 = vand.u32 %v2342, 8388607
        %v2344 = vor.u32 %v2343, 8388608
        %v2345 = vsub.s32 0, %v2344
        %v2346 = vadd.s32 %v2341, 1
        %vm2347 = vcmp.gt.s32.totalorder %v2346, 0
        %v2348 = vsel %vm2347, %v2346, 0
        %v2349 = vshrl.u32 %v2348, 5
        %v2350 = vand.u32 %v2348, 31
        %v2351 = vsub.s32 32, %v2350
        %v2352 = vshrl.u32 683565275, %v2351
        %v2353 = vshll.u32 683565275, %v2350
        %v2354 = vshrl.u32 2475754826, %v2351
        %v2355 = vor.u32 %v2353, %v2354
        %v2356 = vshll.u32 2475754826, %v2350
        %v2357 = vshrl.u32 2131351028, %v2351
        %v2358 = vor.u32 %v2356, %v2357
        %v2359 = vshll.u32 2131351028, %v2350
        %v2360 = vshrl.u32 2102212464, %v2351
        %v2361 = vor.u32 %v2359, %v2360
        %v2362 = vshll.u32 2102212464, %v2350
        %v2363 = vshrl.u32 920167782, %v2351
        %v2364 = vor.u32 %v2362, %v2363
        %v2365 = vshll.u32 920167782, %v2350
        %v2366 = vshrl.u32 1326507024, %v2351
        %v2367 = vor.u32 %v2365, %v2366
        %vm2368 = vcmp.lt.s32.totalorder %v2349, 1
        %vm2369 = vcmp.lt.s32.totalorder %v2349, 2
        %vm2370 = vcmp.lt.s32.totalorder %v2349, 3
        %vm2371 = vcmp.lt.s32.totalorder %v2349, 4
        %v2372 = vsel %vm2368, %v2352, %v2355
        %v2373 = vsel %vm2371, %v2361, 2102212464
        %v2374 = vsel %vm2370, %v2358, %v2373
        %v2375 = vsel %vm2369, %v2372, %v2374
        %v2376 = vsel %vm2368, %v2355, %v2358
        %v2377 = vsel %vm2371, %v2364, 920167782
        %v2378 = vsel %vm2370, %v2361, %v2377
        %v2379 = vsel %vm2369, %v2376, %v2378
        %v2380 = vsel %vm2368, %v2358, %v2361
        %v2381 = vsel %vm2371, %v2367, 1326507024
        %v2382 = vsel %vm2370, %v2364, %v2381
        %v2383 = vsel %vm2369, %v2380, %v2382
        %v2384 = vshll.u32 %v2344, 8
        %v2385 = vmul.u32.u64.compose %v2384, %v2383
        %v2386 = vextract.low.u32 %v2385
        %v2387 = vextract.high.u32 %v2385
        %v2388 = vmul.u32.u64.compose %v2384, %v2379
        %v2389 = vextract.low.u32 %v2388
        %v2390 = vextract.high.u32 %v2388
        %v2391 = vmul.u32 %v2384, %v2375
        %v2392 = vadd.s32 %v2387, %v2389
        %vm2393 = vc.u32 %v2387, %v2389
        %v2394 = vadd.s32 %v2390, 1
        %v2395 = vsel %vm2393, %v2394, %v2390
        %v2396 = vadd.s32 %v2391, %v2395
        %v2397 = vadd.s32 %v2396, 536870912
        %v2398 = vshrl.u32 %v2397, 30
        %v2399 = vshll.u32 %v2398, 30
        %v2400 = vsub.s32 %v2396, %v2399
        %vm2401 = vcmp.lt.s32.totalorder %v2400, 0
        %v2402 = vsub.s32 0, %v2400
        %v2403 = vsel %vm2401, %v2402, %v2400
        %v2404 = vclz %v2403
        %v2405 = vsub.s32 %v2404, 2
        %vm2406 = vcmp.gt.s32.totalorder 0, %v2405
        %v2407 = vsel %vm2406, 0, %v2405
        %v2408 = vsub.s32 32, %v2407
        %v2409 = vshll.u32 %v2400, %v2407
        %v2410 = vshrl.u32 %v2392, %v2408
        %v2411 = vor.u32 %v2409, %v2410
        %v2412 = vsub.s32 4294967266, %v2407
        %v2413 = vadd.s32 %v2412, 127
        %v2414 = vshll.u32 %v2413, 23
        %v2415 = vor.u32 4788187, %v2414
        %v2416 = vand.u32 2147483647, %v2415
        %v2418 = vcvt.s32.f32 %v2411
        %v2419 = vmul.f32 %v2418, %v2416
        %v2420 = vxor.u32 %v2419, 2147483648
        %v2421 = vsel %vm2338, %v2420, %v2419
        %v2422 = vsub.s32 4, %v2398
        %v2423 = vsel %vm2338, %v2422, %v2398
        %v2424 = vsel %vm2337, %v2314, %v2421
        %v2425 = vsel %vm2337, 0, %v2423
        %v2426 = vcosq.f32.pop %v2424
        %v2427 = vsinq.f32.pop %v2424
        %vm2428 = vweird.f32 %v2314
        %v2429 = vadd.s32 %v2425, 3
        %v2430 = vand.u32 %v2429, 3
        %vm2431 = vcmp.lt.s32.totalorder %v2430, 2
        %vm2432 = vcmp.eq.s32.totalorder %v2430, 0
        %v2433 = vxor.u32 %v2427, 2147483648
        %v2434 = vsel %vm2432, %v2426, %v2433
        %vm2435 = vcmp.eq.s32.totalorder %v2430, 2
        %v2436 = vxor.u32 %v2426, 2147483648
        %v2437 = vsel %vm2435, %v2436, %v2427
        %v2438 = vsel %vm2431, %v2434, %v2437
        %v2439 = vsel %vm2428, nan, %v2438
        %v2440 = vand.u32 2147483647, %v2316
        %vm2441 = vcmp.le.f32.partialorder %v2440, 0.7853982
        %vm2442 = vcmp.lt.s32.totalorder %v2316, 0
        %v2443 = vand.u32 %v2316, 2139095040
        %v2444 = vshrl.u32 %v2443, 23
        %v2445 = vsub.s32 %v2444, 127
        %v2446 = vand.u32 2147483647, %v2316
        %v2447 = vand.u32 %v2446, 8388607
        %v2448 = vor.u32 %v2447, 8388608
        %v2449 = vsub.s32 0, %v2448
        %v2450 = vadd.s32 %v2445, 1
        %vm2451 = vcmp.gt.s32.totalorder %v2450, 0
        %v2452 = vsel %vm2451, %v2450, 0
        %v2453 = vshrl.u32 %v2452, 5
        %v2454 = vand.u32 %v2452, 31
        %v2455 = vsub.s32 32, %v2454
        %v2456 = vshrl.u32 683565275, %v2455
        %v2457 = vshll.u32 683565275, %v2454
        %v2458 = vshrl.u32 2475754826, %v2455
        %v2459 = vor.u32 %v2457, %v2458
        %v2460 = vshll.u32 2475754826, %v2454
        %v2461 = vshrl.u32 2131351028, %v2455
        %v2462 = vor.u32 %v2460, %v2461
        %v2463 = vshll.u32 2131351028, %v2454
        %v2464 = vshrl.u32 2102212464, %v2455
        %v2465 = vor.u32 %v2463, %v2464
        %v2466 = vshll.u32 2102212464, %v2454
        %v2467 = vshrl.u32 920167782, %v2455
        %v2468 = vor.u32 %v2466, %v2467
        %v2469 = vshll.u32 920167782, %v2454
        %v2470 = vshrl.u32 1326507024, %v2455
        %v2471 = vor.u32 %v2469, %v2470
        %vm2472 = vcmp.lt.s32.totalorder %v2453, 1
        %vm2473 = vcmp.lt.s32.totalorder %v2453, 2
        %vm2474 = vcmp.lt.s32.totalorder %v2453, 3
        %vm2475 = vcmp.lt.s32.totalorder %v2453, 4
        %v2476 = vsel %vm2472, %v2456, %v2459
        %v2477 = vsel %vm2475, %v2465, 2102212464
        %v2478 = vsel %vm2474, %v2462, %v2477
        %v2479 = vsel %vm2473, %v2476, %v2478
        %v2480 = vsel %vm2472, %v2459, %v2462
        %v2481 = vsel %vm2475, %v2468, 920167782
        %v2482 = vsel %vm2474, %v2465, %v2481
        %v2483 = vsel %vm2473, %v2480, %v2482
        %v2484 = vsel %vm2472, %v2462, %v2465
        %v2485 = vsel %vm2475, %v2471, 1326507024
        %v2486 = vsel %vm2474, %v2468, %v2485
        %v2487 = vsel %vm2473, %v2484, %v2486
        %v2488 = vshll.u32 %v2448, 8
        %v2489 = vmul.u32.u64.compose %v2488, %v2487
        %v2490 = vextract.low.u32 %v2489
        %v2491 = vextract.high.u32 %v2489
        %v2492 = vmul.u32.u64.compose %v2488, %v2483
        %v2493 = vextract.low.u32 %v2492
        %v2494 = vextract.high.u32 %v2492
        %v2495 = vmul.u32 %v2488, %v2479
        %v2496 = vadd.s32 %v2491, %v2493
        %vm2497 = vc.u32 %v2491, %v2493
        %v2498 = vadd.s32 %v2494, 1
        %v2499 = vsel %vm2497, %v2498, %v2494
        %v2500 = vadd.s32 %v2495, %v2499
        %v2501 = vadd.s32 %v2500, 536870912
        %v2502 = vshrl.u32 %v2501, 30
        %v2503 = vshll.u32 %v2502, 30
        %v2504 = vsub.s32 %v2500, %v2503
        %vm2505 = vcmp.lt.s32.totalorder %v2504, 0
        %v2506 = vsub.s32 0, %v2504
        %v2507 = vsel %vm2505, %v2506, %v2504
        %v2508 = vclz %v2507
        %v2509 = vsub.s32 %v2508, 2
        %vm2510 = vcmp.gt.s32.totalorder 0, %v2509
        %v2511 = vsel %vm2510, 0, %v2509
        %v2512 = vsub.s32 32, %v2511
        %v2513 = vshll.u32 %v2504, %v2511
        %v2514 = vshrl.u32 %v2496, %v2512
        %v2515 = vor.u32 %v2513, %v2514
        %v2516 = vsub.s32 4294967266, %v2511
        %v2517 = vadd.s32 %v2516, 127
        %v2518 = vshll.u32 %v2517, 23
        %v2519 = vor.u32 4788187, %v2518
        %v2520 = vand.u32 2147483647, %v2519
        %v2522 = vcvt.s32.f32 %v2515
        %v2523 = vmul.f32 %v2522, %v2520
        %v2524 = vxor.u32 %v2523, 2147483648
        %v2525 = vsel %vm2442, %v2524, %v2523
        %v2526 = vsub.s32 4, %v2502
        %v2527 = vsel %vm2442, %v2526, %v2502
        %v2528 = vsel %vm2441, %v2316, %v2525
        %v2529 = vsel %vm2441, 0, %v2527
        %v2530 = vcosq.f32.pop %v2528
        %v2531 = vsinq.f32.pop %v2528
        %vm2532 = vweird.f32 %v2316
        %v2533 = vadd.s32 %v2529, 3
        %v2534 = vand.u32 %v2533, 3
        %vm2535 = vcmp.lt.s32.totalorder %v2534, 2
        %vm2536 = vcmp.eq.s32.totalorder %v2534, 0
        %v2537 = vxor.u32 %v2531, 2147483648
        %v2538 = vsel %vm2536, %v2530, %v2537
        %vm2539 = vcmp.eq.s32.totalorder %v2534, 2
        %v2540 = vxor.u32 %v2530, 2147483648
        %v2541 = vsel %vm2539, %v2540, %v2531
        %v2542 = vsel %vm2535, %v2538, %v2541
        %v2543 = vsel %vm2532, nan, %v2542
        %v2544 = vand.u32 2147483647, %v2320
        %vm2545 = vcmp.le.f32.partialorder %v2544, 0.7853982
        %vm2546 = vcmp.lt.s32.totalorder %v2320, 0
        %v2547 = vand.u32 %v2320, 2139095040
        %v2548 = vshrl.u32 %v2547, 23
        %v2549 = vsub.s32 %v2548, 127
        %v2550 = vand.u32 2147483647, %v2320
        %v2551 = vand.u32 %v2550, 8388607
        %v2552 = vor.u32 %v2551, 8388608
        %v2553 = vsub.s32 0, %v2552
        %v2554 = vadd.s32 %v2549, 1
        %vm2555 = vcmp.gt.s32.totalorder %v2554, 0
        %v2556 = vsel %vm2555, %v2554, 0
        %v2557 = vshrl.u32 %v2556, 5
        %v2558 = vand.u32 %v2556, 31
        %v2559 = vsub.s32 32, %v2558
        %v2560 = vshrl.u32 683565275, %v2559
        %v2561 = vshll.u32 683565275, %v2558
        %v2562 = vshrl.u32 2475754826, %v2559
        %v2563 = vor.u32 %v2561, %v2562
        %v2564 = vshll.u32 2475754826, %v2558
        %v2565 = vshrl.u32 2131351028, %v2559
        %v2566 = vor.u32 %v2564, %v2565
        %v2567 = vshll.u32 2131351028, %v2558
        %v2568 = vshrl.u32 2102212464, %v2559
        %v2569 = vor.u32 %v2567, %v2568
        %v2570 = vshll.u32 2102212464, %v2558
        %v2571 = vshrl.u32 920167782, %v2559
        %v2572 = vor.u32 %v2570, %v2571
        %v2573 = vshll.u32 920167782, %v2558
        %v2574 = vshrl.u32 1326507024, %v2559
        %v2575 = vor.u32 %v2573, %v2574
        %vm2576 = vcmp.lt.s32.totalorder %v2557, 1
        %vm2577 = vcmp.lt.s32.totalorder %v2557, 2
        %vm2578 = vcmp.lt.s32.totalorder %v2557, 3
        %vm2579 = vcmp.lt.s32.totalorder %v2557, 4
        %v2580 = vsel %vm2576, %v2560, %v2563
        %v2581 = vsel %vm2579, %v2569, 2102212464
        %v2582 = vsel %vm2578, %v2566, %v2581
        %v2583 = vsel %vm2577, %v2580, %v2582
        %v2584 = vsel %vm2576, %v2563, %v2566
        %v2585 = vsel %vm2579, %v2572, 920167782
        %v2586 = vsel %vm2578, %v2569, %v2585
        %v2587 = vsel %vm2577, %v2584, %v2586
        %v2588 = vsel %vm2576, %v2566, %v2569
        %v2589 = vsel %vm2579, %v2575, 1326507024
        %v2590 = vsel %vm2578, %v2572, %v2589
        %v2591 = vsel %vm2577, %v2588, %v2590
        %v2592 = vshll.u32 %v2552, 8
        %v2593 = vmul.u32.u64.compose %v2592, %v2591
        %v2594 = vextract.low.u32 %v2593
        %v2595 = vextract.high.u32 %v2593
        %v2596 = vmul.u32.u64.compose %v2592, %v2587
        %v2597 = vextract.low.u32 %v2596
        %v2598 = vextract.high.u32 %v2596
        %v2599 = vmul.u32 %v2592, %v2583
        %v2600 = vadd.s32 %v2595, %v2597
        %vm2601 = vc.u32 %v2595, %v2597
        %v2602 = vadd.s32 %v2598, 1
        %v2603 = vsel %vm2601, %v2602, %v2598
        %v2604 = vadd.s32 %v2599, %v2603
        %v2605 = vadd.s32 %v2604, 536870912
        %v2606 = vshrl.u32 %v2605, 30
        %v2607 = vshll.u32 %v2606, 30
        %v2608 = vsub.s32 %v2604, %v2607
        %vm2609 = vcmp.lt.s32.totalorder %v2608, 0
        %v2610 = vsub.s32 0, %v2608
        %v2611 = vsel %vm2609, %v2610, %v2608
        %v2612 = vclz %v2611
        %v2613 = vsub.s32 %v2612, 2
        %vm2614 = vcmp.gt.s32.totalorder 0, %v2613
        %v2615 = vsel %vm2614, 0, %v2613
        %v2616 = vsub.s32 32, %v2615
        %v2617 = vshll.u32 %v2608, %v2615
        %v2618 = vshrl.u32 %v2600, %v2616
        %v2619 = vor.u32 %v2617, %v2618
        %v2620 = vsub.s32 4294967266, %v2615
        %v2621 = vadd.s32 %v2620, 127
        %v2622 = vshll.u32 %v2621, 23
        %v2623 = vor.u32 4788187, %v2622
        %v2624 = vand.u32 2147483647, %v2623
        %v2626 = vcvt.s32.f32 %v2619
        %v2627 = vmul.f32 %v2626, %v2624
        %v2628 = vxor.u32 %v2627, 2147483648
        %v2629 = vsel %vm2546, %v2628, %v2627
        %v2630 = vsub.s32 4, %v2606
        %v2631 = vsel %vm2546, %v2630, %v2606
        %v2632 = vsel %vm2545, %v2320, %v2629
        %v2633 = vsel %vm2545, 0, %v2631
        %v2634 = vcosq.f32.pop %v2632
        %v2635 = vsinq.f32.pop %v2632
        %vm2636 = vweird.f32 %v2320
        %v2637 = vadd.s32 %v2633, 3
        %v2638 = vand.u32 %v2637, 3
        %vm2639 = vcmp.lt.s32.totalorder %v2638, 2
        %vm2640 = vcmp.eq.s32.totalorder %v2638, 0
        %v2641 = vxor.u32 %v2635, 2147483648
        %v2642 = vsel %vm2640, %v2634, %v2641
        %vm2643 = vcmp.eq.s32.totalorder %v2638, 2
        %v2644 = vxor.u32 %v2634, 2147483648
        %v2645 = vsel %vm2643, %v2644, %v2635
        %v2646 = vsel %vm2639, %v2642, %v2645
        %v2647 = vsel %vm2636, nan, %v2646
        %v2648 = vand.u32 2147483647, %v2322
        %vm2649 = vcmp.le.f32.partialorder %v2648, 0.7853982
        %vm2650 = vcmp.lt.s32.totalorder %v2322, 0
        %v2651 = vand.u32 %v2322, 2139095040
        %v2652 = vshrl.u32 %v2651, 23
        %v2653 = vsub.s32 %v2652, 127
        %v2654 = vand.u32 2147483647, %v2322
        %v2655 = vand.u32 %v2654, 8388607
        %v2656 = vor.u32 %v2655, 8388608
        %v2657 = vsub.s32 0, %v2656
        %v2658 = vadd.s32 %v2653, 1
        %vm2659 = vcmp.gt.s32.totalorder %v2658, 0
        %v2660 = vsel %vm2659, %v2658, 0
        %v2661 = vshrl.u32 %v2660, 5
        %v2662 = vand.u32 %v2660, 31
        %v2663 = vsub.s32 32, %v2662
        %v2664 = vshrl.u32 683565275, %v2663
        %v2665 = vshll.u32 683565275, %v2662
        %v2666 = vshrl.u32 2475754826, %v2663
        %v2667 = vor.u32 %v2665, %v2666
        %v2668 = vshll.u32 2475754826, %v2662
        %v2669 = vshrl.u32 2131351028, %v2663
        %v2670 = vor.u32 %v2668, %v2669
        %v2671 = vshll.u32 2131351028, %v2662
        %v2672 = vshrl.u32 2102212464, %v2663
        %v2673 = vor.u32 %v2671, %v2672
        %v2674 = vshll.u32 2102212464, %v2662
        %v2675 = vshrl.u32 920167782, %v2663
        %v2676 = vor.u32 %v2674, %v2675
        %v2677 = vshll.u32 920167782, %v2662
        %v2678 = vshrl.u32 1326507024, %v2663
        %v2679 = vor.u32 %v2677, %v2678
        %vm2680 = vcmp.lt.s32.totalorder %v2661, 1
        %vm2681 = vcmp.lt.s32.totalorder %v2661, 2
        %vm2682 = vcmp.lt.s32.totalorder %v2661, 3
        %vm2683 = vcmp.lt.s32.totalorder %v2661, 4
        %v2684 = vsel %vm2680, %v2664, %v2667
        %v2685 = vsel %vm2683, %v2673, 2102212464
        %v2686 = vsel %vm2682, %v2670, %v2685
        %v2687 = vsel %vm2681, %v2684, %v2686
        %v2688 = vsel %vm2680, %v2667, %v2670
        %v2689 = vsel %vm2683, %v2676, 920167782
        %v2690 = vsel %vm2682, %v2673, %v2689
        %v2691 = vsel %vm2681, %v2688, %v2690
        %v2692 = vsel %vm2680, %v2670, %v2673
        %v2693 = vsel %vm2683, %v2679, 1326507024
        %v2694 = vsel %vm2682, %v2676, %v2693
        %v2695 = vsel %vm2681, %v2692, %v2694
        %v2696 = vshll.u32 %v2656, 8
        %v2697 = vmul.u32.u64.compose %v2696, %v2695
        %v2698 = vextract.low.u32 %v2697
        %v2699 = vextract.high.u32 %v2697
        %v2700 = vmul.u32.u64.compose %v2696, %v2691
        %v2701 = vextract.low.u32 %v2700
        %v2702 = vextract.high.u32 %v2700
        %v2703 = vmul.u32 %v2696, %v2687
        %v2704 = vadd.s32 %v2699, %v2701
        %vm2705 = vc.u32 %v2699, %v2701
        %v2706 = vadd.s32 %v2702, 1
        %v2707 = vsel %vm2705, %v2706, %v2702
        %v2708 = vadd.s32 %v2703, %v2707
        %v2709 = vadd.s32 %v2708, 536870912
        %v2710 = vshrl.u32 %v2709, 30
        %v2711 = vshll.u32 %v2710, 30
        %v2712 = vsub.s32 %v2708, %v2711
        %vm2713 = vcmp.lt.s32.totalorder %v2712, 0
        %v2714 = vsub.s32 0, %v2712
        %v2715 = vsel %vm2713, %v2714, %v2712
        %v2716 = vclz %v2715
        %v2717 = vsub.s32 %v2716, 2
        %vm2718 = vcmp.gt.s32.totalorder 0, %v2717
        %v2719 = vsel %vm2718, 0, %v2717
        %v2720 = vsub.s32 32, %v2719
        %v2721 = vshll.u32 %v2712, %v2719
        %v2722 = vshrl.u32 %v2704, %v2720
        %v2723 = vor.u32 %v2721, %v2722
        %v2724 = vsub.s32 4294967266, %v2719
        %v2725 = vadd.s32 %v2724, 127
        %v2726 = vshll.u32 %v2725, 23
        %v2727 = vor.u32 4788187, %v2726
        %v2728 = vand.u32 2147483647, %v2727
        %v2730 = vcvt.s32.f32 %v2723
        %v2731 = vmul.f32 %v2730, %v2728
        %v2732 = vxor.u32 %v2731, 2147483648
        %v2733 = vsel %vm2650, %v2732, %v2731
        %v2734 = vsub.s32 4, %v2710
        %v2735 = vsel %vm2650, %v2734, %v2710
        %v2736 = vsel %vm2649, %v2322, %v2733
        %v2737 = vsel %vm2649, 0, %v2735
        %v2738 = vcosq.f32.pop %v2736
        %v2739 = vsinq.f32.pop %v2736
        %vm2740 = vweird.f32 %v2322
        %v2741 = vadd.s32 %v2737, 3
        %v2742 = vand.u32 %v2741, 3
        %vm2743 = vcmp.lt.s32.totalorder %v2742, 2
        %vm2744 = vcmp.eq.s32.totalorder %v2742, 0
        %v2745 = vxor.u32 %v2739, 2147483648
        %v2746 = vsel %vm2744, %v2738, %v2745
        %vm2747 = vcmp.eq.s32.totalorder %v2742, 2
        %v2748 = vxor.u32 %v2738, 2147483648
        %v2749 = vsel %vm2747, %v2748, %v2739
        %v2750 = vsel %vm2743, %v2746, %v2749
        %v2751 = vsel %vm2740, nan, %v2750
        %v2752 = vand.u32 2147483647, %v2326
        %vm2753 = vcmp.le.f32.partialorder %v2752, 0.7853982
        %vm2754 = vcmp.lt.s32.totalorder %v2326, 0
        %v2755 = vand.u32 %v2326, 2139095040
        %v2756 = vshrl.u32 %v2755, 23
        %v2757 = vsub.s32 %v2756, 127
        %v2758 = vand.u32 2147483647, %v2326
        %v2759 = vand.u32 %v2758, 8388607
        %v2760 = vor.u32 %v2759, 8388608
        %v2761 = vsub.s32 0, %v2760
        %v2762 = vadd.s32 %v2757, 1
        %vm2763 = vcmp.gt.s32.totalorder %v2762, 0
        %v2764 = vsel %vm2763, %v2762, 0
        %v2765 = vshrl.u32 %v2764, 5
        %v2766 = vand.u32 %v2764, 31
        %v2767 = vsub.s32 32, %v2766
        %v2768 = vshrl.u32 683565275, %v2767
        %v2769 = vshll.u32 683565275, %v2766
        %v2770 = vshrl.u32 2475754826, %v2767
        %v2771 = vor.u32 %v2769, %v2770
        %v2772 = vshll.u32 2475754826, %v2766
        %v2773 = vshrl.u32 2131351028, %v2767
        %v2774 = vor.u32 %v2772, %v2773
        %v2775 = vshll.u32 2131351028, %v2766
        %v2776 = vshrl.u32 2102212464, %v2767
        %v2777 = vor.u32 %v2775, %v2776
        %v2778 = vshll.u32 2102212464, %v2766
        %v2779 = vshrl.u32 920167782, %v2767
        %v2780 = vor.u32 %v2778, %v2779
        %v2781 = vshll.u32 920167782, %v2766
        %v2782 = vshrl.u32 1326507024, %v2767
        %v2783 = vor.u32 %v2781, %v2782
        %vm2784 = vcmp.lt.s32.totalorder %v2765, 1
        %vm2785 = vcmp.lt.s32.totalorder %v2765, 2
        %vm2786 = vcmp.lt.s32.totalorder %v2765, 3
        %vm2787 = vcmp.lt.s32.totalorder %v2765, 4
        %v2788 = vsel %vm2784, %v2768, %v2771
        %v2789 = vsel %vm2787, %v2777, 2102212464
        %v2790 = vsel %vm2786, %v2774, %v2789
        %v2791 = vsel %vm2785, %v2788, %v2790
        %v2792 = vsel %vm2784, %v2771, %v2774
        %v2793 = vsel %vm2787, %v2780, 920167782
        %v2794 = vsel %vm2786, %v2777, %v2793
        %v2795 = vsel %vm2785, %v2792, %v2794
        %v2796 = vsel %vm2784, %v2774, %v2777
        %v2797 = vsel %vm2787, %v2783, 1326507024
        %v2798 = vsel %vm2786, %v2780, %v2797
        %v2799 = vsel %vm2785, %v2796, %v2798
        %v2800 = vshll.u32 %v2760, 8
        %v2801 = vmul.u32.u64.compose %v2800, %v2799
        %v2802 = vextract.low.u32 %v2801
        %v2803 = vextract.high.u32 %v2801
        %v2804 = vmul.u32.u64.compose %v2800, %v2795
        %v2805 = vextract.low.u32 %v2804
        %v2806 = vextract.high.u32 %v2804
        %v2807 = vmul.u32 %v2800, %v2791
        %v2808 = vadd.s32 %v2803, %v2805
        %vm2809 = vc.u32 %v2803, %v2805
        %v2810 = vadd.s32 %v2806, 1
        %v2811 = vsel %vm2809, %v2810, %v2806
        %v2812 = vadd.s32 %v2807, %v2811
        %v2813 = vadd.s32 %v2812, 536870912
        %v2814 = vshrl.u32 %v2813, 30
        %v2815 = vshll.u32 %v2814, 30
        %v2816 = vsub.s32 %v2812, %v2815
        %vm2817 = vcmp.lt.s32.totalorder %v2816, 0
        %v2818 = vsub.s32 0, %v2816
        %v2819 = vsel %vm2817, %v2818, %v2816
        %v2820 = vclz %v2819
        %v2821 = vsub.s32 %v2820, 2
        %vm2822 = vcmp.gt.s32.totalorder 0, %v2821
        %v2823 = vsel %vm2822, 0, %v2821
        %v2824 = vsub.s32 32, %v2823
        %v2825 = vshll.u32 %v2816, %v2823
        %v2826 = vshrl.u32 %v2808, %v2824
        %v2827 = vor.u32 %v2825, %v2826
        %v2828 = vsub.s32 4294967266, %v2823
        %v2829 = vadd.s32 %v2828, 127
        %v2830 = vshll.u32 %v2829, 23
        %v2831 = vor.u32 4788187, %v2830
        %v2832 = vand.u32 2147483647, %v2831
        %v2834 = vcvt.s32.f32 %v2827
        %v2835 = vmul.f32 %v2834, %v2832
        %v2836 = vxor.u32 %v2835, 2147483648
        %v2837 = vsel %vm2754, %v2836, %v2835
        %v2838 = vsub.s32 4, %v2814
        %v2839 = vsel %vm2754, %v2838, %v2814
        %v2840 = vsel %vm2753, %v2326, %v2837
        %v2841 = vsel %vm2753, 0, %v2839
        %v2842 = vcosq.f32.pop %v2840
        %v2843 = vsinq.f32.pop %v2840
        %vm2844 = vweird.f32 %v2326
        %v2845 = vadd.s32 %v2841, 3
        %v2846 = vand.u32 %v2845, 3
        %vm2847 = vcmp.lt.s32.totalorder %v2846, 2
        %vm2848 = vcmp.eq.s32.totalorder %v2846, 0
        %v2849 = vxor.u32 %v2843, 2147483648
        %v2850 = vsel %vm2848, %v2842, %v2849
        %vm2851 = vcmp.eq.s32.totalorder %v2846, 2
        %v2852 = vxor.u32 %v2842, 2147483648
        %v2853 = vsel %vm2851, %v2852, %v2843
        %v2854 = vsel %vm2847, %v2850, %v2853
        %v2855 = vsel %vm2844, nan, %v2854
        %v2856 = vand.u32 2147483647, %v2328
        %vm2857 = vcmp.le.f32.partialorder %v2856, 0.7853982
        %vm2858 = vcmp.lt.s32.totalorder %v2328, 0
        %v2859 = vand.u32 %v2328, 2139095040
        %v2860 = vshrl.u32 %v2859, 23
        %v2861 = vsub.s32 %v2860, 127
        %v2862 = vand.u32 2147483647, %v2328
        %v2863 = vand.u32 %v2862, 8388607
        %v2864 = vor.u32 %v2863, 8388608
        %v2865 = vsub.s32 0, %v2864
        %v2866 = vadd.s32 %v2861, 1
        %vm2867 = vcmp.gt.s32.totalorder %v2866, 0
        %v2868 = vsel %vm2867, %v2866, 0
        %v2869 = vshrl.u32 %v2868, 5
        %v2870 = vand.u32 %v2868, 31
        %v2871 = vsub.s32 32, %v2870
        %v2872 = vshrl.u32 683565275, %v2871
        %v2873 = vshll.u32 683565275, %v2870
        %v2874 = vshrl.u32 2475754826, %v2871
        %v2875 = vor.u32 %v2873, %v2874
        %v2876 = vshll.u32 2475754826, %v2870
        %v2877 = vshrl.u32 2131351028, %v2871
        %v2878 = vor.u32 %v2876, %v2877
        %v2879 = vshll.u32 2131351028, %v2870
        %v2880 = vshrl.u32 2102212464, %v2871
        %v2881 = vor.u32 %v2879, %v2880
        %v2882 = vshll.u32 2102212464, %v2870
        %v2883 = vshrl.u32 920167782, %v2871
        %v2884 = vor.u32 %v2882, %v2883
        %v2885 = vshll.u32 920167782, %v2870
        %v2886 = vshrl.u32 1326507024, %v2871
        %v2887 = vor.u32 %v2885, %v2886
        %vm2888 = vcmp.lt.s32.totalorder %v2869, 1
        %vm2889 = vcmp.lt.s32.totalorder %v2869, 2
        %vm2890 = vcmp.lt.s32.totalorder %v2869, 3
        %vm2891 = vcmp.lt.s32.totalorder %v2869, 4
        %v2892 = vsel %vm2888, %v2872, %v2875
        %v2893 = vsel %vm2891, %v2881, 2102212464
        %v2894 = vsel %vm2890, %v2878, %v2893
        %v2895 = vsel %vm2889, %v2892, %v2894
        %v2896 = vsel %vm2888, %v2875, %v2878
        %v2897 = vsel %vm2891, %v2884, 920167782
        %v2898 = vsel %vm2890, %v2881, %v2897
        %v2899 = vsel %vm2889, %v2896, %v2898
        %v2900 = vsel %vm2888, %v2878, %v2881
        %v2901 = vsel %vm2891, %v2887, 1326507024
        %v2902 = vsel %vm2890, %v2884, %v2901
        %v2903 = vsel %vm2889, %v2900, %v2902
        %v2904 = vshll.u32 %v2864, 8
        %v2905 = vmul.u32.u64.compose %v2904, %v2903
        %v2906 = vextract.low.u32 %v2905
        %v2907 = vextract.high.u32 %v2905
        %v2908 = vmul.u32.u64.compose %v2904, %v2899
        %v2909 = vextract.low.u32 %v2908
        %v2910 = vextract.high.u32 %v2908
        %v2911 = vmul.u32 %v2904, %v2895
        %v2912 = vadd.s32 %v2907, %v2909
        %vm2913 = vc.u32 %v2907, %v2909
        %v2914 = vadd.s32 %v2910, 1
        %v2915 = vsel %vm2913, %v2914, %v2910
        %v2916 = vadd.s32 %v2911, %v2915
        %v2917 = vadd.s32 %v2916, 536870912
        %v2918 = vshrl.u32 %v2917, 30
        %v2919 = vshll.u32 %v2918, 30
        %v2920 = vsub.s32 %v2916, %v2919
        %vm2921 = vcmp.lt.s32.totalorder %v2920, 0
        %v2922 = vsub.s32 0, %v2920
        %v2923 = vsel %vm2921, %v2922, %v2920
        %v2924 = vclz %v2923
        %v2925 = vsub.s32 %v2924, 2
        %vm2926 = vcmp.gt.s32.totalorder 0, %v2925
        %v2927 = vsel %vm2926, 0, %v2925
        %v2928 = vsub.s32 32, %v2927
        %v2929 = vshll.u32 %v2920, %v2927
        %v2930 = vshrl.u32 %v2912, %v2928
        %v2931 = vor.u32 %v2929, %v2930
        %v2932 = vsub.s32 4294967266, %v2927
        %v2933 = vadd.s32 %v2932, 127
        %v2934 = vshll.u32 %v2933, 23
        %v2935 = vor.u32 4788187, %v2934
        %v2936 = vand.u32 2147483647, %v2935
        %v2938 = vcvt.s32.f32 %v2931
        %v2939 = vmul.f32 %v2938, %v2936
        %v2940 = vxor.u32 %v2939, 2147483648
        %v2941 = vsel %vm2858, %v2940, %v2939
        %v2942 = vsub.s32 4, %v2918
        %v2943 = vsel %vm2858, %v2942, %v2918
        %v2944 = vsel %vm2857, %v2328, %v2941
        %v2945 = vsel %vm2857, 0, %v2943
        %v2946 = vcosq.f32.pop %v2944
        %v2947 = vsinq.f32.pop %v2944
        %vm2948 = vweird.f32 %v2328
        %v2949 = vadd.s32 %v2945, 3
        %v2950 = vand.u32 %v2949, 3
        %vm2951 = vcmp.lt.s32.totalorder %v2950, 2
        %vm2952 = vcmp.eq.s32.totalorder %v2950, 0
        %v2953 = vxor.u32 %v2947, 2147483648
        %v2954 = vsel %vm2952, %v2946, %v2953
        %vm2955 = vcmp.eq.s32.totalorder %v2950, 2
        %v2956 = vxor.u32 %v2946, 2147483648
        %v2957 = vsel %vm2955, %v2956, %v2947
        %v2958 = vsel %vm2951, %v2954, %v2957
        %v2959 = vsel %vm2948, nan, %v2958
        %v2960 = vand.u32 2147483647, %v2332
        %vm2961 = vcmp.le.f32.partialorder %v2960, 0.7853982
        %vm2962 = vcmp.lt.s32.totalorder %v2332, 0
        %v2963 = vand.u32 %v2332, 2139095040
        %v2964 = vshrl.u32 %v2963, 23
        %v2965 = vsub.s32 %v2964, 127
        %v2966 = vand.u32 2147483647, %v2332
        %v2967 = vand.u32 %v2966, 8388607
        %v2968 = vor.u32 %v2967, 8388608
        %v2969 = vsub.s32 0, %v2968
        %v2970 = vadd.s32 %v2965, 1
        %vm2971 = vcmp.gt.s32.totalorder %v2970, 0
        %v2972 = vsel %vm2971, %v2970, 0
        %v2973 = vshrl.u32 %v2972, 5
        %v2974 = vand.u32 %v2972, 31
        %v2975 = vsub.s32 32, %v2974
        %v2976 = vshrl.u32 683565275, %v2975
        %v2977 = vshll.u32 683565275, %v2974
        %v2978 = vshrl.u32 2475754826, %v2975
        %v2979 = vor.u32 %v2977, %v2978
        %v2980 = vshll.u32 2475754826, %v2974
        %v2981 = vshrl.u32 2131351028, %v2975
        %v2982 = vor.u32 %v2980, %v2981
        %v2983 = vshll.u32 2131351028, %v2974
        %v2984 = vshrl.u32 2102212464, %v2975
        %v2985 = vor.u32 %v2983, %v2984
        %v2986 = vshll.u32 2102212464, %v2974
        %v2987 = vshrl.u32 920167782, %v2975
        %v2988 = vor.u32 %v2986, %v2987
        %v2989 = vshll.u32 920167782, %v2974
        %v2990 = vshrl.u32 1326507024, %v2975
        %v2991 = vor.u32 %v2989, %v2990
        %vm2992 = vcmp.lt.s32.totalorder %v2973, 1
        %vm2993 = vcmp.lt.s32.totalorder %v2973, 2
        %vm2994 = vcmp.lt.s32.totalorder %v2973, 3
        %vm2995 = vcmp.lt.s32.totalorder %v2973, 4
        %v2996 = vsel %vm2992, %v2976, %v2979
        %v2997 = vsel %vm2995, %v2985, 2102212464
        %v2998 = vsel %vm2994, %v2982, %v2997
        %v2999 = vsel %vm2993, %v2996, %v2998
        %v3000 = vsel %vm2992, %v2979, %v2982
        %v3001 = vsel %vm2995, %v2988, 920167782
        %v3002 = vsel %vm2994, %v2985, %v3001
        %v3003 = vsel %vm2993, %v3000, %v3002
        %v3004 = vsel %vm2992, %v2982, %v2985
        %v3005 = vsel %vm2995, %v2991, 1326507024
        %v3006 = vsel %vm2994, %v2988, %v3005
        %v3007 = vsel %vm2993, %v3004, %v3006
        %v3008 = vshll.u32 %v2968, 8
        %v3009 = vmul.u32.u64.compose %v3008, %v3007
        %v3010 = vextract.low.u32 %v3009
        %v3011 = vextract.high.u32 %v3009
        %v3012 = vmul.u32.u64.compose %v3008, %v3003
        %v3013 = vextract.low.u32 %v3012
        %v3014 = vextract.high.u32 %v3012
        %v3015 = vmul.u32 %v3008, %v2999
        %v3016 = vadd.s32 %v3011, %v3013
        %vm3017 = vc.u32 %v3011, %v3013
        %v3018 = vadd.s32 %v3014, 1
        %v3019 = vsel %vm3017, %v3018, %v3014
        %v3020 = vadd.s32 %v3015, %v3019
        %v3021 = vadd.s32 %v3020, 536870912
        %v3022 = vshrl.u32 %v3021, 30
        %v3023 = vshll.u32 %v3022, 30
        %v3024 = vsub.s32 %v3020, %v3023
        %vm3025 = vcmp.lt.s32.totalorder %v3024, 0
        %v3026 = vsub.s32 0, %v3024
        %v3027 = vsel %vm3025, %v3026, %v3024
        %v3028 = vclz %v3027
        %v3029 = vsub.s32 %v3028, 2
        %vm3030 = vcmp.gt.s32.totalorder 0, %v3029
        %v3031 = vsel %vm3030, 0, %v3029
        %v3032 = vsub.s32 32, %v3031
        %v3033 = vshll.u32 %v3024, %v3031
        %v3034 = vshrl.u32 %v3016, %v3032
        %v3035 = vor.u32 %v3033, %v3034
        %v3036 = vsub.s32 4294967266, %v3031
        %v3037 = vadd.s32 %v3036, 127
        %v3038 = vshll.u32 %v3037, 23
        %v3039 = vor.u32 4788187, %v3038
        %v3040 = vand.u32 2147483647, %v3039
        %v3042 = vcvt.s32.f32 %v3035
        %v3043 = vmul.f32 %v3042, %v3040
        %v3044 = vxor.u32 %v3043, 2147483648
        %v3045 = vsel %vm2962, %v3044, %v3043
        %v3046 = vsub.s32 4, %v3022
        %v3047 = vsel %vm2962, %v3046, %v3022
        %v3048 = vsel %vm2961, %v2332, %v3045
        %v3049 = vsel %vm2961, 0, %v3047
        %v3050 = vcosq.f32.pop %v3048
        %v3051 = vsinq.f32.pop %v3048
        %vm3052 = vweird.f32 %v2332
        %v3053 = vadd.s32 %v3049, 3
        %v3054 = vand.u32 %v3053, 3
        %vm3055 = vcmp.lt.s32.totalorder %v3054, 2
        %vm3056 = vcmp.eq.s32.totalorder %v3054, 0
        %v3057 = vxor.u32 %v3051, 2147483648
        %v3058 = vsel %vm3056, %v3050, %v3057
        %vm3059 = vcmp.eq.s32.totalorder %v3054, 2
        %v3060 = vxor.u32 %v3050, 2147483648
        %v3061 = vsel %vm3059, %v3060, %v3051
        %v3062 = vsel %vm3055, %v3058, %v3061
        %v3063 = vsel %vm3052, nan, %v3062
        %v3064 = vand.u32 2147483647, %v2334
        %vm3065 = vcmp.le.f32.partialorder %v3064, 0.7853982
        %vm3066 = vcmp.lt.s32.totalorder %v2334, 0
        %v3067 = vand.u32 %v2334, 2139095040
        %v3068 = vshrl.u32 %v3067, 23
        %v3069 = vsub.s32 %v3068, 127
        %v3070 = vand.u32 2147483647, %v2334
        %v3071 = vand.u32 %v3070, 8388607
        %v3072 = vor.u32 %v3071, 8388608
        %v3073 = vsub.s32 0, %v3072
        %v3074 = vadd.s32 %v3069, 1
        %vm3075 = vcmp.gt.s32.totalorder %v3074, 0
        %v3076 = vsel %vm3075, %v3074, 0
        %v3077 = vshrl.u32 %v3076, 5
        %v3078 = vand.u32 %v3076, 31
        %v3079 = vsub.s32 32, %v3078
        %v3080 = vshrl.u32 683565275, %v3079
        %v3081 = vshll.u32 683565275, %v3078
        %v3082 = vshrl.u32 2475754826, %v3079
        %v3083 = vor.u32 %v3081, %v3082
        %v3084 = vshll.u32 2475754826, %v3078
        %v3085 = vshrl.u32 2131351028, %v3079
        %v3086 = vor.u32 %v3084, %v3085
        %v3087 = vshll.u32 2131351028, %v3078
        %v3088 = vshrl.u32 2102212464, %v3079
        %v3089 = vor.u32 %v3087, %v3088
        %v3090 = vshll.u32 2102212464, %v3078
        %v3091 = vshrl.u32 920167782, %v3079
        %v3092 = vor.u32 %v3090, %v3091
        %v3093 = vshll.u32 920167782, %v3078
        %v3094 = vshrl.u32 1326507024, %v3079
        %v3095 = vor.u32 %v3093, %v3094
        %vm3096 = vcmp.lt.s32.totalorder %v3077, 1
        %vm3097 = vcmp.lt.s32.totalorder %v3077, 2
        %vm3098 = vcmp.lt.s32.totalorder %v3077, 3
        %vm3099 = vcmp.lt.s32.totalorder %v3077, 4
        %v3100 = vsel %vm3096, %v3080, %v3083
        %v3101 = vsel %vm3099, %v3089, 2102212464
        %v3102 = vsel %vm3098, %v3086, %v3101
        %v3103 = vsel %vm3097, %v3100, %v3102
        %v3104 = vsel %vm3096, %v3083, %v3086
        %v3105 = vsel %vm3099, %v3092, 920167782
        %v3106 = vsel %vm3098, %v3089, %v3105
        %v3107 = vsel %vm3097, %v3104, %v3106
        %v3108 = vsel %vm3096, %v3086, %v3089
        %v3109 = vsel %vm3099, %v3095, 1326507024
        %v3110 = vsel %vm3098, %v3092, %v3109
        %v3111 = vsel %vm3097, %v3108, %v3110
        %v3112 = vshll.u32 %v3072, 8
        %v3113 = vmul.u32.u64.compose %v3112, %v3111
        %v3114 = vextract.low.u32 %v3113
        %v3115 = vextract.high.u32 %v3113
        %v3116 = vmul.u32.u64.compose %v3112, %v3107
        %v3117 = vextract.low.u32 %v3116
        %v3118 = vextract.high.u32 %v3116
        %v3119 = vmul.u32 %v3112, %v3103
        %v3120 = vadd.s32 %v3115, %v3117
        %vm3121 = vc.u32 %v3115, %v3117
        %v3122 = vadd.s32 %v3118, 1
        %v3123 = vsel %vm3121, %v3122, %v3118
        %v3124 = vadd.s32 %v3119, %v3123
        %v3125 = vadd.s32 %v3124, 536870912
        %v3126 = vshrl.u32 %v3125, 30
        %v3127 = vshll.u32 %v3126, 30
        %v3128 = vsub.s32 %v3124, %v3127
        %vm3129 = vcmp.lt.s32.totalorder %v3128, 0
        %v3130 = vsub.s32 0, %v3128
        %v3131 = vsel %vm3129, %v3130, %v3128
        %v3132 = vclz %v3131
        %v3133 = vsub.s32 %v3132, 2
        %vm3134 = vcmp.gt.s32.totalorder 0, %v3133
        %v3135 = vsel %vm3134, 0, %v3133
        %v3136 = vsub.s32 32, %v3135
        %v3137 = vshll.u32 %v3128, %v3135
        %v3138 = vshrl.u32 %v3120, %v3136
        %v3139 = vor.u32 %v3137, %v3138
        %v3140 = vsub.s32 4294967266, %v3135
        %v3141 = vadd.s32 %v3140, 127
        %v3142 = vshll.u32 %v3141, 23
        %v3143 = vor.u32 4788187, %v3142
        %v3144 = vand.u32 2147483647, %v3143
        %v3146 = vcvt.s32.f32 %v3139
        %v3147 = vmul.f32 %v3146, %v3144
        %v3148 = vxor.u32 %v3147, 2147483648
        %v3149 = vsel %vm3066, %v3148, %v3147
        %v3150 = vsub.s32 4, %v3126
        %v3151 = vsel %vm3066, %v3150, %v3126
        %v3152 = vsel %vm3065, %v2334, %v3149
        %v3153 = vsel %vm3065, 0, %v3151
        %v3154 = vcosq.f32.pop %v3152
        %v3155 = vsinq.f32.pop %v3152
        %vm3156 = vweird.f32 %v2334
        %v3157 = vadd.s32 %v3153, 3
        %v3158 = vand.u32 %v3157, 3
        %vm3159 = vcmp.lt.s32.totalorder %v3158, 2
        %vm3160 = vcmp.eq.s32.totalorder %v3158, 0
        %v3161 = vxor.u32 %v3155, 2147483648
        %v3162 = vsel %vm3160, %v3154, %v3161
        %vm3163 = vcmp.eq.s32.totalorder %v3158, 2
        %v3164 = vxor.u32 %v3154, 2147483648
        %v3165 = vsel %vm3163, %v3164, %v3155
        %v3166 = vsel %vm3159, %v3162, %v3165
        %v3167 = vsel %vm3156, nan, %v3166
        %s3168 = scalar_lea.vmem %s2, 64
        %v3169 = vld [vmem:[%s3168] sm:$0xff]
        %v3170 = vld [vmem:[%s3168 + $0x8] sm:$0xff]
        %v3171 = vld [vmem:[%s3168 + $0x10] sm:$0xff]
        %v3172 = vld [vmem:[%s3168 + $0x18] sm:$0xff]
        %s3173 = scalar_lea.vmem %s3, 64
        %v3174 = vld [vmem:[%s3173] sm:$0xff]
        %v3175 = vld [vmem:[%s3173 + $0x8] sm:$0xff]
        %v3176 = vld [vmem:[%s3173 + $0x10] sm:$0xff]
        %v3177 = vld [vmem:[%s3173 + $0x18] sm:$0xff]
        %3179 = vset.pattern.permute.xlu0 0
        %3180 = vperm.xlu0 %3179, %v3174
        %v3181 = vpop.permute.xlu0 %3180
        %3184 = vset.pattern.permute.xlu0 0
        %3185 = vperm.xlu0 %3184, %v3175
        %v3186 = vpop.permute.xlu0 %3185
        %3189 = vset.pattern.permute.xlu0 0
        %3190 = vperm.xlu0 %3189, %v3176
        %v3191 = vpop.permute.xlu0 %3190
        %3194 = vset.pattern.permute.xlu0 0
        %3195 = vperm.xlu0 %3194, %v3177
        %v3196 = vpop.permute.xlu0 %3195
        %v3199 = vsel %vm1271, %v3169, 0
        %v3202 = vsel %vm1271, %v3170, 0
        %v3205 = vsel %vm1271, %v3171, 0
        %v3208 = vsel %vm1271, %v3172, 0
        %3210 = vmatprep.subr.mxu0 %v2543
        %3211 = vmatpush1.msra.mxu0 %v2439
        %3212 = vmatprep.subr.mxu0 %v2751
        %3213 = vmatpush1.msra.mxu0 %v2647
        %3214 = vmatprep.subr.mxu0 %v2959
        %3215 = vmatpush1.msra.mxu0 %v2855
        %3216 = vmatprep.subr.mxu0 %v3167
        %3217 = vmatpush1.msra.mxu0 %v3063
        %3218 = vmatprep.subr.mxu0 0.0
        %3219 = vmatpush1.msra.mxu0 0.0
        %3220 = vmatprep.subr.mxu0 0.0
        %3221 = vmatpush1.msra.mxu0 0.0
        %3222 = vmatprep.subr.mxu0 0.0
        %3223 = vmatpush1.msra.mxu0 0.0
        %3224 = vmatprep.subr.mxu0 0.0
        %3225 = vmatpush1.msra.mxu0 0.0
        %3226 = vmatprep.subr.mxu0 0.0
        %3227 = vmatpush1.msra.mxu0 0.0
        %3228 = vmatprep.subr.mxu0 0.0
        %3229 = vmatpush1.msra.mxu0 0.0
        %3230 = vmatprep.subr.mxu0 0.0
        %3231 = vmatpush1.msra.mxu0 0.0
        %3232 = vmatprep.subr.mxu0 0.0
        %3233 = vmatpush1.msra.mxu0 0.0
        %3234 = vmatprep.subr.mxu0 0.0
        %3235 = vmatpush1.msra.mxu0 0.0
        %3236 = vmatprep.subr.mxu0 0.0
        %3237 = vmatpush1.msra.mxu0 0.0
        %3238 = vmatprep.subr.mxu0 0.0
        %3239 = vmatpush1.msra.mxu0 0.0
        %3240 = vmatprep.subr.mxu0 0.0
        %3241 = vmatpush1.msra.mxu0 0.0
        %3242 = vmatprep.subr.mxu0 0.0
        %3243 = vmatpush1.msra.mxu0 0.0
        %3244 = vmatprep.subr.mxu0 0.0
        %3245 = vmatpush1.msra.mxu0 0.0
        %3246 = vmatprep.subr.mxu0 0.0
        %3247 = vmatpush1.msra.mxu0 0.0
        %3248 = vmatprep.subr.mxu0 0.0
        %3249 = vmatpush1.msra.mxu0 0.0
        %3250 = vmatprep.subr.mxu0 0.0
        %3251 = vmatpush1.msra.mxu0 0.0
        %3252 = vmatprep.subr.mxu0 0.0
        %3253 = vmatpush1.msra.mxu0 0.0
        %3254 = vmatprep.subr.mxu0 0.0
        %3255 = vmatpush1.msra.mxu0 0.0
        %3256 = vmatprep.subr.mxu0 0.0
        %3257 = vmatpush1.msra.mxu0 0.0
        %3258 = vmatprep.subr.mxu0 0.0
        %3259 = vmatpush1.msra.mxu0 0.0
        %3260 = vmatprep.subr.mxu0 0.0
        %3261 = vmatpush1.msra.mxu0 0.0
        %3262 = vmatprep.subr.mxu0 0.0
        %3263 = vmatpush1.msra.mxu0 0.0
        %3264 = vmatprep.subr.mxu0 0.0
        %3265 = vmatpush1.msra.mxu0 0.0
        %3266 = vmatprep.subr.mxu0 0.0
        %3267 = vmatpush1.msra.mxu0 0.0
        %3268 = vmatprep.subr.mxu0 0.0
        %3269 = vmatpush1.msra.mxu0 0.0
        %3270 = vmatprep.subr.mxu0 0.0
        %3271 = vmatpush1.msra.mxu0 0.0
        %3272 = vmatprep.subr.mxu0 0.0
        %3273 = vmatpush1.msra.mxu0 0.0
        %3274 = vmatprep.mubr.f32.mxu0 0.0
        %3275 = vmatmul.mubr.f32.gmra.mrb[0].mxu0 %v3199
        %v3276 = vpop.f32.mrb[0].mxu0
        %v3277 = vadd.f32 %v3181, %v3276
        %v3278 = vpop.f32.mrb[0].mxu0
        %v3279 = vadd.f32 %v3181, %v3278
        %3280 = vmatprep.mubr.f32.mxu0 0.0
        %3281 = vmatmul.mubr.f32.gmra.mrb[0].mxu0 %v3202
        %v3282 = vpop.f32.mrb[0].mxu0
        %v3283 = vadd.f32 %v3186, %v3282
        %v3284 = vpop.f32.mrb[0].mxu0
        %v3285 = vadd.f32 %v3186, %v3284
        %3286 = vmatprep.mubr.f32.mxu0 0.0
        %3287 = vmatmul.mubr.f32.gmra.mrb[0].mxu0 %v3205
        %v3288 = vpop.f32.mrb[0].mxu0
        %v3289 = vadd.f32 %v3191, %v3288
        %v3290 = vpop.f32.mrb[0].mxu0
        %v3291 = vadd.f32 %v3191, %v3290
        %3292 = vmatprep.mubr.f32.mxu0 0.0
        %3293 = vmatmul.mubr.f32.gmra.mrb[0].mxu0 %v3208
        %v3294 = vpop.f32.mrb[0].mxu0
        %v3295 = vadd.f32 %v3196, %v3294
        %v3296 = vpop.f32.mrb[0].mxu0
        %v3297 = vadd.f32 %v3196, %v3296
        %3298 = vdwg.mxu0
        %v3299 = vand.u32 2147483647, %v3277
        %vm3300 = vcmp.le.f32.partialorder %v3299, 0.7853982
        %vm3301 = vcmp.lt.s32.totalorder %v3277, 0
        %v3302 = vand.u32 %v3277, 2139095040
        %v3303 = vshrl.u32 %v3302, 23
        %v3304 = vsub.s32 %v3303, 127
        %v3305 = vand.u32 2147483647, %v3277
        %v3306 = vand.u32 %v3305, 8388607
        %v3307 = vor.u32 %v3306, 8388608
        %v3308 = vsub.s32 0, %v3307
        %v3309 = vadd.s32 %v3304, 1
        %vm3310 = vcmp.gt.s32.totalorder %v3309, 0
        %v3311 = vsel %vm3310, %v3309, 0
        %v3312 = vshrl.u32 %v3311, 5
        %v3313 = vand.u32 %v3311, 31
        %v3314 = vsub.s32 32, %v3313
        %v3315 = vshrl.u32 683565275, %v3314
        %v3316 = vshll.u32 683565275, %v3313
        %v3317 = vshrl.u32 2475754826, %v3314
        %v3318 = vor.u32 %v3316, %v3317
        %v3319 = vshll.u32 2475754826, %v3313
        %v3320 = vshrl.u32 2131351028, %v3314
        %v3321 = vor.u32 %v3319, %v3320
        %v3322 = vshll.u32 2131351028, %v3313
        %v3323 = vshrl.u32 2102212464, %v3314
        %v3324 = vor.u32 %v3322, %v3323
        %v3325 = vshll.u32 2102212464, %v3313
        %v3326 = vshrl.u32 920167782, %v3314
        %v3327 = vor.u32 %v3325, %v3326
        %v3328 = vshll.u32 920167782, %v3313
        %v3329 = vshrl.u32 1326507024, %v3314
        %v3330 = vor.u32 %v3328, %v3329
        %vm3331 = vcmp.lt.s32.totalorder %v3312, 1
        %vm3332 = vcmp.lt.s32.totalorder %v3312, 2
        %vm3333 = vcmp.lt.s32.totalorder %v3312, 3
        %vm3334 = vcmp.lt.s32.totalorder %v3312, 4
        %v3335 = vsel %vm3331, %v3315, %v3318
        %v3336 = vsel %vm3334, %v3324, 2102212464
        %v3337 = vsel %vm3333, %v3321, %v3336
        %v3338 = vsel %vm3332, %v3335, %v3337
        %v3339 = vsel %vm3331, %v3318, %v3321
        %v3340 = vsel %vm3334, %v3327, 920167782
        %v3341 = vsel %vm3333, %v3324, %v3340
        %v3342 = vsel %vm3332, %v3339, %v3341
        %v3343 = vsel %vm3331, %v3321, %v3324
        %v3344 = vsel %vm3334, %v3330, 1326507024
        %v3345 = vsel %vm3333, %v3327, %v3344
        %v3346 = vsel %vm3332, %v3343, %v3345
        %v3347 = vshll.u32 %v3307, 8
        %v3348 = vmul.u32.u64.compose %v3347, %v3346
        %v3349 = vextract.low.u32 %v3348
        %v3350 = vextract.high.u32 %v3348
        %v3351 = vmul.u32.u64.compose %v3347, %v3342
        %v3352 = vextract.low.u32 %v3351
        %v3353 = vextract.high.u32 %v3351
        %v3354 = vmul.u32 %v3347, %v3338
        %v3355 = vadd.s32 %v3350, %v3352
        %vm3356 = vc.u32 %v3350, %v3352
        %v3357 = vadd.s32 %v3353, 1
        %v3358 = vsel %vm3356, %v3357, %v3353
        %v3359 = vadd.s32 %v3354, %v3358
        %v3360 = vadd.s32 %v3359, 536870912
        %v3361 = vshrl.u32 %v3360, 30
        %v3362 = vshll.u32 %v3361, 30
        %v3363 = vsub.s32 %v3359, %v3362
        %vm3364 = vcmp.lt.s32.totalorder %v3363, 0
        %v3365 = vsub.s32 0, %v3363
        %v3366 = vsel %vm3364, %v3365, %v3363
        %v3367 = vclz %v3366
        %v3368 = vsub.s32 %v3367, 2
        %vm3369 = vcmp.gt.s32.totalorder 0, %v3368
        %v3370 = vsel %vm3369, 0, %v3368
        %v3371 = vsub.s32 32, %v3370
        %v3372 = vshll.u32 %v3363, %v3370
        %v3373 = vshrl.u32 %v3355, %v3371
        %v3374 = vor.u32 %v3372, %v3373
        %v3375 = vsub.s32 4294967266, %v3370
        %v3376 = vadd.s32 %v3375, 127
        %v3377 = vshll.u32 %v3376, 23
        %v3378 = vor.u32 4788187, %v3377
        %v3379 = vand.u32 2147483647, %v3378
        %v3381 = vcvt.s32.f32 %v3374
        %v3382 = vmul.f32 %v3381, %v3379
        %v3383 = vxor.u32 %v3382, 2147483648
        %v3384 = vsel %vm3301, %v3383, %v3382
        %v3385 = vsub.s32 4, %v3361
        %v3386 = vsel %vm3301, %v3385, %v3361
        %v3387 = vsel %vm3300, %v3277, %v3384
        %v3388 = vsel %vm3300, 0, %v3386
        %v3389 = vcosq.f32.pop %v3387
        %v3390 = vsinq.f32.pop %v3387
        %vm3391 = vweird.f32 %v3277
        %v3392 = vadd.s32 %v3388, 3
        %v3393 = vand.u32 %v3392, 3
        %vm3394 = vcmp.lt.s32.totalorder %v3393, 2
        %vm3395 = vcmp.eq.s32.totalorder %v3393, 0
        %v3396 = vxor.u32 %v3390, 2147483648
        %v3397 = vsel %vm3395, %v3389, %v3396
        %vm3398 = vcmp.eq.s32.totalorder %v3393, 2
        %v3399 = vxor.u32 %v3389, 2147483648
        %v3400 = vsel %vm3398, %v3399, %v3390
        %v3401 = vsel %vm3394, %v3397, %v3400
        %v3402 = vsel %vm3391, nan, %v3401
        %v3403 = vand.u32 2147483647, %v3279
        %vm3404 = vcmp.le.f32.partialorder %v3403, 0.7853982
        %vm3405 = vcmp.lt.s32.totalorder %v3279, 0
        %v3406 = vand.u32 %v3279, 2139095040
        %v3407 = vshrl.u32 %v3406, 23
        %v3408 = vsub.s32 %v3407, 127
        %v3409 = vand.u32 2147483647, %v3279
        %v3410 = vand.u32 %v3409, 8388607
        %v3411 = vor.u32 %v3410, 8388608
        %v3412 = vsub.s32 0, %v3411
        %v3413 = vadd.s32 %v3408, 1
        %vm3414 = vcmp.gt.s32.totalorder %v3413, 0
        %v3415 = vsel %vm3414, %v3413, 0
        %v3416 = vshrl.u32 %v3415, 5
        %v3417 = vand.u32 %v3415, 31
        %v3418 = vsub.s32 32, %v3417
        %v3419 = vshrl.u32 683565275, %v3418
        %v3420 = vshll.u32 683565275, %v3417
        %v3421 = vshrl.u32 2475754826, %v3418
        %v3422 = vor.u32 %v3420, %v3421
        %v3423 = vshll.u32 2475754826, %v3417
        %v3424 = vshrl.u32 2131351028, %v3418
        %v3425 = vor.u32 %v3423, %v3424
        %v3426 = vshll.u32 2131351028, %v3417
        %v3427 = vshrl.u32 2102212464, %v3418
        %v3428 = vor.u32 %v3426, %v3427
        %v3429 = vshll.u32 2102212464, %v3417
        %v3430 = vshrl.u32 920167782, %v3418
        %v3431 = vor.u32 %v3429, %v3430
        %v3432 = vshll.u32 920167782, %v3417
        %v3433 = vshrl.u32 1326507024, %v3418
        %v3434 = vor.u32 %v3432, %v3433
        %vm3435 = vcmp.lt.s32.totalorder %v3416, 1
        %vm3436 = vcmp.lt.s32.totalorder %v3416, 2
        %vm3437 = vcmp.lt.s32.totalorder %v3416, 3
        %vm3438 = vcmp.lt.s32.totalorder %v3416, 4
        %v3439 = vsel %vm3435, %v3419, %v3422
        %v3440 = vsel %vm3438, %v3428, 2102212464
        %v3441 = vsel %vm3437, %v3425, %v3440
        %v3442 = vsel %vm3436, %v3439, %v3441
        %v3443 = vsel %vm3435, %v3422, %v3425
        %v3444 = vsel %vm3438, %v3431, 920167782
        %v3445 = vsel %vm3437, %v3428, %v3444
        %v3446 = vsel %vm3436, %v3443, %v3445
        %v3447 = vsel %vm3435, %v3425, %v3428
        %v3448 = vsel %vm3438, %v3434, 1326507024
        %v3449 = vsel %vm3437, %v3431, %v3448
        %v3450 = vsel %vm3436, %v3447, %v3449
        %v3451 = vshll.u32 %v3411, 8
        %v3452 = vmul.u32.u64.compose %v3451, %v3450
        %v3453 = vextract.low.u32 %v3452
        %v3454 = vextract.high.u32 %v3452
        %v3455 = vmul.u32.u64.compose %v3451, %v3446
        %v3456 = vextract.low.u32 %v3455
        %v3457 = vextract.high.u32 %v3455
        %v3458 = vmul.u32 %v3451, %v3442
        %v3459 = vadd.s32 %v3454, %v3456
        %vm3460 = vc.u32 %v3454, %v3456
        %v3461 = vadd.s32 %v3457, 1
        %v3462 = vsel %vm3460, %v3461, %v3457
        %v3463 = vadd.s32 %v3458, %v3462
        %v3464 = vadd.s32 %v3463, 536870912
        %v3465 = vshrl.u32 %v3464, 30
        %v3466 = vshll.u32 %v3465, 30
        %v3467 = vsub.s32 %v3463, %v3466
        %vm3468 = vcmp.lt.s32.totalorder %v3467, 0
        %v3469 = vsub.s32 0, %v3467
        %v3470 = vsel %vm3468, %v3469, %v3467
        %v3471 = vclz %v3470
        %v3472 = vsub.s32 %v3471, 2
        %vm3473 = vcmp.gt.s32.totalorder 0, %v3472
        %v3474 = vsel %vm3473, 0, %v3472
        %v3475 = vsub.s32 32, %v3474
        %v3476 = vshll.u32 %v3467, %v3474
        %v3477 = vshrl.u32 %v3459, %v3475
        %v3478 = vor.u32 %v3476, %v3477
        %v3479 = vsub.s32 4294967266, %v3474
        %v3480 = vadd.s32 %v3479, 127
        %v3481 = vshll.u32 %v3480, 23
        %v3482 = vor.u32 4788187, %v3481
        %v3483 = vand.u32 2147483647, %v3482
        %v3485 = vcvt.s32.f32 %v3478
        %v3486 = vmul.f32 %v3485, %v3483
        %v3487 = vxor.u32 %v3486, 2147483648
        %v3488 = vsel %vm3405, %v3487, %v3486
        %v3489 = vsub.s32 4, %v3465
        %v3490 = vsel %vm3405, %v3489, %v3465
        %v3491 = vsel %vm3404, %v3279, %v3488
        %v3492 = vsel %vm3404, 0, %v3490
        %v3493 = vcosq.f32.pop %v3491
        %v3494 = vsinq.f32.pop %v3491
        %vm3495 = vweird.f32 %v3279
        %v3496 = vadd.s32 %v3492, 3
        %v3497 = vand.u32 %v3496, 3
        %vm3498 = vcmp.lt.s32.totalorder %v3497, 2
        %vm3499 = vcmp.eq.s32.totalorder %v3497, 0
        %v3500 = vxor.u32 %v3494, 2147483648
        %v3501 = vsel %vm3499, %v3493, %v3500
        %vm3502 = vcmp.eq.s32.totalorder %v3497, 2
        %v3503 = vxor.u32 %v3493, 2147483648
        %v3504 = vsel %vm3502, %v3503, %v3494
        %v3505 = vsel %vm3498, %v3501, %v3504
        %v3506 = vsel %vm3495, nan, %v3505
        %v3507 = vand.u32 2147483647, %v3283
        %vm3508 = vcmp.le.f32.partialorder %v3507, 0.7853982
        %vm3509 = vcmp.lt.s32.totalorder %v3283, 0
        %v3510 = vand.u32 %v3283, 2139095040
        %v3511 = vshrl.u32 %v3510, 23
        %v3512 = vsub.s32 %v3511, 127
        %v3513 = vand.u32 2147483647, %v3283
        %v3514 = vand.u32 %v3513, 8388607
        %v3515 = vor.u32 %v3514, 8388608
        %v3516 = vsub.s32 0, %v3515
        %v3517 = vadd.s32 %v3512, 1
        %vm3518 = vcmp.gt.s32.totalorder %v3517, 0
        %v3519 = vsel %vm3518, %v3517, 0
        %v3520 = vshrl.u32 %v3519, 5
        %v3521 = vand.u32 %v3519, 31
        %v3522 = vsub.s32 32, %v3521
        %v3523 = vshrl.u32 683565275, %v3522
        %v3524 = vshll.u32 683565275, %v3521
        %v3525 = vshrl.u32 2475754826, %v3522
        %v3526 = vor.u32 %v3524, %v3525
        %v3527 = vshll.u32 2475754826, %v3521
        %v3528 = vshrl.u32 2131351028, %v3522
        %v3529 = vor.u32 %v3527, %v3528
        %v3530 = vshll.u32 2131351028, %v3521
        %v3531 = vshrl.u32 2102212464, %v3522
        %v3532 = vor.u32 %v3530, %v3531
        %v3533 = vshll.u32 2102212464, %v3521
        %v3534 = vshrl.u32 920167782, %v3522
        %v3535 = vor.u32 %v3533, %v3534
        %v3536 = vshll.u32 920167782, %v3521
        %v3537 = vshrl.u32 1326507024, %v3522
        %v3538 = vor.u32 %v3536, %v3537
        %vm3539 = vcmp.lt.s32.totalorder %v3520, 1
        %vm3540 = vcmp.lt.s32.totalorder %v3520, 2
        %vm3541 = vcmp.lt.s32.totalorder %v3520, 3
        %vm3542 = vcmp.lt.s32.totalorder %v3520, 4
        %v3543 = vsel %vm3539, %v3523, %v3526
        %v3544 = vsel %vm3542, %v3532, 2102212464
        %v3545 = vsel %vm3541, %v3529, %v3544
        %v3546 = vsel %vm3540, %v3543, %v3545
        %v3547 = vsel %vm3539, %v3526, %v3529
        %v3548 = vsel %vm3542, %v3535, 920167782
        %v3549 = vsel %vm3541, %v3532, %v3548
        %v3550 = vsel %vm3540, %v3547, %v3549
        %v3551 = vsel %vm3539, %v3529, %v3532
        %v3552 = vsel %vm3542, %v3538, 1326507024
        %v3553 = vsel %vm3541, %v3535, %v3552
        %v3554 = vsel %vm3540, %v3551, %v3553
        %v3555 = vshll.u32 %v3515, 8
        %v3556 = vmul.u32.u64.compose %v3555, %v3554
        %v3557 = vextract.low.u32 %v3556
        %v3558 = vextract.high.u32 %v3556
        %v3559 = vmul.u32.u64.compose %v3555, %v3550
        %v3560 = vextract.low.u32 %v3559
        %v3561 = vextract.high.u32 %v3559
        %v3562 = vmul.u32 %v3555, %v3546
        %v3563 = vadd.s32 %v3558, %v3560
        %vm3564 = vc.u32 %v3558, %v3560
        %v3565 = vadd.s32 %v3561, 1
        %v3566 = vsel %vm3564, %v3565, %v3561
        %v3567 = vadd.s32 %v3562, %v3566
        %v3568 = vadd.s32 %v3567, 536870912
        %v3569 = vshrl.u32 %v3568, 30
        %v3570 = vshll.u32 %v3569, 30
        %v3571 = vsub.s32 %v3567, %v3570
        %vm3572 = vcmp.lt.s32.totalorder %v3571, 0
        %v3573 = vsub.s32 0, %v3571
        %v3574 = vsel %vm3572, %v3573, %v3571
        %v3575 = vclz %v3574
        %v3576 = vsub.s32 %v3575, 2
        %vm3577 = vcmp.gt.s32.totalorder 0, %v3576
        %v3578 = vsel %vm3577, 0, %v3576
        %v3579 = vsub.s32 32, %v3578
        %v3580 = vshll.u32 %v3571, %v3578
        %v3581 = vshrl.u32 %v3563, %v3579
        %v3582 = vor.u32 %v3580, %v3581
        %v3583 = vsub.s32 4294967266, %v3578
        %v3584 = vadd.s32 %v3583, 127
        %v3585 = vshll.u32 %v3584, 23
        %v3586 = vor.u32 4788187, %v3585
        %v3587 = vand.u32 2147483647, %v3586
        %v3589 = vcvt.s32.f32 %v3582
        %v3590 = vmul.f32 %v3589, %v3587
        %v3591 = vxor.u32 %v3590, 2147483648
        %v3592 = vsel %vm3509, %v3591, %v3590
        %v3593 = vsub.s32 4, %v3569
        %v3594 = vsel %vm3509, %v3593, %v3569
        %v3595 = vsel %vm3508, %v3283, %v3592
        %v3596 = vsel %vm3508, 0, %v3594
        %v3597 = vcosq.f32.pop %v3595
        %v3598 = vsinq.f32.pop %v3595
        %vm3599 = vweird.f32 %v3283
        %v3600 = vadd.s32 %v3596, 3
        %v3601 = vand.u32 %v3600, 3
        %vm3602 = vcmp.lt.s32.totalorder %v3601, 2
        %vm3603 = vcmp.eq.s32.totalorder %v3601, 0
        %v3604 = vxor.u32 %v3598, 2147483648
        %v3605 = vsel %vm3603, %v3597, %v3604
        %vm3606 = vcmp.eq.s32.totalorder %v3601, 2
        %v3607 = vxor.u32 %v3597, 2147483648
        %v3608 = vsel %vm3606, %v3607, %v3598
        %v3609 = vsel %vm3602, %v3605, %v3608
        %v3610 = vsel %vm3599, nan, %v3609
        %v3611 = vand.u32 2147483647, %v3285
        %vm3612 = vcmp.le.f32.partialorder %v3611, 0.7853982
        %vm3613 = vcmp.lt.s32.totalorder %v3285, 0
        %v3614 = vand.u32 %v3285, 2139095040
        %v3615 = vshrl.u32 %v3614, 23
        %v3616 = vsub.s32 %v3615, 127
        %v3617 = vand.u32 2147483647, %v3285
        %v3618 = vand.u32 %v3617, 8388607
        %v3619 = vor.u32 %v3618, 8388608
        %v3620 = vsub.s32 0, %v3619
        %v3621 = vadd.s32 %v3616, 1
        %vm3622 = vcmp.gt.s32.totalorder %v3621, 0
        %v3623 = vsel %vm3622, %v3621, 0
        %v3624 = vshrl.u32 %v3623, 5
        %v3625 = vand.u32 %v3623, 31
        %v3626 = vsub.s32 32, %v3625
        %v3627 = vshrl.u32 683565275, %v3626
        %v3628 = vshll.u32 683565275, %v3625
        %v3629 = vshrl.u32 2475754826, %v3626
        %v3630 = vor.u32 %v3628, %v3629
        %v3631 = vshll.u32 2475754826, %v3625
        %v3632 = vshrl.u32 2131351028, %v3626
        %v3633 = vor.u32 %v3631, %v3632
        %v3634 = vshll.u32 2131351028, %v3625
        %v3635 = vshrl.u32 2102212464, %v3626
        %v3636 = vor.u32 %v3634, %v3635
        %v3637 = vshll.u32 2102212464, %v3625
        %v3638 = vshrl.u32 920167782, %v3626
        %v3639 = vor.u32 %v3637, %v3638
        %v3640 = vshll.u32 920167782, %v3625
        %v3641 = vshrl.u32 1326507024, %v3626
        %v3642 = vor.u32 %v3640, %v3641
        %vm3643 = vcmp.lt.s32.totalorder %v3624, 1
        %vm3644 = vcmp.lt.s32.totalorder %v3624, 2
        %vm3645 = vcmp.lt.s32.totalorder %v3624, 3
        %vm3646 = vcmp.lt.s32.totalorder %v3624, 4
        %v3647 = vsel %vm3643, %v3627, %v3630
        %v3648 = vsel %vm3646, %v3636, 2102212464
        %v3649 = vsel %vm3645, %v3633, %v3648
        %v3650 = vsel %vm3644, %v3647, %v3649
        %v3651 = vsel %vm3643, %v3630, %v3633
        %v3652 = vsel %vm3646, %v3639, 920167782
        %v3653 = vsel %vm3645, %v3636, %v3652
        %v3654 = vsel %vm3644, %v3651, %v3653
        %v3655 = vsel %vm3643, %v3633, %v3636
        %v3656 = vsel %vm3646, %v3642, 1326507024
        %v3657 = vsel %vm3645, %v3639, %v3656
        %v3658 = vsel %vm3644, %v3655, %v3657
        %v3659 = vshll.u32 %v3619, 8
        %v3660 = vmul.u32.u64.compose %v3659, %v3658
        %v3661 = vextract.low.u32 %v3660
        %v3662 = vextract.high.u32 %v3660
        %v3663 = vmul.u32.u64.compose %v3659, %v3654
        %v3664 = vextract.low.u32 %v3663
        %v3665 = vextract.high.u32 %v3663
        %v3666 = vmul.u32 %v3659, %v3650
        %v3667 = vadd.s32 %v3662, %v3664
        %vm3668 = vc.u32 %v3662, %v3664
        %v3669 = vadd.s32 %v3665, 1
        %v3670 = vsel %vm3668, %v3669, %v3665
        %v3671 = vadd.s32 %v3666, %v3670
        %v3672 = vadd.s32 %v3671, 536870912
        %v3673 = vshrl.u32 %v3672, 30
        %v3674 = vshll.u32 %v3673, 30
        %v3675 = vsub.s32 %v3671, %v3674
        %vm3676 = vcmp.lt.s32.totalorder %v3675, 0
        %v3677 = vsub.s32 0, %v3675
        %v3678 = vsel %vm3676, %v3677, %v3675
        %v3679 = vclz %v3678
        %v3680 = vsub.s32 %v3679, 2
        %vm3681 = vcmp.gt.s32.totalorder 0, %v3680
        %v3682 = vsel %vm3681, 0, %v3680
        %v3683 = vsub.s32 32, %v3682
        %v3684 = vshll.u32 %v3675, %v3682
        %v3685 = vshrl.u32 %v3667, %v3683
        %v3686 = vor.u32 %v3684, %v3685
        %v3687 = vsub.s32 4294967266, %v3682
        %v3688 = vadd.s32 %v3687, 127
        %v3689 = vshll.u32 %v3688, 23
        %v3690 = vor.u32 4788187, %v3689
        %v3691 = vand.u32 2147483647, %v3690
        %v3693 = vcvt.s32.f32 %v3686
        %v3694 = vmul.f32 %v3693, %v3691
        %v3695 = vxor.u32 %v3694, 2147483648
        %v3696 = vsel %vm3613, %v3695, %v3694
        %v3697 = vsub.s32 4, %v3673
        %v3698 = vsel %vm3613, %v3697, %v3673
        %v3699 = vsel %vm3612, %v3285, %v3696
        %v3700 = vsel %vm3612, 0, %v3698
        %v3701 = vcosq.f32.pop %v3699
        %v3702 = vsinq.f32.pop %v3699
        %vm3703 = vweird.f32 %v3285
        %v3704 = vadd.s32 %v3700, 3
        %v3705 = vand.u32 %v3704, 3
        %vm3706 = vcmp.lt.s32.totalorder %v3705, 2
        %vm3707 = vcmp.eq.s32.totalorder %v3705, 0
        %v3708 = vxor.u32 %v3702, 2147483648
        %v3709 = vsel %vm3707, %v3701, %v3708
        %vm3710 = vcmp.eq.s32.totalorder %v3705, 2
        %v3711 = vxor.u32 %v3701, 2147483648
        %v3712 = vsel %vm3710, %v3711, %v3702
        %v3713 = vsel %vm3706, %v3709, %v3712
        %v3714 = vsel %vm3703, nan, %v3713
        %v3715 = vand.u32 2147483647, %v3289
        %vm3716 = vcmp.le.f32.partialorder %v3715, 0.7853982
        %vm3717 = vcmp.lt.s32.totalorder %v3289, 0
        %v3718 = vand.u32 %v3289, 2139095040
        %v3719 = vshrl.u32 %v3718, 23
        %v3720 = vsub.s32 %v3719, 127
        %v3721 = vand.u32 2147483647, %v3289
        %v3722 = vand.u32 %v3721, 8388607
        %v3723 = vor.u32 %v3722, 8388608
        %v3724 = vsub.s32 0, %v3723
        %v3725 = vadd.s32 %v3720, 1
        %vm3726 = vcmp.gt.s32.totalorder %v3725, 0
        %v3727 = vsel %vm3726, %v3725, 0
        %v3728 = vshrl.u32 %v3727, 5
        %v3729 = vand.u32 %v3727, 31
        %v3730 = vsub.s32 32, %v3729
        %v3731 = vshrl.u32 683565275, %v3730
        %v3732 = vshll.u32 683565275, %v3729
        %v3733 = vshrl.u32 2475754826, %v3730
        %v3734 = vor.u32 %v3732, %v3733
        %v3735 = vshll.u32 2475754826, %v3729
        %v3736 = vshrl.u32 2131351028, %v3730
        %v3737 = vor.u32 %v3735, %v3736
        %v3738 = vshll.u32 2131351028, %v3729
        %v3739 = vshrl.u32 2102212464, %v3730
        %v3740 = vor.u32 %v3738, %v3739
        %v3741 = vshll.u32 2102212464, %v3729
        %v3742 = vshrl.u32 920167782, %v3730
        %v3743 = vor.u32 %v3741, %v3742
        %v3744 = vshll.u32 920167782, %v3729
        %v3745 = vshrl.u32 1326507024, %v3730
        %v3746 = vor.u32 %v3744, %v3745
        %vm3747 = vcmp.lt.s32.totalorder %v3728, 1
        %vm3748 = vcmp.lt.s32.totalorder %v3728, 2
        %vm3749 = vcmp.lt.s32.totalorder %v3728, 3
        %vm3750 = vcmp.lt.s32.totalorder %v3728, 4
        %v3751 = vsel %vm3747, %v3731, %v3734
        %v3752 = vsel %vm3750, %v3740, 2102212464
        %v3753 = vsel %vm3749, %v3737, %v3752
        %v3754 = vsel %vm3748, %v3751, %v3753
        %v3755 = vsel %vm3747, %v3734, %v3737
        %v3756 = vsel %vm3750, %v3743, 920167782
        %v3757 = vsel %vm3749, %v3740, %v3756
        %v3758 = vsel %vm3748, %v3755, %v3757
        %v3759 = vsel %vm3747, %v3737, %v3740
        %v3760 = vsel %vm3750, %v3746, 1326507024
        %v3761 = vsel %vm3749, %v3743, %v3760
        %v3762 = vsel %vm3748, %v3759, %v3761
        %v3763 = vshll.u32 %v3723, 8
        %v3764 = vmul.u32.u64.compose %v3763, %v3762
        %v3765 = vextract.low.u32 %v3764
        %v3766 = vextract.high.u32 %v3764
        %v3767 = vmul.u32.u64.compose %v3763, %v3758
        %v3768 = vextract.low.u32 %v3767
        %v3769 = vextract.high.u32 %v3767
        %v3770 = vmul.u32 %v3763, %v3754
        %v3771 = vadd.s32 %v3766, %v3768
        %vm3772 = vc.u32 %v3766, %v3768
        %v3773 = vadd.s32 %v3769, 1
        %v3774 = vsel %vm3772, %v3773, %v3769
        %v3775 = vadd.s32 %v3770, %v3774
        %v3776 = vadd.s32 %v3775, 536870912
        %v3777 = vshrl.u32 %v3776, 30
        %v3778 = vshll.u32 %v3777, 30
        %v3779 = vsub.s32 %v3775, %v3778
        %vm3780 = vcmp.lt.s32.totalorder %v3779, 0
        %v3781 = vsub.s32 0, %v3779
        %v3782 = vsel %vm3780, %v3781, %v3779
        %v3783 = vclz %v3782
        %v3784 = vsub.s32 %v3783, 2
        %vm3785 = vcmp.gt.s32.totalorder 0, %v3784
        %v3786 = vsel %vm3785, 0, %v3784
        %v3787 = vsub.s32 32, %v3786
        %v3788 = vshll.u32 %v3779, %v3786
        %v3789 = vshrl.u32 %v3771, %v3787
        %v3790 = vor.u32 %v3788, %v3789
        %v3791 = vsub.s32 4294967266, %v3786
        %v3792 = vadd.s32 %v3791, 127
        %v3793 = vshll.u32 %v3792, 23
        %v3794 = vor.u32 4788187, %v3793
        %v3795 = vand.u32 2147483647, %v3794
        %v3797 = vcvt.s32.f32 %v3790
        %v3798 = vmul.f32 %v3797, %v3795
        %v3799 = vxor.u32 %v3798, 2147483648
        %v3800 = vsel %vm3717, %v3799, %v3798
        %v3801 = vsub.s32 4, %v3777
        %v3802 = vsel %vm3717, %v3801, %v3777
        %v3803 = vsel %vm3716, %v3289, %v3800
        %v3804 = vsel %vm3716, 0, %v3802
        %v3805 = vcosq.f32.pop %v3803
        %v3806 = vsinq.f32.pop %v3803
        %vm3807 = vweird.f32 %v3289
        %v3808 = vadd.s32 %v3804, 3
        %v3809 = vand.u32 %v3808, 3
        %vm3810 = vcmp.lt.s32.totalorder %v3809, 2
        %vm3811 = vcmp.eq.s32.totalorder %v3809, 0
        %v3812 = vxor.u32 %v3806, 2147483648
        %v3813 = vsel %vm3811, %v3805, %v3812
        %vm3814 = vcmp.eq.s32.totalorder %v3809, 2
        %v3815 = vxor.u32 %v3805, 2147483648
        %v3816 = vsel %vm3814, %v3815, %v3806
        %v3817 = vsel %vm3810, %v3813, %v3816
        %v3818 = vsel %vm3807, nan, %v3817
        %v3819 = vand.u32 2147483647, %v3291
        %vm3820 = vcmp.le.f32.partialorder %v3819, 0.7853982
        %vm3821 = vcmp.lt.s32.totalorder %v3291, 0
        %v3822 = vand.u32 %v3291, 2139095040
        %v3823 = vshrl.u32 %v3822, 23
        %v3824 = vsub.s32 %v3823, 127
        %v3825 = vand.u32 2147483647, %v3291
        %v3826 = vand.u32 %v3825, 8388607
        %v3827 = vor.u32 %v3826, 8388608
        %v3828 = vsub.s32 0, %v3827
        %v3829 = vadd.s32 %v3824, 1
        %vm3830 = vcmp.gt.s32.totalorder %v3829, 0
        %v3831 = vsel %vm3830, %v3829, 0
        %v3832 = vshrl.u32 %v3831, 5
        %v3833 = vand.u32 %v3831, 31
        %v3834 = vsub.s32 32, %v3833
        %v3835 = vshrl.u32 683565275, %v3834
        %v3836 = vshll.u32 683565275, %v3833
        %v3837 = vshrl.u32 2475754826, %v3834
        %v3838 = vor.u32 %v3836, %v3837
        %v3839 = vshll.u32 2475754826, %v3833
        %v3840 = vshrl.u32 2131351028, %v3834
        %v3841 = vor.u32 %v3839, %v3840
        %v3842 = vshll.u32 2131351028, %v3833
        %v3843 = vshrl.u32 2102212464, %v3834
        %v3844 = vor.u32 %v3842, %v3843
        %v3845 = vshll.u32 2102212464, %v3833
        %v3846 = vshrl.u32 920167782, %v3834
        %v3847 = vor.u32 %v3845, %v3846
        %v3848 = vshll.u32 920167782, %v3833
        %v3849 = vshrl.u32 1326507024, %v3834
        %v3850 = vor.u32 %v3848, %v3849
        %vm3851 = vcmp.lt.s32.totalorder %v3832, 1
        %vm3852 = vcmp.lt.s32.totalorder %v3832, 2
        %vm3853 = vcmp.lt.s32.totalorder %v3832, 3
        %vm3854 = vcmp.lt.s32.totalorder %v3832, 4
        %v3855 = vsel %vm3851, %v3835, %v3838
        %v3856 = vsel %vm3854, %v3844, 2102212464
        %v3857 = vsel %vm3853, %v3841, %v3856
        %v3858 = vsel %vm3852, %v3855, %v3857
        %v3859 = vsel %vm3851, %v3838, %v3841
        %v3860 = vsel %vm3854, %v3847, 920167782
        %v3861 = vsel %vm3853, %v3844, %v3860
        %v3862 = vsel %vm3852, %v3859, %v3861
        %v3863 = vsel %vm3851, %v3841, %v3844
        %v3864 = vsel %vm3854, %v3850, 1326507024
        %v3865 = vsel %vm3853, %v3847, %v3864
        %v3866 = vsel %vm3852, %v3863, %v3865
        %v3867 = vshll.u32 %v3827, 8
        %v3868 = vmul.u32.u64.compose %v3867, %v3866
        %v3869 = vextract.low.u32 %v3868
        %v3870 = vextract.high.u32 %v3868
        %v3871 = vmul.u32.u64.compose %v3867, %v3862
        %v3872 = vextract.low.u32 %v3871
        %v3873 = vextract.high.u32 %v3871
        %v3874 = vmul.u32 %v3867, %v3858
        %v3875 = vadd.s32 %v3870, %v3872
        %vm3876 = vc.u32 %v3870, %v3872
        %v3877 = vadd.s32 %v3873, 1
        %v3878 = vsel %vm3876, %v3877, %v3873
        %v3879 = vadd.s32 %v3874, %v3878
        %v3880 = vadd.s32 %v3879, 536870912
        %v3881 = vshrl.u32 %v3880, 30
        %v3882 = vshll.u32 %v3881, 30
        %v3883 = vsub.s32 %v3879, %v3882
        %vm3884 = vcmp.lt.s32.totalorder %v3883, 0
        %v3885 = vsub.s32 0, %v3883
        %v3886 = vsel %vm3884, %v3885, %v3883
        %v3887 = vclz %v3886
        %v3888 = vsub.s32 %v3887, 2
        %vm3889 = vcmp.gt.s32.totalorder 0, %v3888
        %v3890 = vsel %vm3889, 0, %v3888
        %v3891 = vsub.s32 32, %v3890
        %v3892 = vshll.u32 %v3883, %v3890
        %v3893 = vshrl.u32 %v3875, %v3891
        %v3894 = vor.u32 %v3892, %v3893
        %v3895 = vsub.s32 4294967266, %v3890
        %v3896 = vadd.s32 %v3895, 127
        %v3897 = vshll.u32 %v3896, 23
        %v3898 = vor.u32 4788187, %v3897
        %v3899 = vand.u32 2147483647, %v3898
        %v3901 = vcvt.s32.f32 %v3894
        %v3902 = vmul.f32 %v3901, %v3899
        %v3903 = vxor.u32 %v3902, 2147483648
        %v3904 = vsel %vm3821, %v3903, %v3902
        %v3905 = vsub.s32 4, %v3881
        %v3906 = vsel %vm3821, %v3905, %v3881
        %v3907 = vsel %vm3820, %v3291, %v3904
        %v3908 = vsel %vm3820, 0, %v3906
        %v3909 = vcosq.f32.pop %v3907
        %v3910 = vsinq.f32.pop %v3907
        %vm3911 = vweird.f32 %v3291
        %v3912 = vadd.s32 %v3908, 3
        %v3913 = vand.u32 %v3912, 3
        %vm3914 = vcmp.lt.s32.totalorder %v3913, 2
        %vm3915 = vcmp.eq.s32.totalorder %v3913, 0
        %v3916 = vxor.u32 %v3910, 2147483648
        %v3917 = vsel %vm3915, %v3909, %v3916
        %vm3918 = vcmp.eq.s32.totalorder %v3913, 2
        %v3919 = vxor.u32 %v3909, 2147483648
        %v3920 = vsel %vm3918, %v3919, %v3910
        %v3921 = vsel %vm3914, %v3917, %v3920
        %v3922 = vsel %vm3911, nan, %v3921
        %v3923 = vand.u32 2147483647, %v3295
        %vm3924 = vcmp.le.f32.partialorder %v3923, 0.7853982
        %vm3925 = vcmp.lt.s32.totalorder %v3295, 0
        %v3926 = vand.u32 %v3295, 2139095040
        %v3927 = vshrl.u32 %v3926, 23
        %v3928 = vsub.s32 %v3927, 127
        %v3929 = vand.u32 2147483647, %v3295
        %v3930 = vand.u32 %v3929, 8388607
        %v3931 = vor.u32 %v3930, 8388608
        %v3932 = vsub.s32 0, %v3931
        %v3933 = vadd.s32 %v3928, 1
        %vm3934 = vcmp.gt.s32.totalorder %v3933, 0
        %v3935 = vsel %vm3934, %v3933, 0
        %v3936 = vshrl.u32 %v3935, 5
        %v3937 = vand.u32 %v3935, 31
        %v3938 = vsub.s32 32, %v3937
        %v3939 = vshrl.u32 683565275, %v3938
        %v3940 = vshll.u32 683565275, %v3937
        %v3941 = vshrl.u32 2475754826, %v3938
        %v3942 = vor.u32 %v3940, %v3941
        %v3943 = vshll.u32 2475754826, %v3937
        %v3944 = vshrl.u32 2131351028, %v3938
        %v3945 = vor.u32 %v3943, %v3944
        %v3946 = vshll.u32 2131351028, %v3937
        %v3947 = vshrl.u32 2102212464, %v3938
        %v3948 = vor.u32 %v3946, %v3947
        %v3949 = vshll.u32 2102212464, %v3937
        %v3950 = vshrl.u32 920167782, %v3938
        %v3951 = vor.u32 %v3949, %v3950
        %v3952 = vshll.u32 920167782, %v3937
        %v3953 = vshrl.u32 1326507024, %v3938
        %v3954 = vor.u32 %v3952, %v3953
        %vm3955 = vcmp.lt.s32.totalorder %v3936, 1
        %vm3956 = vcmp.lt.s32.totalorder %v3936, 2
        %vm3957 = vcmp.lt.s32.totalorder %v3936, 3
        %vm3958 = vcmp.lt.s32.totalorder %v3936, 4
        %v3959 = vsel %vm3955, %v3939, %v3942
        %v3960 = vsel %vm3958, %v3948, 2102212464
        %v3961 = vsel %vm3957, %v3945, %v3960
        %v3962 = vsel %vm3956, %v3959, %v3961
        %v3963 = vsel %vm3955, %v3942, %v3945
        %v3964 = vsel %vm3958, %v3951, 920167782
        %v3965 = vsel %vm3957, %v3948, %v3964
        %v3966 = vsel %vm3956, %v3963, %v3965
        %v3967 = vsel %vm3955, %v3945, %v3948
        %v3968 = vsel %vm3958, %v3954, 1326507024
        %v3969 = vsel %vm3957, %v3951, %v3968
        %v3970 = vsel %vm3956, %v3967, %v3969
        %v3971 = vshll.u32 %v3931, 8
        %v3972 = vmul.u32.u64.compose %v3971, %v3970
        %v3973 = vextract.low.u32 %v3972
        %v3974 = vextract.high.u32 %v3972
        %v3975 = vmul.u32.u64.compose %v3971, %v3966
        %v3976 = vextract.low.u32 %v3975
        %v3977 = vextract.high.u32 %v3975
        %v3978 = vmul.u32 %v3971, %v3962
        %v3979 = vadd.s32 %v3974, %v3976
        %vm3980 = vc.u32 %v3974, %v3976
        %v3981 = vadd.s32 %v3977, 1
        %v3982 = vsel %vm3980, %v3981, %v3977
        %v3983 = vadd.s32 %v3978, %v3982
        %v3984 = vadd.s32 %v3983, 536870912
        %v3985 = vshrl.u32 %v3984, 30
        %v3986 = vshll.u32 %v3985, 30
        %v3987 = vsub.s32 %v3983, %v3986
        %vm3988 = vcmp.lt.s32.totalorder %v3987, 0
        %v3989 = vsub.s32 0, %v3987
        %v3990 = vsel %vm3988, %v3989, %v3987
        %v3991 = vclz %v3990
        %v3992 = vsub.s32 %v3991, 2
        %vm3993 = vcmp.gt.s32.totalorder 0, %v3992
        %v3994 = vsel %vm3993, 0, %v3992
        %v3995 = vsub.s32 32, %v3994
        %v3996 = vshll.u32 %v3987, %v3994
        %v3997 = vshrl.u32 %v3979, %v3995
        %v3998 = vor.u32 %v3996, %v3997
        %v3999 = vsub.s32 4294967266, %v3994
        %v4000 = vadd.s32 %v3999, 127
        %v4001 = vshll.u32 %v4000, 23
        %v4002 = vor.u32 4788187, %v4001
        %v4003 = vand.u32 2147483647, %v4002
        %v4005 = vcvt.s32.f32 %v3998
        %v4006 = vmul.f32 %v4005, %v4003
        %v4007 = vxor.u32 %v4006, 2147483648
        %v4008 = vsel %vm3925, %v4007, %v4006
        %v4009 = vsub.s32 4, %v3985
        %v4010 = vsel %vm3925, %v4009, %v3985
        %v4011 = vsel %vm3924, %v3295, %v4008
        %v4012 = vsel %vm3924, 0, %v4010
        %v4013 = vcosq.f32.pop %v4011
        %v4014 = vsinq.f32.pop %v4011
        %vm4015 = vweird.f32 %v3295
        %v4016 = vadd.s32 %v4012, 3
        %v4017 = vand.u32 %v4016, 3
        %vm4018 = vcmp.lt.s32.totalorder %v4017, 2
        %vm4019 = vcmp.eq.s32.totalorder %v4017, 0
        %v4020 = vxor.u32 %v4014, 2147483648
        %v4021 = vsel %vm4019, %v4013, %v4020
        %vm4022 = vcmp.eq.s32.totalorder %v4017, 2
        %v4023 = vxor.u32 %v4013, 2147483648
        %v4024 = vsel %vm4022, %v4023, %v4014
        %v4025 = vsel %vm4018, %v4021, %v4024
        %v4026 = vsel %vm4015, nan, %v4025
        %v4027 = vand.u32 2147483647, %v3297
        %vm4028 = vcmp.le.f32.partialorder %v4027, 0.7853982
        %vm4029 = vcmp.lt.s32.totalorder %v3297, 0
        %v4030 = vand.u32 %v3297, 2139095040
        %v4031 = vshrl.u32 %v4030, 23
        %v4032 = vsub.s32 %v4031, 127
        %v4033 = vand.u32 2147483647, %v3297
        %v4034 = vand.u32 %v4033, 8388607
        %v4035 = vor.u32 %v4034, 8388608
        %v4036 = vsub.s32 0, %v4035
        %v4037 = vadd.s32 %v4032, 1
        %vm4038 = vcmp.gt.s32.totalorder %v4037, 0
        %v4039 = vsel %vm4038, %v4037, 0
        %v4040 = vshrl.u32 %v4039, 5
        %v4041 = vand.u32 %v4039, 31
        %v4042 = vsub.s32 32, %v4041
        %v4043 = vshrl.u32 683565275, %v4042
        %v4044 = vshll.u32 683565275, %v4041
        %v4045 = vshrl.u32 2475754826, %v4042
        %v4046 = vor.u32 %v4044, %v4045
        %v4047 = vshll.u32 2475754826, %v4041
        %v4048 = vshrl.u32 2131351028, %v4042
        %v4049 = vor.u32 %v4047, %v4048
        %v4050 = vshll.u32 2131351028, %v4041
        %v4051 = vshrl.u32 2102212464, %v4042
        %v4052 = vor.u32 %v4050, %v4051
        %v4053 = vshll.u32 2102212464, %v4041
        %v4054 = vshrl.u32 920167782, %v4042
        %v4055 = vor.u32 %v4053, %v4054
        %v4056 = vshll.u32 920167782, %v4041
        %v4057 = vshrl.u32 1326507024, %v4042
        %v4058 = vor.u32 %v4056, %v4057
        %vm4059 = vcmp.lt.s32.totalorder %v4040, 1
        %vm4060 = vcmp.lt.s32.totalorder %v4040, 2
        %vm4061 = vcmp.lt.s32.totalorder %v4040, 3
        %vm4062 = vcmp.lt.s32.totalorder %v4040, 4
        %v4063 = vsel %vm4059, %v4043, %v4046
        %v4064 = vsel %vm4062, %v4052, 2102212464
        %v4065 = vsel %vm4061, %v4049, %v4064
        %v4066 = vsel %vm4060, %v4063, %v4065
        %v4067 = vsel %vm4059, %v4046, %v4049
        %v4068 = vsel %vm4062, %v4055, 920167782
        %v4069 = vsel %vm4061, %v4052, %v4068
        %v4070 = vsel %vm4060, %v4067, %v4069
        %v4071 = vsel %vm4059, %v4049, %v4052
        %v4072 = vsel %vm4062, %v4058, 1326507024
        %v4073 = vsel %vm4061, %v4055, %v4072
        %v4074 = vsel %vm4060, %v4071, %v4073
        %v4075 = vshll.u32 %v4035, 8
        %v4076 = vmul.u32.u64.compose %v4075, %v4074
        %v4077 = vextract.low.u32 %v4076
        %v4078 = vextract.high.u32 %v4076
        %v4079 = vmul.u32.u64.compose %v4075, %v4070
        %v4080 = vextract.low.u32 %v4079
        %v4081 = vextract.high.u32 %v4079
        %v4082 = vmul.u32 %v4075, %v4066
        %v4083 = vadd.s32 %v4078, %v4080
        %vm4084 = vc.u32 %v4078, %v4080
        %v4085 = vadd.s32 %v4081, 1
        %v4086 = vsel %vm4084, %v4085, %v4081
        %v4087 = vadd.s32 %v4082, %v4086
        %v4088 = vadd.s32 %v4087, 536870912
        %v4089 = vshrl.u32 %v4088, 30
        %v4090 = vshll.u32 %v4089, 30
        %v4091 = vsub.s32 %v4087, %v4090
        %vm4092 = vcmp.lt.s32.totalorder %v4091, 0
        %v4093 = vsub.s32 0, %v4091
        %v4094 = vsel %vm4092, %v4093, %v4091
        %v4095 = vclz %v4094
        %v4096 = vsub.s32 %v4095, 2
        %vm4097 = vcmp.gt.s32.totalorder 0, %v4096
        %v4098 = vsel %vm4097, 0, %v4096
        %v4099 = vsub.s32 32, %v4098
        %v4100 = vshll.u32 %v4091, %v4098
        %v4101 = vshrl.u32 %v4083, %v4099
        %v4102 = vor.u32 %v4100, %v4101
        %v4103 = vsub.s32 4294967266, %v4098
        %v4104 = vadd.s32 %v4103, 127
        %v4105 = vshll.u32 %v4104, 23
        %v4106 = vor.u32 4788187, %v4105
        %v4107 = vand.u32 2147483647, %v4106
        %v4109 = vcvt.s32.f32 %v4102
        %v4110 = vmul.f32 %v4109, %v4107
        %v4111 = vxor.u32 %v4110, 2147483648
        %v4112 = vsel %vm4029, %v4111, %v4110
        %v4113 = vsub.s32 4, %v4089
        %v4114 = vsel %vm4029, %v4113, %v4089
        %v4115 = vsel %vm4028, %v3297, %v4112
        %v4116 = vsel %vm4028, 0, %v4114
        %v4117 = vcosq.f32.pop %v4115
        %v4118 = vsinq.f32.pop %v4115
        %vm4119 = vweird.f32 %v3297
        %v4120 = vadd.s32 %v4116, 3
        %v4121 = vand.u32 %v4120, 3
        %vm4122 = vcmp.lt.s32.totalorder %v4121, 2
        %vm4123 = vcmp.eq.s32.totalorder %v4121, 0
        %v4124 = vxor.u32 %v4118, 2147483648
        %v4125 = vsel %vm4123, %v4117, %v4124
        %vm4126 = vcmp.eq.s32.totalorder %v4121, 2
        %v4127 = vxor.u32 %v4117, 2147483648
        %v4128 = vsel %vm4126, %v4127, %v4118
        %v4129 = vsel %vm4122, %v4125, %v4128
        %v4130 = vsel %vm4119, nan, %v4129
        %v4131 = vld [vmem:[%s4] sm:$0x1]
        %v4132 = vld [vmem:[#allocation2] sm:$0x1]
        %4134 = vset.pattern.permute.xlu0 0
        %4135 = vperm.xlu0 %4134, %v4132
        %v4136 = vpop.permute.xlu0 %4135
        %v4138 = vlaneseq
        %v4139 = vshrl.u32 %v4138, 7
        %v4140 = vsub.s32 0, %v4139
        %v4141 = vrot.slane %v4136, %v4140
        %v4143 = vsel %vm1271, %v4131, 0
        %4145 = vmatprep.subr.mxu0 %v3506
        %4146 = vmatpush1.msra.mxu0 %v3402
        %4147 = vmatprep.subr.mxu0 %v3714
        %4148 = vmatpush1.msra.mxu0 %v3610
        %4149 = vmatprep.subr.mxu0 %v3922
        %4150 = vmatpush1.msra.mxu0 %v3818
        %4151 = vmatprep.subr.mxu0 %v4130
        %4152 = vmatpush1.msra.mxu0 %v4026
        %4153 = vmatprep.subr.mxu0 0.0
        %4154 = vmatpush1.msra.mxu0 0.0
        %4155 = vmatprep.subr.mxu0 0.0
        %4156 = vmatpush1.msra.mxu0 0.0
        %4157 = vmatprep.subr.mxu0 0.0
        %4158 = vmatpush1.msra.mxu0 0.0
        %4159 = vmatprep.subr.mxu0 0.0
        %4160 = vmatpush1.msra.mxu0 0.0
        %4161 = vmatprep.subr.mxu0 0.0
        %4162 = vmatpush1.msra.mxu0 0.0
        %4163 = vmatprep.subr.mxu0 0.0
        %4164 = vmatpush1.msra.mxu0 0.0
        %4165 = vmatprep.subr.mxu0 0.0
        %4166 = vmatpush1.msra.mxu0 0.0
        %4167 = vmatprep.subr.mxu0 0.0
        %4168 = vmatpush1.msra.mxu0 0.0
        %4169 = vmatprep.subr.mxu0 0.0
        %4170 = vmatpush1.msra.mxu0 0.0
        %4171 = vmatprep.subr.mxu0 0.0
        %4172 = vmatpush1.msra.mxu0 0.0
        %4173 = vmatprep.subr.mxu0 0.0
        %4174 = vmatpush1.msra.mxu0 0.0
        %4175 = vmatprep.subr.mxu0 0.0
        %4176 = vmatpush1.msra.mxu0 0.0
        %4177 = vmatprep.subr.mxu0 0.0
        %4178 = vmatpush1.msra.mxu0 0.0
        %4179 = vmatprep.subr.mxu0 0.0
        %4180 = vmatpush1.msra.mxu0 0.0
        %4181 = vmatprep.subr.mxu0 0.0
        %4182 = vmatpush1.msra.mxu0 0.0
        %4183 = vmatprep.subr.mxu0 0.0
        %4184 = vmatpush1.msra.mxu0 0.0
        %4185 = vmatprep.subr.mxu0 0.0
        %4186 = vmatpush1.msra.mxu0 0.0
        %4187 = vmatprep.subr.mxu0 0.0
        %4188 = vmatpush1.msra.mxu0 0.0
        %4189 = vmatprep.subr.mxu0 0.0
        %4190 = vmatpush1.msra.mxu0 0.0
        %4191 = vmatprep.subr.mxu0 0.0
        %4192 = vmatpush1.msra.mxu0 0.0
        %4193 = vmatprep.subr.mxu0 0.0
        %4194 = vmatpush1.msra.mxu0 0.0
        %4195 = vmatprep.subr.mxu0 0.0
        %4196 = vmatpush1.msra.mxu0 0.0
        %4197 = vmatprep.subr.mxu0 0.0
        %4198 = vmatpush1.msra.mxu0 0.0
        %4199 = vmatprep.subr.mxu0 0.0
        %4200 = vmatpush1.msra.mxu0 0.0
        %4201 = vmatprep.subr.mxu0 0.0
        %4202 = vmatpush1.msra.mxu0 0.0
        %4203 = vmatprep.subr.mxu0 0.0
        %4204 = vmatpush1.msra.mxu0 0.0
        %4205 = vmatprep.subr.mxu0 0.0
        %4206 = vmatpush1.msra.mxu0 0.0
        %4207 = vmatprep.subr.mxu0 0.0
        %4208 = vmatpush1.msra.mxu0 0.0
        %4209 = vmatprep.mubr.f32.mxu0 0.0
        %4210 = vmatmul.mubr.f32.gmra.mrb[0].mxu0 %v4143
        %v4211 = vpop.f32.mrb[0].mxu0
        %v4212 = vadd.f32 %v4141, %v4211
        %v4213 = vpop.f32.mrb[0].mxu0
        %v4214 = vadd.f32 %v4141, %v4213
        %4215 = vdwg.mxu0
        %v4216 = vand.u32 2147483647, %v4212
        %vm4217 = vcmp.le.f32.partialorder %v4216, 0.7853982
        %vm4218 = vcmp.lt.s32.totalorder %v4212, 0
        %v4219 = vand.u32 %v4212, 2139095040
        %v4220 = vshrl.u32 %v4219, 23
        %v4221 = vsub.s32 %v4220, 127
        %v4222 = vand.u32 2147483647, %v4212
        %v4223 = vand.u32 %v4222, 8388607
        %v4224 = vor.u32 %v4223, 8388608
        %v4225 = vsub.s32 0, %v4224
        %v4226 = vadd.s32 %v4221, 1
        %vm4227 = vcmp.gt.s32.totalorder %v4226, 0
        %v4228 = vsel %vm4227, %v4226, 0
        %v4229 = vshrl.u32 %v4228, 5
        %v4230 = vand.u32 %v4228, 31
        %v4231 = vsub.s32 32, %v4230
        %v4232 = vshrl.u32 683565275, %v4231
        %v4233 = vshll.u32 683565275, %v4230
        %v4234 = vshrl.u32 2475754826, %v4231
        %v4235 = vor.u32 %v4233, %v4234
        %v4236 = vshll.u32 2475754826, %v4230
        %v4237 = vshrl.u32 2131351028, %v4231
        %v4238 = vor.u32 %v4236, %v4237
        %v4239 = vshll.u32 2131351028, %v4230
        %v4240 = vshrl.u32 2102212464, %v4231
        %v4241 = vor.u32 %v4239, %v4240
        %v4242 = vshll.u32 2102212464, %v4230
        %v4243 = vshrl.u32 920167782, %v4231
        %v4244 = vor.u32 %v4242, %v4243
        %v4245 = vshll.u32 920167782, %v4230
        %v4246 = vshrl.u32 1326507024, %v4231
        %v4247 = vor.u32 %v4245, %v4246
        %vm4248 = vcmp.lt.s32.totalorder %v4229, 1
        %vm4249 = vcmp.lt.s32.totalorder %v4229, 2
        %vm4250 = vcmp.lt.s32.totalorder %v4229, 3
        %vm4251 = vcmp.lt.s32.totalorder %v4229, 4
        %v4252 = vsel %vm4248, %v4232, %v4235
        %v4253 = vsel %vm4251, %v4241, 2102212464
        %v4254 = vsel %vm4250, %v4238, %v4253
        %v4255 = vsel %vm4249, %v4252, %v4254
        %v4256 = vsel %vm4248, %v4235, %v4238
        %v4257 = vsel %vm4251, %v4244, 920167782
        %v4258 = vsel %vm4250, %v4241, %v4257
        %v4259 = vsel %vm4249, %v4256, %v4258
        %v4260 = vsel %vm4248, %v4238, %v4241
        %v4261 = vsel %vm4251, %v4247, 1326507024
        %v4262 = vsel %vm4250, %v4244, %v4261
        %v4263 = vsel %vm4249, %v4260, %v4262
        %v4264 = vshll.u32 %v4224, 8
        %v4265 = vmul.u32.u64.compose %v4264, %v4263
        %v4266 = vextract.low.u32 %v4265
        %v4267 = vextract.high.u32 %v4265
        %v4268 = vmul.u32.u64.compose %v4264, %v4259
        %v4269 = vextract.low.u32 %v4268
        %v4270 = vextract.high.u32 %v4268
        %v4271 = vmul.u32 %v4264, %v4255
        %v4272 = vadd.s32 %v4267, %v4269
        %vm4273 = vc.u32 %v4267, %v4269
        %v4274 = vadd.s32 %v4270, 1
        %v4275 = vsel %vm4273, %v4274, %v4270
        %v4276 = vadd.s32 %v4271, %v4275
        %v4277 = vadd.s32 %v4276, 536870912
        %v4278 = vshrl.u32 %v4277, 30
        %v4279 = vshll.u32 %v4278, 30
        %v4280 = vsub.s32 %v4276, %v4279
        %vm4281 = vcmp.lt.s32.totalorder %v4280, 0
        %v4282 = vsub.s32 0, %v4280
        %v4283 = vsel %vm4281, %v4282, %v4280
        %v4284 = vclz %v4283
        %v4285 = vsub.s32 %v4284, 2
        %vm4286 = vcmp.gt.s32.totalorder 0, %v4285
        %v4287 = vsel %vm4286, 0, %v4285
        %v4288 = vsub.s32 32, %v4287
        %v4289 = vshll.u32 %v4280, %v4287
        %v4290 = vshrl.u32 %v4272, %v4288
        %v4291 = vor.u32 %v4289, %v4290
        %v4292 = vsub.s32 4294967266, %v4287
        %v4293 = vadd.s32 %v4292, 127
        %v4294 = vshll.u32 %v4293, 23
        %v4295 = vor.u32 4788187, %v4294
        %v4296 = vand.u32 2147483647, %v4295
        %v4298 = vcvt.s32.f32 %v4291
        %v4299 = vmul.f32 %v4298, %v4296
        %v4300 = vxor.u32 %v4299, 2147483648
        %v4301 = vsel %vm4218, %v4300, %v4299
        %v4302 = vsub.s32 4, %v4278
        %v4303 = vsel %vm4218, %v4302, %v4278
        %v4304 = vsel %vm4217, %v4212, %v4301
        %v4305 = vsel %vm4217, 0, %v4303
        %v4306 = vcosq.f32.pop %v4304
        %v4307 = vsinq.f32.pop %v4304
        %vm4308 = vweird.f32 %v4212
        %v4309 = vadd.s32 %v4305, 3
        %v4310 = vand.u32 %v4309, 3
        %vm4311 = vcmp.lt.s32.totalorder %v4310, 2
        %vm4312 = vcmp.eq.s32.totalorder %v4310, 0
        %v4313 = vxor.u32 %v4307, 2147483648
        %v4314 = vsel %vm4312, %v4306, %v4313
        %vm4315 = vcmp.eq.s32.totalorder %v4310, 2
        %v4316 = vxor.u32 %v4306, 2147483648
        %v4317 = vsel %vm4315, %v4316, %v4307
        %v4318 = vsel %vm4311, %v4314, %v4317
        %v4319 = vsel %vm4308, nan, %v4318
        %v4320 = vand.u32 2147483647, %v4214
        %vm4321 = vcmp.le.f32.partialorder %v4320, 0.7853982
        %vm4322 = vcmp.lt.s32.totalorder %v4214, 0
        %v4323 = vand.u32 %v4214, 2139095040
        %v4324 = vshrl.u32 %v4323, 23
        %v4325 = vsub.s32 %v4324, 127
        %v4326 = vand.u32 2147483647, %v4214
        %v4327 = vand.u32 %v4326, 8388607
        %v4328 = vor.u32 %v4327, 8388608
        %v4329 = vsub.s32 0, %v4328
        %v4330 = vadd.s32 %v4325, 1
        %vm4331 = vcmp.gt.s32.totalorder %v4330, 0
        %v4332 = vsel %vm4331, %v4330, 0
        %v4333 = vshrl.u32 %v4332, 5
        %v4334 = vand.u32 %v4332, 31
        %v4335 = vsub.s32 32, %v4334
        %v4336 = vshrl.u32 683565275, %v4335
        %v4337 = vshll.u32 683565275, %v4334
        %v4338 = vshrl.u32 2475754826, %v4335
        %v4339 = vor.u32 %v4337, %v4338
        %v4340 = vshll.u32 2475754826, %v4334
        %v4341 = vshrl.u32 2131351028, %v4335
        %v4342 = vor.u32 %v4340, %v4341
        %v4343 = vshll.u32 2131351028, %v4334
        %v4344 = vshrl.u32 2102212464, %v4335
        %v4345 = vor.u32 %v4343, %v4344
        %v4346 = vshll.u32 2102212464, %v4334
        %v4347 = vshrl.u32 920167782, %v4335
        %v4348 = vor.u32 %v4346, %v4347
        %v4349 = vshll.u32 920167782, %v4334
        %v4350 = vshrl.u32 1326507024, %v4335
        %v4351 = vor.u32 %v4349, %v4350
        %vm4352 = vcmp.lt.s32.totalorder %v4333, 1
        %vm4353 = vcmp.lt.s32.totalorder %v4333, 2
        %vm4354 = vcmp.lt.s32.totalorder %v4333, 3
        %vm4355 = vcmp.lt.s32.totalorder %v4333, 4
        %v4356 = vsel %vm4352, %v4336, %v4339
        %v4357 = vsel %vm4355, %v4345, 2102212464
        %v4358 = vsel %vm4354, %v4342, %v4357
        %v4359 = vsel %vm4353, %v4356, %v4358
        %v4360 = vsel %vm4352, %v4339, %v4342
        %v4361 = vsel %vm4355, %v4348, 920167782
        %v4362 = vsel %vm4354, %v4345, %v4361
        %v4363 = vsel %vm4353, %v4360, %v4362
        %v4364 = vsel %vm4352, %v4342, %v4345
        %v4365 = vsel %vm4355, %v4351, 1326507024
        %v4366 = vsel %vm4354, %v4348, %v4365
        %v4367 = vsel %vm4353, %v4364, %v4366
        %v4368 = vshll.u32 %v4328, 8
        %v4369 = vmul.u32.u64.compose %v4368, %v4367
        %v4370 = vextract.low.u32 %v4369
        %v4371 = vextract.high.u32 %v4369
        %v4372 = vmul.u32.u64.compose %v4368, %v4363
        %v4373 = vextract.low.u32 %v4372
        %v4374 = vextract.high.u32 %v4372
        %v4375 = vmul.u32 %v4368, %v4359
        %v4376 = vadd.s32 %v4371, %v4373
        %vm4377 = vc.u32 %v4371, %v4373
        %v4378 = vadd.s32 %v4374, 1
        %v4379 = vsel %vm4377, %v4378, %v4374
        %v4380 = vadd.s32 %v4375, %v4379
        %v4381 = vadd.s32 %v4380, 536870912
        %v4382 = vshrl.u32 %v4381, 30
        %v4383 = vshll.u32 %v4382, 30
        %v4384 = vsub.s32 %v4380, %v4383
        %vm4385 = vcmp.lt.s32.totalorder %v4384, 0
        %v4386 = vsub.s32 0, %v4384
        %v4387 = vsel %vm4385, %v4386, %v4384
        %v4388 = vclz %v4387
        %v4389 = vsub.s32 %v4388, 2
        %vm4390 = vcmp.gt.s32.totalorder 0, %v4389
        %v4391 = vsel %vm4390, 0, %v4389
        %v4392 = vsub.s32 32, %v4391
        %v4393 = vshll.u32 %v4384, %v4391
        %v4394 = vshrl.u32 %v4376, %v4392
        %v4395 = vor.u32 %v4393, %v4394
        %v4396 = vsub.s32 4294967266, %v4391
        %v4397 = vadd.s32 %v4396, 127
        %v4398 = vshll.u32 %v4397, 23
        %v4399 = vor.u32 4788187, %v4398
        %v4400 = vand.u32 2147483647, %v4399
        %v4402 = vcvt.s32.f32 %v4395
        %v4403 = vmul.f32 %v4402, %v4400
        %v4404 = vxor.u32 %v4403, 2147483648
        %v4405 = vsel %vm4322, %v4404, %v4403
        %v4406 = vsub.s32 4, %v4382
        %v4407 = vsel %vm4322, %v4406, %v4382
        %v4408 = vsel %vm4321, %v4214, %v4405
        %v4409 = vsel %vm4321, 0, %v4407
        %v4410 = vcosq.f32.pop %v4408
        %v4411 = vsinq.f32.pop %v4408
        %vm4412 = vweird.f32 %v4214
        %v4413 = vadd.s32 %v4409, 3
        %v4414 = vand.u32 %v4413, 3
        %vm4415 = vcmp.lt.s32.totalorder %v4414, 2
        %vm4416 = vcmp.eq.s32.totalorder %v4414, 0
        %v4417 = vxor.u32 %v4411, 2147483648
        %v4418 = vsel %vm4416, %v4410, %v4417
        %vm4419 = vcmp.eq.s32.totalorder %v4414, 2
        %v4420 = vxor.u32 %v4410, 2147483648
        %v4421 = vsel %vm4419, %v4420, %v4411
        %v4422 = vsel %vm4415, %v4418, %v4421
        %v4423 = vsel %vm4412, nan, %v4422
        %v4426 = vcombine.low %v4319, %v4423
        %v4428 = vunpack.c.l.s4 1966171168
        %v4429 = vunpack.c.0.s8 %v4428
        %v4430 = vlaneseq
        %v4431 = vshrl.u32 %v4430, 7
        %v4432 = vsub.s32 %v4429, %v4431
        %v4433 = vrot.slane %v4426, %v4432
        %v4435 = vunpack.c.l.s4 1966171168
        %v4436 = vunpack.c.0.s8 %v4435
        %v4437 = vlaneseq
        %v4438 = vshrl.u32 %v4437, 7
        %v4439 = vsub.s32 %v4436, %v4438
        %v4440 = vrot.slane %v4433, %v4439
        %v4442 = vlaneseq
        %vm4443 = vcmp.ge.s32.totalorder %v4442, 0
        %vm4444 = vcmp.lt.s32.totalorder %v4442, 256
        %vm4445 = vmand %vm4443, %vm4444
        %4446 = vst.msk [vmem:[%s274] sm:$0x3] %vm4445, %v4440
        %s4447 = sand.u32 %s183, 1
        %s4448 = scalar_lea.sflag [#allocation4], %s4447
        %s4449 = sand.u32 %s183, 1
        %s4450 = smul.addr %s4449, 2
        %s4451 = scalar_lea.vmem [#allocation3], %s4450
        // Predicated region
        $region49: #{siren_forward.2} parent=47 // pred_check
          %p4452 = pneg %p193
        $region50: #{siren_forward.2} parent=47 // pred_check_branch
          %4454 = sbr.rel (%p4452) target = $region52
        $region51: #{siren_forward.2} parent=47 // pred_region
          %s4455 = smul.u32 2, %s23
          %s4457 = ssub.s32 32, 32
          %4458 = vsyncadd %s4448, %s4457
          %s4459 = smul.addr %s4455, 16
          %s4460 = scalar_lea.hbm %s7, %s4459
          %s4462 = sshll.u32 %s4451, 4
          %s4463 = int_to_ptr.vmem [resolvable:$true] %s4462
          %4465 = dma.vmem_to_hbm [thread:$0]  %s4463, 32, %s4460, %s4448
        $region52: #{siren_forward.2} parent=47 // pred_fallthru
          _
      $region48: #{siren_forward.2} parent=5 // pred_fallthru
        _
      %p4466 = scmp.le.s32.totalorder 2, %s18
      // Predicated region
      $region53: #{siren_forward.2} parent=5 // pred_check
        %p4467 = pneg %p4466
      $region54: #{siren_forward.2} parent=5 // pred_check_branch
        %4469 = sbr.rel (%p4467) target = $region56
      $region55: #{siren_forward.2} parent=5 // pred_region
        %s4470 = ssub.s32 %s18, 2
        // Predicated region
        $region57: #{siren_forward.2} parent=55 // pred_check
          %p4471 = pneg %p199
        $region58: #{siren_forward.2} parent=55 // pred_check_branch
          %4473 = sbr.rel (%p4471) target = $region60
        $region59: #{siren_forward.2} parent=55 // pred_region
          %s4474 = sand.u32 %s184, 1
          %s4475 = scalar_lea.sflag [#allocation4], %s4474
          %s4476 = sand.u32 %s184, 1
          %s4477 = smul.addr %s4476, 2
          %s4478 = scalar_lea.vmem [#allocation3], %s4477
          %4479 = dma.done %s4475, 32
        $region60: #{siren_forward.2} parent=55 // pred_fallthru
          _
      $region56: #{siren_forward.2} parent=5 // pred_fallthru
        _
    $region6: #{siren_forward.2} parent=1 // loop_footer
      %s22 = sadd.s32 1, %s18
    $region7: #{siren_forward.2} parent=1 // loop_footer_branch
      %17 = sbr.rel target = $region3
    $region8: #{siren_forward.2} parent=1 // loop_exit
      _
    %4480 = vsyncpa [#allocation4], 1
    %s4481 = scalar_lea.sflag [#allocation4], 1
    %4482 = vsyncpa %s4481, 1

</llo_original>
